<compile_context>
chip_gen: v7x
topology: tpu7x:2x2x1
jax: 0.10.0
libtpu: 0.0.40
codegen_flags: <defaults>
</compile_context>

<pallas_src>
import math
import functools

import jax
import jax.numpy as jnp
from jax.experimental import pallas as pl
from jax.experimental.pallas import tpu as pltpu


# ----------------------------------------------------------------------------
# Pallas kernel: fused (matmul + bias [+ relu] [+ residual]) — the conv hot path
# ----------------------------------------------------------------------------
_COMPUTE_DTYPE = jnp.bfloat16   # MXU operand dtype (f32 accumulation)
_MAX_SINGLE_K = 4096            # up to this K: one full-K block, no K tiling
_TK = 512                       # K tile if K ever exceeds _MAX_SINGLE_K
_MAX_TM = 512
_MAX_TN = 512
_JNP_FALLBACK_M = 64            # below this many rows, skip pallas_call


def _round_up(x, m):
    return ((x + m - 1) // m) * m


@functools.lru_cache(maxsize=None)
def _vmem_limit_bytes():
    # v5e/v6e: 128 MiB VMEM/core, v7x: 64 MiB.  Leave ~half for compiler
    # internal scratch / deeper buffering; worst double-buffered footprint of
    # this kernel (tm=tn=512, tk=4096 bf16) is ~20 MiB.
    try:
        cap = getattr(pltpu.get_tpu_info(), "vmem_capacity_bytes", None)
    except Exception:
        cap = None
    if not cap:
        return 32 * 1024 * 1024          # safe on every chip
    return int(min(cap // 2, 48 * 1024 * 1024))


# --- nk == 1 fast path: no accumulator, no pl.when, direct store -------------
def _mm_k1_kernel(x_ref, w_ref, b_ref, o_ref, *, relu):
    y = jnp.dot(x_ref[...], w_ref[...], preferred_element_type=jnp.float32)
    y = y + b_ref[...]
    if relu:
        y = jnp.maximum(y, 0.0)
    o_ref[...] = y.astype(o_ref.dtype)


def _mm_k1_kernel_res(x_ref, w_ref, b_ref, r_ref, o_ref, *, relu):
    y = jnp.dot(x_ref[...], w_ref[...], preferred_element_type=jnp.float32)
    y = y + b_ref[...]
    if relu:
        y = jnp.maximum(y, 0.0)
    y = y + r_ref[...]               # residual added AFTER the activation
    o_ref[...] = y.astype(o_ref.dtype)


# --- generic nk > 1 path: accumulate directly into the resident f32 out block
def _mm_acc_kernel(x_ref, w_ref, b_ref, o_ref, *, relu):
    k = pl.program_id(2)

    @pl.when(k == 0)
    def _():
        o_ref[...] = jnp.zeros_like(o_ref)

    o_ref[...] += jnp.dot(x_ref[...], w_ref[...],
                          preferred_element_type=jnp.float32)

    @pl.when(k == pl.num_programs(2) - 1)
    def _():
        y = o_ref[...] + b_ref[...]
        if relu:
            y = jnp.maximum(y, 0.0)
        o_ref[...] = y


def _mm_acc_kernel_res(x_ref, w_ref, b_ref, r_ref, o_ref, *, relu):
    k = pl.program_id(2)

    @pl.when(k == 0)
    def _():
        o_ref[...] = jnp.zeros_like(o_ref)

    o_ref[...] += jnp.dot(x_ref[...], w_ref[...],
                          preferred_element_type=jnp.float32)

    @pl.when(k == pl.num_programs(2) - 1)
    def _():
        y = o_ref[...] + b_ref[...]
        if relu:
            y = jnp.maximum(y, 0.0)
        o_ref[...] = y + r_ref[...]


def fused_matmul(x, w, b, residual=None, relu=True, out_dtype=jnp.float32):
    """x:(M,K) @ w:(K,N) + b:(N,) [-> relu] [+ residual:(M,N)] -> (M,N)."""
    M, K = x.shape
    N = w.shape[1]

    # Tiny matrices (deep 1x1-spatial layers, pose heads): plain XLA; a
    # pallas_call's fixed cost dwarfs the math there.
    if M < _JNP_FALLBACK_M:
        y = jnp.dot(x, w, preferred_element_type=jnp.float32) + b
        if relu:
            y = jnp.maximum(y, 0.0)
        if residual is not None:
            y = y + residual
        return y.astype(out_dtype)

    # --- tile selection ------------------------------------------------------
    tm = min(_MAX_TM, _round_up(M, 16))          # 16: bf16 sublane packing
    Mp = _round_up(M, tm)

    # Lane-dense output: pad N up to a multiple of 128 so output stores are
    # unmasked full-lane vst (3/6/12/16/32 channel heads included).
    tn = min(_MAX_TN, _round_up(N, 128))
    Np = _round_up(N, tn)

    if K <= _MAX_SINGLE_K:           # one full-K block: no K tiling
        tk, Kp = K, K
    else:
        tk = _TK
        Kp = _round_up(K, tk)

    nm, nn_, nk = Mp // tm, Np // tn, Kp // tk

    # Megacore (v7x has 2 TCs): if the parallel grid collapsed to one step and
    # there is enough work, split M so both cores get a grid step.
    if nm == 1 and nn_ == 1 and M >= 128:
        tm = _round_up((tm + 1) // 2, 16)
        Mp = 2 * tm
        nm = 2

    xp = x if x.dtype == _COMPUTE_DTYPE else x.astype(_COMPUTE_DTYPE)
    if (Mp, Kp) != (M, K):
        xp = jnp.pad(xp, ((0, Mp - M), (0, Kp - K)))
    wp = w if w.dtype == _COMPUTE_DTYPE else w.astype(_COMPUTE_DTYPE)
    if (Kp, Np) != (K, N):
        wp = jnp.pad(wp, ((0, Kp - K), (0, Np - N)))
    bp = b.reshape(1, N).astype(jnp.float32)
    if Np != N:
        bp = jnp.pad(bp, ((0, 0), (0, Np - N)))

    # nk>1 accumulates into the output block -> needs f32 output internally.
    out_dtype_internal = out_dtype if nk == 1 else jnp.float32
    out_itemsize = jnp.dtype(out_dtype_internal).itemsize
    bytes_accessed = (M * K + K * N) * 2 + N * 4 + Mp * Np * out_itemsize

    rp_arr = None
    if residual is not None:
        rp_arr = residual.astype(jnp.float32)
        if (Mp, Np) != (M, N):
            rp_arr = jnp.pad(rp_arr, ((0, Mp - M), (0, Np - N)))
        bytes_accessed += M * N * 4

    if nk == 1:
        grid = (nm, nn_)
        dims = ("parallel", "parallel")
        x_spec = pl.BlockSpec((tm, tk), lambda m, n: (m, 0))
        w_spec = pl.BlockSpec((tk, tn), lambda m, n: (0, n))
        b_spec = pl.BlockSpec((1, tn), lambda m, n: (0, n))
        o_spec = pl.BlockSpec((tm, tn), lambda m, n: (m, n))
        r_spec = pl.BlockSpec((tm, tn), lambda m, n: (m, n))
        kern = _mm_k1_kernel if residual is None else _mm_k1_kernel_res
    else:
        grid = (nm, nn_, nk)
        dims = ("parallel", "parallel", "arbitrary")
        x_spec = pl.BlockSpec((tm, tk), lambda m, n, k: (m, k))
        w_spec = pl.BlockSpec((tk, tn), lambda m, n, k: (k, n))
        b_spec = pl.BlockSpec((1, tn), lambda m, n, k: (0, n))
        o_spec = pl.BlockSpec((tm, tn), lambda m, n, k: (m, n))
        r_spec = pl.BlockSpec((tm, tn), lambda m, n, k: (m, n))
        kern = _mm_acc_kernel if residual is None else _mm_acc_kernel_res

    kernel = functools.partial(kern, relu=relu)
    if residual is None:
        in_specs = [x_spec, w_spec, b_spec]
        operands = (xp, wp, bp)
    else:
        in_specs = [x_spec, w_spec, b_spec, r_spec]
        operands = (xp, wp, bp, rp_arr)

    out = pl.pallas_call(
        kernel,
        out_shape=jax.ShapeDtypeStruct((Mp, Np), out_dtype_internal),
        grid_spec=pltpu.PrefetchScalarGridSpec(
            num_scalar_prefetch=0,
            grid=grid,
            in_specs=in_specs,
            out_specs=o_spec,
            scratch_shapes=[]),
        compiler_params=pltpu.CompilerParams(
            dimension_semantics=dims,
            vmem_limit_bytes=_vmem_limit_bytes()),
        cost_estimate=pl.CostEstimate(flops=2 * M * K * N,
                                      transcendentals=0,
                                      bytes_accessed=int(bytes_accessed)),
    )(*operands)

    if (Mp, Np) != (M, N):
        out = out[:M, :N]
    if out.dtype != out_dtype:
        out = out.astype(out_dtype)
    return out


# ----------------------------------------------------------------------------
# Plain-JAX glue: conv wrapper (1x1 = pure matmul, k>1 = bf16 im2col), bilinear
# ----------------------------------------------------------------------------
def conv2d(x, w, b, stride=1, relu=True, residual=None, out_dtype=jnp.float32):
    """x NHWC, w (KH,KW,Cin,Cout), padding=(K-1)//2 like conv_gn."""
    KH, KW, Cin, Cout = w.shape
    pad = (KH - 1) // 2
    B, H, W, _ = x.shape
    Ho = (H + 2 * pad - KH) // stride + 1
    Wo = (W + 2 * pad - KW) // stride + 1

    if KH == 1 and KW == 1:
        # 1x1 conv is a plain matmul: zero im2col overhead.  K stays unpadded
        # here (no extra XLA pad pass); the operand block equals the full dim.
        xs = x if stride == 1 else x[:, ::stride, ::stride, :]
        X = xs.reshape(B * Ho * Wo, Cin)
        Wm = w.reshape(Cin, Cout)
    else:
        # TODO(synk): fold the KH*KW taps into the Pallas kernel (halo DMA or a
        # tap grid axis) to remove the im2col HBM blow-up entirely.
        xh = x if x.dtype == _COMPUTE_DTYPE else x.astype(_COMPUTE_DTYPE)
        xp = jnp.pad(xh, ((0, 0), (pad, pad), (pad, pad), (0, 0)))
        cols = []
        for kh in range(KH):
            for kw in range(KW):
                sl = xp[:, kh: kh + stride * (Ho - 1) + 1: stride,
                        kw: kw + stride * (Wo - 1) + 1: stride, :]
                cols.append(sl)
        K = KH * KW * Cin
        Kp = _round_up(K, 128)       # pad contraction dim inside the concat
        if Kp != K:
            cols.append(jnp.zeros((B, Ho, Wo, Kp - K), _COMPUTE_DTYPE))
        X = jnp.concatenate(cols, axis=-1).reshape(B * Ho * Wo, Kp)
        Wm = w.reshape(K, Cout)
        if Kp != K:
            Wm = jnp.pad(Wm, ((0, Kp - K), (0, 0)))

    R = None if residual is None else residual.reshape(B * Ho * Wo, Cout)
    Y = fused_matmul(X, Wm, b, residual=R, relu=relu, out_dtype=out_dtype)
    return Y.reshape(B, Ho, Wo, Cout)


def bilinear_resize_align_corners(x, Ho, Wo):
    """NHWC bilinear resize == F.interpolate(mode='bilinear', align_corners=True)."""
    B, Hi, Wi, C = x.shape
    if (Hi, Wi) == (Ho, Wo):
        return x

    def axis_coords(out, inn):
        if out == 1 or inn == 1:
            z = jnp.zeros((out,), jnp.int32)
            return z, z, jnp.zeros((out,), jnp.float32)
        c = jnp.arange(out, dtype=jnp.float32) * ((inn - 1) / (out - 1))
        i0 = jnp.clip(jnp.floor(c).astype(jnp.int32), 0, inn - 1)
        i1 = jnp.clip(i0 + 1, 0, inn - 1)
        return i0, i1, c - i0.astype(jnp.float32)

    y0, y1, wy = axis_coords(Ho, Hi)
    x0, x1, wx = axis_coords(Wo, Wi)
    rows = (x[:, y0] * (1.0 - wy)[None, :, None, None]
            + x[:, y1] * wy[None, :, None, None])            # (B,Ho,Wi,C)
    out = (rows[:, :, x0] * (1.0 - wx)[None, None, :, None]
           + rows[:, :, x1] * wx[None, None, :, None])       # (B,Ho,Wo,C)
    return out


# ----------------------------------------------------------------------------
# Parameters (deterministic xavier_uniform, zero bias — as in init_weights)
# ----------------------------------------------------------------------------
class _KeyGen:
    def __init__(self, key):
        self.key = key

    def __call__(self):
        self.key, sub = jax.random.split(self.key)
        return sub


def _xavier(key, kh, kw, cin, cout):
    fan_in = cin * kh * kw
    fan_out = cout * kh * kw
    a = math.sqrt(6.0 / (fan_in + fan_out))
    return jax.random.uniform(key, (kh, kw, cin, cout), jnp.float32, -a, a)


def _conv_params(kg, k, cin, cout):
    return {"w": _xavier(kg(), k, k, cin, cout),
            "b": jnp.zeros((cout,), jnp.float32)}


def init_params(key, in_channels=6):
    kg = _KeyGen(key)
    ch = [16, 32, 64, 128, 256, 256, 256]
    p = {
        "conv1": _conv_params(kg, 7, in_channels, ch[0]),
        "conv2": _conv_params(kg, 5, ch[0], ch[1]),
        "conv3": _conv_params(kg, 3, ch[1], ch[2]),
        "conv4": _conv_params(kg, 3, ch[2], ch[3]),
        "conv5": _conv_params(kg, 3, ch[3], ch[4]),
        "conv6": _conv_params(kg, 3, ch[4], ch[5]),
        "conv7": _conv_params(kg, 3, ch[5], ch[6]),
        "pose_pred": _conv_params(kg, 1, ch[6], 6),
        "conv8": _conv_params(kg, 1, 3, 3),
    }

    def refiner_params(skip_ch, trans_ch=3):
        return {
            "conv1": _conv_params(kg, 3, trans_ch + skip_ch, skip_ch),
            "conv21": _conv_params(kg, 3, trans_ch + skip_ch, skip_ch),
            "conv22": _conv_params(kg, 3, skip_ch, skip_ch),
            "conv3": _conv_params(kg, 1, skip_ch * 2, trans_ch),
        }

    skip_channels = [ch[6], ch[5], ch[4], ch[3], ch[2], ch[1], ch[0], in_channels]
    p["refiners"] = [refiner_params(s) for s in skip_channels]
    return p


# ----------------------------------------------------------------------------
# Forward pass
# ----------------------------------------------------------------------------
def _refine(trans, skip, rp):
    up = bilinear_resize_align_corners(trans, skip.shape[1], skip.shape[2])
    inp = jnp.concatenate([up.astype(_COMPUTE_DTYPE),
                           skip.astype(_COMPUTE_DTYPE)], axis=-1)
    # conv1 and conv21 consume the identical input and have identical shapes:
    # fuse them into one matmul (weights concatenated along Cout) -> halves
    # pallas_call count and input DMA for the decoder stages that hit Pallas.
    sc = rp["conv1"]["w"].shape[-1]
    w12 = jnp.concatenate([rp["conv1"]["w"], rp["conv21"]["w"]], axis=-1)
    b12 = jnp.concatenate([rp["conv1"]["b"], rp["conv21"]["b"]], axis=0)
    out12 = conv2d(inp, w12, b12, stride=1, relu=True, out_dtype=_COMPUTE_DTYPE)
    out1, out2 = out12[..., :sc], out12[..., sc:]
    out2 = conv2d(out2, rp["conv22"]["w"], rp["conv22"]["b"], stride=1,
                  relu=True, out_dtype=_COMPUTE_DTYPE)
    cat = jnp.concatenate([out1, out2], axis=-1)
    # conv3 is a conv_gn (conv -> ReLU per the documented assumption); the
    # residual 'up' is added after it, matching `up + self.conv3(out)`.
    return conv2d(cat, rp["conv3"]["w"], rp["conv3"]["b"], stride=1, relu=True,
                  residual=up, out_dtype=jnp.float32)


@jax.jit
def google_motion_net_forward(params, pose_net_input_nchw):
    # The input is only ever consumed as a bf16 matmul operand (conv1 input and
    # refiner0 skip), so cast once up-front and halve all downstream im2col I/O.
    x = jnp.transpose(pose_net_input_nchw, (0, 2, 3, 1)).astype(_COMPUTE_DTYPE)
    B = x.shape[0]

    def cgn(inp, p, stride=2, relu=True, out_dtype=jnp.float32):
        return conv2d(inp, p["w"], p["b"], stride=stride, relu=relu,
                      out_dtype=out_dtype)

    # c1/c2 are only consumed as bf16 matmul operands (next conv + skip) ->
    # emit them bf16 straight from the kernel.  Deep layers stay f32 (jnp
    # fallback path, pooled-mean precision).
    c1 = cgn(x, params["conv1"], out_dtype=_COMPUTE_DTYPE)
    c2 = cgn(c1, params["conv2"], out_dtype=_COMPUTE_DTYPE)
    c3 = cgn(c2, params["conv3"])
    c4 = cgn(c3, params["conv4"])
    c5 = cgn(c4, params["conv5"])
    c6 = cgn(c5, params["conv6"])
    c7 = cgn(c6, params["conv7"])

    pooled = jnp.mean(c7, axis=(1, 2))                                # (B,256)

    # pose_pred / conv8 act on (B,1,1,C) tensors: M=B rows << one vreg, so do
    # them in plain jnp instead of paying pallas_call launch + padding cost.
    wpp = params["pose_pred"]["w"].reshape(-1, 6)
    pose = pooled @ wpp + params["pose_pred"]["b"]                    # (B,6), no act
    trans = pose[:, :3]                                               # (B,3)

    w8 = params["conv8"]["w"].reshape(3, 3)
    rm = jnp.maximum(trans @ w8 + params["conv8"]["b"], 0.0)          # conv_gn->ReLU
    rm = rm.reshape(B, 1, 1, 3)

    skips = [c7, c6, c5, c4, c3, c2, c1, x]
    for skip, rp in zip(skips, params["refiners"]):
        rm = _refine(rm, skip, rp)

    pose_vec = pose * 0.01                                            # (B,6)

    # Motion scaling + magnitude mask (mask_motion branch). The mean is taken
    # over the WHOLE tensor exactly like torch's sq_residual_motion.mean().
    # (Tiny elementwise op -> plain jnp; a Pallas kernel here would be
    # launch-overhead bound.)
    rm = rm * 0.01
    sq = jnp.sqrt(jnp.sum(rm * rm, axis=-1, keepdims=True))           # (B,H,W,1)
    rm = rm * (sq > jnp.mean(sq)).astype(rm.dtype)
    motion_pred = jnp.transpose(rm, (0, 3, 1, 2)) * 1.0               # motion_weight
    return pose_vec, motion_pred


# ----------------------------------------------------------------------------
if __name__ == "__main__":
    key = jax.random.PRNGKey(0)
    k_param, k_data = jax.random.split(key)

    in_channels = 6  # USE_DEPTH=False -> 3*2
    params = init_params(k_param, in_channels=in_channels)

    x = jax.random.normal(k_data, (2, in_channels, 16, 16), jnp.float32)  # NCHW

    pose_pred, motion_pred = google_motion_net_forward(params, x)
    jax.block_until_ready((pose_pred, motion_pred))

    assert pose_pred.shape == (2, 6)
    assert motion_pred.shape == (2, 3, 16, 16)
    print("KERNEL_OK")
</pallas_src>

<mosaic_0001>
module attributes {stable_mosaic.version = 11 : i64} {
  func.func @_mm_k1_kernel(%arg0: i32, %arg1: i32, %arg2: memref<64x384xbf16, #tpu.memory_space<vmem>>, %arg3: memref<384x128xbf16, #tpu.memory_space<vmem>>, %arg4: memref<1x128xf32, #tpu.memory_space<vmem>>, %arg5: memref<64x128xbf16, #tpu.memory_space<vmem>>) attributes {dimension_semantics = [#tpu.dimension_semantics<parallel>, #tpu.dimension_semantics<parallel>], iteration_bounds = array<i64: 2, 1>, scalar_prefetch = 0 : i64, scratch_operands = 0 : i64, tpu.core_type = #tpu.core_type<tc>, window_params = [{transform_indices = @transform_0, window_bounds = array<i64: 64, 384>}, {transform_indices = @transform_1, window_bounds = array<i64: 384, 128>}, {transform_indices = @transform_2, window_bounds = array<i64: 1, 128>}, {transform_indices = @transform_3, window_bounds = array<i64: 64, 128>}]} {
    %c0 = arith.constant 0 : index
    %c0_0 = arith.constant 0 : index
    %0 = vector.load %arg2[%c0, %c0_0] : memref<64x384xbf16, #tpu.memory_space<vmem>>, vector<64x384xbf16>
    %c0_1 = arith.constant 0 : index
    %c0_2 = arith.constant 0 : index
    %1 = vector.load %arg3[%c0_1, %c0_2] : memref<384x128xbf16, #tpu.memory_space<vmem>>, vector<384x128xbf16>
    %cst = arith.constant dense<0.000000e+00> : vector<64x128xf32>
    %2 = tpu.matmul %0, %1, %cst {dimension_numbers = #tpu.dot_dimension_numbers<[1], [0], [0], [1], [0, 0, 1, 1], [], []>} : vector<64x384xbf16>, vector<384x128xbf16>, vector<64x128xf32> -> vector<64x128xf32>
    %c0_3 = arith.constant 0 : index
    %c0_4 = arith.constant 0 : index
    %3 = vector.load %arg4[%c0_3, %c0_4] : memref<1x128xf32, #tpu.memory_space<vmem>>, vector<1x128xf32>
    %4 = vector.broadcast %3 : vector<1x128xf32> to vector<64x128xf32>
    %5 = arith.addf %2, %4 : vector<64x128xf32>
    %cst_5 = arith.constant 0.000000e+00 : f32
    %6 = vector.broadcast %cst_5 : f32 to vector<64x128xf32>
    %7 = arith.maximumf %5, %6 : vector<64x128xf32>
    %8 = arith.truncf %7 : vector<64x128xf32> to vector<64x128xbf16>
    %c0_6 = arith.constant 0 : index
    %c0_7 = arith.constant 0 : index
    %9 = vector.load %arg5[%c0_6, %c0_7] : memref<64x128xbf16, #tpu.memory_space<vmem>>, vector<64x128xbf16>
    tpu.vector_store %arg5[%c0_6, %c0_7], %8 {strides = array<i32>} : memref<64x128xbf16, #tpu.memory_space<vmem>>, vector<64x128xbf16>,
    return
  }
  func.func @transform_0(%arg0: i32, %arg1: i32) -> (i32, i32) {
    %c0_i32 = arith.constant 0 : i32
    %c0_i32_0 = arith.constant 0 : i32
    return %arg0, %c0_i32 : i32, i32
  }
  func.func @transform_1(%arg0: i32, %arg1: i32) -> (i32, i32) {
    %c0_i32 = arith.constant 0 : i32
    %c0_i32_0 = arith.constant 0 : i32
    return %c0_i32, %arg1 : i32, i32
  }
  func.func @transform_2(%arg0: i32, %arg1: i32) -> (i32, i32) {
    %c0_i32 = arith.constant 0 : i32
    %c0_i32_0 = arith.constant 0 : i32
    return %c0_i32, %arg1 : i32, i32
  }
  func.func @transform_3(%arg0: i32, %arg1: i32) -> (i32, i32) {
    %c0_i32 = arith.constant 0 : i32
    return %arg0, %arg1 : i32, i32
  }
}

module attributes {stable_mosaic.version = 11 : i64} {
  func.func @_mm_k1_kernel(%arg0: i32, %arg1: i32, %arg2: memref<64x256xbf16, #tpu.memory_space<vmem>>, %arg3: memref<256x128xbf16, #tpu.memory_space<vmem>>, %arg4: memref<1x128xf32, #tpu.memory_space<vmem>>, %arg5: memref<64x128xbf16, #tpu.memory_space<vmem>>) attributes {dimension_semantics = [#tpu.dimension_semantics<parallel>, #tpu.dimension_semantics<parallel>], iteration_bounds = array<i64: 2, 1>, scalar_prefetch = 0 : i64, scratch_operands = 0 : i64, tpu.core_type = #tpu.core_type<tc>, window_params = [{transform_indices = @transform_0, window_bounds = array<i64: 64, 256>}, {transform_indices = @transform_1, window_bounds = array<i64: 256, 128>}, {transform_indices = @transform_2, window_bounds = array<i64: 1, 128>}, {transform_indices = @transform_3, window_bounds = array<i64: 64, 128>}]} {
    %c0 = arith.constant 0 : index
    %c0_0 = arith.constant 0 : index
    %0 = vector.load %arg2[%c0, %c0_0] : memref<64x256xbf16, #tpu.memory_space<vmem>>, vector<64x256xbf16>
    %c0_1 = arith.constant 0 : index
    %c0_2 = arith.constant 0 : index
    %1 = vector.load %arg3[%c0_1, %c0_2] : memref<256x128xbf16, #tpu.memory_space<vmem>>, vector<256x128xbf16>
    %cst = arith.constant dense<0.000000e+00> : vector<64x128xf32>
    %2 = tpu.matmul %0, %1, %cst {dimension_numbers = #tpu.dot_dimension_numbers<[1], [0], [0], [1], [0, 0, 1, 1], [], []>} : vector<64x256xbf16>, vector<256x128xbf16>, vector<64x128xf32> -> vector<64x128xf32>
    %c0_3 = arith.constant 0 : index
    %c0_4 = arith.constant 0 : index
    %3 = vector.load %arg4[%c0_3, %c0_4] : memref<1x128xf32, #tpu.memory_space<vmem>>, vector<1x128xf32>
    %4 = vector.broadcast %3 : vector<1x128xf32> to vector<64x128xf32>
    %5 = arith.addf %2, %4 : vector<64x128xf32>
    %cst_5 = arith.constant 0.000000e+00 : f32
    %6 = vector.broadcast %cst_5 : f32 to vector<64x128xf32>
    %7 = arith.maximumf %5, %6 : vector<64x128xf32>
    %8 = arith.truncf %7 : vector<64x128xf32> to vector<64x128xbf16>
    %c0_6 = arith.constant 0 : index
    %c0_7 = arith.constant 0 : index
    %9 = vector.load %arg5[%c0_6, %c0_7] : memref<64x128xbf16, #tpu.memory_space<vmem>>, vector<64x128xbf16>
    tpu.vector_store %arg5[%c0_6, %c0_7], %8 {strides = array<i32>} : memref<64x128xbf16, #tpu.memory_space<vmem>>, vector<64x128xbf16>,
    return
  }
  func.func @transform_0(%arg0: i32, %arg1: i32) -> (i32, i32) {
    %c0_i32 = arith.constant 0 : i32
    %c0_i32_0 = arith.constant 0 : i32
    return %arg0, %c0_i32 : i32, i32
  }
  func.func @transform_1(%arg0: i32, %arg1: i32) -> (i32, i32) {
    %c0_i32 = arith.constant 0 : i32
    %c0_i32_0 = arith.constant 0 : i32
    return %c0_i32, %arg1 : i32, i32
  }
  func.func @transform_2(%arg0: i32, %arg1: i32) -> (i32, i32) {
    %c0_i32 = arith.constant 0 : i32
    %c0_i32_0 = arith.constant 0 : i32
    return %c0_i32, %arg1 : i32, i32
  }
  func.func @transform_3(%arg0: i32, %arg1: i32) -> (i32, i32) {
    %c0_i32 = arith.constant 0 : i32
    return %arg0, %arg1 : i32, i32
  }
}

module attributes {stable_mosaic.version = 11 : i64} {
  func.func @_mm_k1_kernel(%arg0: i32, %arg1: i32, %arg2: memref<64x256xbf16, #tpu.memory_space<vmem>>, %arg3: memref<256x128xbf16, #tpu.memory_space<vmem>>, %arg4: memref<1x128xf32, #tpu.memory_space<vmem>>, %arg5: memref<64x128xbf16, #tpu.memory_space<vmem>>) attributes {dimension_semantics = [#tpu.dimension_semantics<parallel>, #tpu.dimension_semantics<parallel>], iteration_bounds = array<i64: 2, 1>, scalar_prefetch = 0 : i64, scratch_operands = 0 : i64, tpu.core_type = #tpu.core_type<tc>, window_params = [{transform_indices = @transform_0, window_bounds = array<i64: 64, 256>}, {transform_indices = @transform_1, window_bounds = array<i64: 256, 128>}, {transform_indices = @transform_2, window_bounds = array<i64: 1, 128>}, {transform_indices = @transform_3, window_bounds = array<i64: 64, 128>}]} {
    %c0 = arith.constant 0 : index
    %c0_0 = arith.constant 0 : index
    %0 = vector.load %arg2[%c0, %c0_0] : memref<64x256xbf16, #tpu.memory_space<vmem>>, vector<64x256xbf16>
    %c0_1 = arith.constant 0 : index
    %c0_2 = arith.constant 0 : index
    %1 = vector.load %arg3[%c0_1, %c0_2] : memref<256x128xbf16, #tpu.memory_space<vmem>>, vector<256x128xbf16>
    %cst = arith.constant dense<0.000000e+00> : vector<64x128xf32>
    %2 = tpu.matmul %0, %1, %cst {dimension_numbers = #tpu.dot_dimension_numbers<[1], [0], [0], [1], [0, 0, 1, 1], [], []>} : vector<64x256xbf16>, vector<256x128xbf16>, vector<64x128xf32> -> vector<64x128xf32>
    %c0_3 = arith.constant 0 : index
    %c0_4 = arith.constant 0 : index
    %3 = vector.load %arg4[%c0_3, %c0_4] : memref<1x128xf32, #tpu.memory_space<vmem>>, vector<1x128xf32>
    %4 = vector.broadcast %3 : vector<1x128xf32> to vector<64x128xf32>
    %5 = arith.addf %2, %4 : vector<64x128xf32>
    %cst_5 = arith.constant 0.000000e+00 : f32
    %6 = vector.broadcast %cst_5 : f32 to vector<64x128xf32>
    %7 = arith.maximumf %5, %6 : vector<64x128xf32>
    %8 = arith.truncf %7 : vector<64x128xf32> to vector<64x128xbf16>
    %c0_6 = arith.constant 0 : index
    %c0_7 = arith.constant 0 : index
    %9 = vector.load %arg5[%c0_6, %c0_7] : memref<64x128xbf16, #tpu.memory_space<vmem>>, vector<64x128xbf16>
    tpu.vector_store %arg5[%c0_6, %c0_7], %8 {strides = array<i32>} : memref<64x128xbf16, #tpu.memory_space<vmem>>, vector<64x128xbf16>,
    return
  }
  func.func @transform_0(%arg0: i32, %arg1: i32) -> (i32, i32) {
    %c0_i32 = arith.constant 0 : i32
    %c0_i32_0 = arith.constant 0 : i32
    return %arg0, %c0_i32 : i32, i32
  }
  func.func @transform_1(%arg0: i32, %arg1: i32) -> (i32, i32) {
    %c0_i32 = arith.constant 0 : i32
    %c0_i32_0 = arith.constant 0 : i32
    return %c0_i32, %arg1 : i32, i32
  }
  func.func @transform_2(%arg0: i32, %arg1: i32) -> (i32, i32) {
    %c0_i32 = arith.constant 0 : i32
    %c0_i32_0 = arith.constant 0 : i32
    return %c0_i32, %arg1 : i32, i32
  }
  func.func @transform_3(%arg0: i32, %arg1: i32) -> (i32, i32) {
    %c0_i32 = arith.constant 0 : i32
    return %arg0, %arg1 : i32, i32
  }
}

module attributes {stable_mosaic.version = 11 : i64} {
  func.func @_mm_k1_kernel_res(%arg0: i32, %arg1: i32, %arg2: memref<64x32xbf16, #tpu.memory_space<vmem>>, %arg3: memref<32x128xbf16, #tpu.memory_space<vmem>>, %arg4: memref<1x128xf32, #tpu.memory_space<vmem>>, %arg5: memref<64x128xf32, #tpu.memory_space<vmem>>, %arg6: memref<64x128xf32, #tpu.memory_space<vmem>>) attributes {dimension_semantics = [#tpu.dimension_semantics<parallel>, #tpu.dimension_semantics<parallel>], iteration_bounds = array<i64: 2, 1>, scalar_prefetch = 0 : i64, scratch_operands = 0 : i64, tpu.core_type = #tpu.core_type<tc>, window_params = [{transform_indices = @transform_0, window_bounds = array<i64: 64, 32>}, {transform_indices = @transform_1, window_bounds = array<i64: 32, 128>}, {transform_indices = @transform_2, window_bounds = array<i64: 1, 128>}, {transform_indices = @transform_3, window_bounds = array<i64: 64, 128>}, {transform_indices = @transform_4, window_bounds = array<i64: 64, 128>}]} {
    %c0 = arith.constant 0 : index
    %c0_0 = arith.constant 0 : index
    %0 = vector.load %arg2[%c0, %c0_0] : memref<64x32xbf16, #tpu.memory_space<vmem>>, vector<64x32xbf16>
    %c0_1 = arith.constant 0 : index
    %c0_2 = arith.constant 0 : index
    %1 = vector.load %arg3[%c0_1, %c0_2] : memref<32x128xbf16, #tpu.memory_space<vmem>>, vector<32x128xbf16>
    %cst = arith.constant dense<0.000000e+00> : vector<64x128xf32>
    %2 = tpu.matmul %0, %1, %cst {dimension_numbers = #tpu.dot_dimension_numbers<[1], [0], [0], [1], [0, 0, 1, 1], [], []>} : vector<64x32xbf16>, vector<32x128xbf16>, vector<64x128xf32> -> vector<64x128xf32>
    %c0_3 = arith.constant 0 : index
    %c0_4 = arith.constant 0 : index
    %3 = vector.load %arg4[%c0_3, %c0_4] : memref<1x128xf32, #tpu.memory_space<vmem>>, vector<1x128xf32>
    %4 = vector.broadcast %3 : vector<1x128xf32> to vector<64x128xf32>
    %5 = arith.addf %2, %4 : vector<64x128xf32>
    %cst_5 = arith.constant 0.000000e+00 : f32
    %6 = vector.broadcast %cst_5 : f32 to vector<64x128xf32>
    %7 = arith.maximumf %5, %6 : vector<64x128xf32>
    %c0_6 = arith.constant 0 : index
    %c0_7 = arith.constant 0 : index
    %8 = vector.load %arg5[%c0_6, %c0_7] : memref<64x128xf32, #tpu.memory_space<vmem>>, vector<64x128xf32>
    %9 = arith.addf %7, %8 : vector<64x128xf32>
    %c0_8 = arith.constant 0 : index
    %c0_9 = arith.constant 0 : index
    %10 = vector.load %arg6[%c0_8, %c0_9] : memref<64x128xf32, #tpu.memory_space<vmem>>, vector<64x128xf32>
    tpu.vector_store %arg6[%c0_8, %c0_9], %9 {strides = array<i32>} : memref<64x128xf32, #tpu.memory_space<vmem>>, vector<64x128xf32>,
    return
  }
  func.func @transform_0(%arg0: i32, %arg1: i32) -> (i32, i32) {
    %c0_i32 = arith.constant 0 : i32
    %c0_i32_0 = arith.constant 0 : i32
    return %arg0, %c0_i32 : i32, i32
  }
  func.func @transform_1(%arg0: i32, %arg1: i32) -> (i32, i32) {
    %c0_i32 = arith.constant 0 : i32
    %c0_i32_0 = arith.constant 0 : i32
    return %c0_i32, %arg1 : i32, i32
  }
  func.func @transform_2(%arg0: i32, %arg1: i32) -> (i32, i32) {
    %c0_i32 = arith.constant 0 : i32
    %c0_i32_0 = arith.constant 0 : i32
    return %c0_i32, %arg1 : i32, i32
  }
  func.func @transform_3(%arg0: i32, %arg1: i32) -> (i32, i32) {
    %c0_i32 = arith.constant 0 : i32
    return %arg0, %arg1 : i32, i32
  }
  func.func @transform_4(%arg0: i32, %arg1: i32) -> (i32, i32) {
    %c0_i32 = arith.constant 0 : i32
    return %arg0, %arg1 : i32, i32
  }
}

module attributes {stable_mosaic.version = 11 : i64} {
  func.func @_mm_k1_kernel(%arg0: i32, %arg1: i32, %arg2: memref<256x128xbf16, #tpu.memory_space<vmem>>, %arg3: memref<128x128xbf16, #tpu.memory_space<vmem>>, %arg4: memref<1x128xf32, #tpu.memory_space<vmem>>, %arg5: memref<256x128xbf16, #tpu.memory_space<vmem>>) attributes {dimension_semantics = [#tpu.dimension_semantics<parallel>, #tpu.dimension_semantics<parallel>], iteration_bounds = array<i64: 2, 1>, scalar_prefetch = 0 : i64, scratch_operands = 0 : i64, tpu.core_type = #tpu.core_type<tc>, window_params = [{transform_indices = @transform_0, window_bounds = array<i64: 256, 128>}, {transform_indices = @transform_1, window_bounds = array<i64: 128, 128>}, {transform_indices = @transform_2, window_bounds = array<i64: 1, 128>}, {transform_indices = @transform_3, window_bounds = array<i64: 256, 128>}]} {
    %c0 = arith.constant 0 : index
    %c0_0 = arith.constant 0 : index
    %0 = vector.load %arg2[%c0, %c0_0] : memref<256x128xbf16, #tpu.memory_space<vmem>>, vector<256x128xbf16>
    %c0_1 = arith.constant 0 : index
    %c0_2 = arith.constant 0 : index
    %1 = vector.load %arg3[%c0_1, %c0_2] : memref<128x128xbf16, #tpu.memory_space<vmem>>, vector<128x128xbf16>
    %cst = arith.constant dense<0.000000e+00> : vector<256x128xf32>
    %2 = tpu.matmul %0, %1, %cst {dimension_numbers = #tpu.dot_dimension_numbers<[1], [0], [0], [1], [0, 0, 1, 1], [], []>} : vector<256x128xbf16>, vector<128x128xbf16>, vector<256x128xf32> -> vector<256x128xf32>
    %c0_3 = arith.constant 0 : index
    %c0_4 = arith.constant 0 : index
    %3 = vector.load %arg4[%c0_3, %c0_4] : memref<1x128xf32, #tpu.memory_space<vmem>>, vector<1x128xf32>
    %4 = vector.broadcast %3 : vector<1x128xf32> to vector<256x128xf32>
    %5 = arith.addf %2, %4 : vector<256x128xf32>
    %cst_5 = arith.constant 0.000000e+00 : f32
    %6 = vector.broadcast %cst_5 : f32 to vector<256x128xf32>
    %7 = arith.maximumf %5, %6 : vector<256x128xf32>
    %8 = arith.truncf %7 : vector<256x128xf32> to vector<256x128xbf16>
    %c0_6 = arith.constant 0 : index
    %c0_7 = arith.constant 0 : index
    %9 = vector.load %arg5[%c0_6, %c0_7] : memref<256x128xbf16, #tpu.memory_space<vmem>>, vector<256x128xbf16>
    tpu.vector_store %arg5[%c0_6, %c0_7], %8 {strides = array<i32>} : memref<256x128xbf16, #tpu.memory_space<vmem>>, vector<256x128xbf16>,
    return
  }
  func.func @transform_0(%arg0: i32, %arg1: i32) -> (i32, i32) {
    %c0_i32 = arith.constant 0 : i32
    %c0_i32_0 = arith.constant 0 : i32
    return %arg0, %c0_i32 : i32, i32
  }
  func.func @transform_1(%arg0: i32, %arg1: i32) -> (i32, i32) {
    %c0_i32 = arith.constant 0 : i32
    %c0_i32_0 = arith.constant 0 : i32
    return %c0_i32, %arg1 : i32, i32
  }
  func.func @transform_2(%arg0: i32, %arg1: i32) -> (i32, i32) {
    %c0_i32 = arith.constant 0 : i32
    %c0_i32_0 = arith.constant 0 : i32
    return %c0_i32, %arg1 : i32, i32
  }
  func.func @transform_3(%arg0: i32, %arg1: i32) -> (i32, i32) {
    %c0_i32 = arith.constant 0 : i32
    return %arg0, %arg1 : i32, i32
  }
}

module attributes {stable_mosaic.version = 11 : i64} {
  func.func @_mm_k1_kernel(%arg0: i32, %arg1: i32, %arg2: memref<256x128xbf16, #tpu.memory_space<vmem>>, %arg3: memref<128x128xbf16, #tpu.memory_space<vmem>>, %arg4: memref<1x128xf32, #tpu.memory_space<vmem>>, %arg5: memref<256x128xbf16, #tpu.memory_space<vmem>>) attributes {dimension_semantics = [#tpu.dimension_semantics<parallel>, #tpu.dimension_semantics<parallel>], iteration_bounds = array<i64: 2, 1>, scalar_prefetch = 0 : i64, scratch_operands = 0 : i64, tpu.core_type = #tpu.core_type<tc>, window_params = [{transform_indices = @transform_0, window_bounds = array<i64: 256, 128>}, {transform_indices = @transform_1, window_bounds = array<i64: 128, 128>}, {transform_indices = @transform_2, window_bounds = array<i64: 1, 128>}, {transform_indices = @transform_3, window_bounds = array<i64: 256, 128>}]} {
    %c0 = arith.constant 0 : index
    %c0_0 = arith.constant 0 : index
    %0 = vector.load %arg2[%c0, %c0_0] : memref<256x128xbf16, #tpu.memory_space<vmem>>, vector<256x128xbf16>
    %c0_1 = arith.constant 0 : index
    %c0_2 = arith.constant 0 : index
    %1 = vector.load %arg3[%c0_1, %c0_2] : memref<128x128xbf16, #tpu.memory_space<vmem>>, vector<128x128xbf16>
    %cst = arith.constant dense<0.000000e+00> : vector<256x128xf32>
    %2 = tpu.matmul %0, %1, %cst {dimension_numbers = #tpu.dot_dimension_numbers<[1], [0], [0], [1], [0, 0, 1, 1], [], []>} : vector<256x128xbf16>, vector<128x128xbf16>, vector<256x128xf32> -> vector<256x128xf32>
    %c0_3 = arith.constant 0 : index
    %c0_4 = arith.constant 0 : index
    %3 = vector.load %arg4[%c0_3, %c0_4] : memref<1x128xf32, #tpu.memory_space<vmem>>, vector<1x128xf32>
    %4 = vector.broadcast %3 : vector<1x128xf32> to vector<256x128xf32>
    %5 = arith.addf %2, %4 : vector<256x128xf32>
    %cst_5 = arith.constant 0.000000e+00 : f32
    %6 = vector.broadcast %cst_5 : f32 to vector<256x128xf32>
    %7 = arith.maximumf %5, %6 : vector<256x128xf32>
    %8 = arith.truncf %7 : vector<256x128xf32> to vector<256x128xbf16>
    %c0_6 = arith.constant 0 : index
    %c0_7 = arith.constant 0 : index
    %9 = vector.load %arg5[%c0_6, %c0_7] : memref<256x128xbf16, #tpu.memory_space<vmem>>, vector<256x128xbf16>
    tpu.vector_store %arg5[%c0_6, %c0_7], %8 {strides = array<i32>} : memref<256x128xbf16, #tpu.memory_space<vmem>>, vector<256x128xbf16>,
    return
  }
  func.func @transform_0(%arg0: i32, %arg1: i32) -> (i32, i32) {
    %c0_i32 = arith.constant 0 : i32
    %c0_i32_0 = arith.constant 0 : i32
    return %arg0, %c0_i32 : i32, i32
  }
  func.func @transform_1(%arg0: i32, %arg1: i32) -> (i32, i32) {
    %c0_i32 = arith.constant 0 : i32
    %c0_i32_0 = arith.constant 0 : i32
    return %c0_i32, %arg1 : i32, i32
  }
  func.func @transform_2(%arg0: i32, %arg1: i32) -> (i32, i32) {
    %c0_i32 = arith.constant 0 : i32
    %c0_i32_0 = arith.constant 0 : i32
    return %c0_i32, %arg1 : i32, i32
  }
  func.func @transform_3(%arg0: i32, %arg1: i32) -> (i32, i32) {
    %c0_i32 = arith.constant 0 : i32
    return %arg0, %arg1 : i32, i32
  }
}

module attributes {stable_mosaic.version = 11 : i64} {
  func.func @_mm_k1_kernel_res(%arg0: i32, %arg1: i32, %arg2: memref<256x12xbf16, #tpu.memory_space<vmem>>, %arg3: memref<12x128xbf16, #tpu.memory_space<vmem>>, %arg4: memref<1x128xf32, #tpu.memory_space<vmem>>, %arg5: memref<256x128xf32, #tpu.memory_space<vmem>>, %arg6: memref<256x128xf32, #tpu.memory_space<vmem>>) attributes {dimension_semantics = [#tpu.dimension_semantics<parallel>, #tpu.dimension_semantics<parallel>], iteration_bounds = array<i64: 2, 1>, scalar_prefetch = 0 : i64, scratch_operands = 0 : i64, tpu.core_type = #tpu.core_type<tc>, window_params = [{transform_indices = @transform_0, window_bounds = array<i64: 256, 12>}, {transform_indices = @transform_1, window_bounds = array<i64: 12, 128>}, {transform_indices = @transform_2, window_bounds = array<i64: 1, 128>}, {transform_indices = @transform_3, window_bounds = array<i64: 256, 128>}, {transform_indices = @transform_4, window_bounds = array<i64: 256, 128>}]} {
    %c0 = arith.constant 0 : index
    %c0_0 = arith.constant 0 : index
    %0 = vector.load %arg2[%c0, %c0_0] : memref<256x12xbf16, #tpu.memory_space<vmem>>, vector<256x12xbf16>
    %c0_1 = arith.constant 0 : index
    %c0_2 = arith.constant 0 : index
    %1 = vector.load %arg3[%c0_1, %c0_2] : memref<12x128xbf16, #tpu.memory_space<vmem>>, vector<12x128xbf16>
    %cst = arith.constant dense<0.000000e+00> : vector<256x128xf32>
    %2 = tpu.matmul %0, %1, %cst {dimension_numbers = #tpu.dot_dimension_numbers<[1], [0], [0], [1], [0, 0, 1, 1], [], []>} : vector<256x12xbf16>, vector<12x128xbf16>, vector<256x128xf32> -> vector<256x128xf32>
    %c0_3 = arith.constant 0 : index
    %c0_4 = arith.constant 0 : index
    %3 = vector.load %arg4[%c0_3, %c0_4] : memref<1x128xf32, #tpu.memory_space<vmem>>, vector<1x128xf32>
    %4 = vector.broadcast %3 : vector<1x128xf32> to vector<256x128xf32>
    %5 = arith.addf %2, %4 : vector<256x128xf32>
    %cst_5 = arith.constant 0.000000e+00 : f32
    %6 = vector.broadcast %cst_5 : f32 to vector<256x128xf32>
    %7 = arith.maximumf %5, %6 : vector<256x128xf32>
    %c0_6 = arith.constant 0 : index
    %c0_7 = arith.constant 0 : index
    %8 = vector.load %arg5[%c0_6, %c0_7] : memref<256x128xf32, #tpu.memory_space<vmem>>, vector<256x128xf32>
    %9 = arith.addf %7, %8 : vector<256x128xf32>
    %c0_8 = arith.constant 0 : index
    %c0_9 = arith.constant 0 : index
    %10 = vector.load %arg6[%c0_8, %c0_9] : memref<256x128xf32, #tpu.memory_space<vmem>>, vector<256x128xf32>
    tpu.vector_store %arg6[%c0_8, %c0_9], %9 {strides = array<i32>} : memref<256x128xf32, #tpu.memory_space<vmem>>, vector<256x128xf32>,
    return
  }
  func.func @transform_0(%arg0: i32, %arg1: i32) -> (i32, i32) {
    %c0_i32 = arith.constant 0 : i32
    %c0_i32_0 = arith.constant 0 : i32
    return %arg0, %c0_i32 : i32, i32
  }
  func.func @transform_1(%arg0: i32, %arg1: i32) -> (i32, i32) {
    %c0_i32 = arith.constant 0 : i32
    %c0_i32_0 = arith.constant 0 : i32
    return %c0_i32, %arg1 : i32, i32
  }
  func.func @transform_2(%arg0: i32, %arg1: i32) -> (i32, i32) {
    %c0_i32 = arith.constant 0 : i32
    %c0_i32_0 = arith.constant 0 : i32
    return %c0_i32, %arg1 : i32, i32
  }
  func.func @transform_3(%arg0: i32, %arg1: i32) -> (i32, i32) {
    %c0_i32 = arith.constant 0 : i32
    return %arg0, %arg1 : i32, i32
  }
  func.func @transform_4(%arg0: i32, %arg1: i32) -> (i32, i32) {
    %c0_i32 = arith.constant 0 : i32
    return %arg0, %arg1 : i32, i32
  }
}

</mosaic_0001>

<llo_original>
// kernel: google_motion_net_forward.7
$region0: #{google_motion_net_forward.7}
  #allocation0 [shape = 'u32[]', space=smem, size = 0x4, offset = 0x4, fixed_abs, tag = 'smem constant byte address 0x4 - core index']
  #allocation1 [shape = 'u32[144,128]{1,0:T(1,128)}', space=vmem, size = 0x12000, scoped, tag = 'internal scratch']
  %s0 = inlined_call_operand.vmem [shape: bf16[128,384], index: 0, kind: input, shape index: {}]
  %s1 = inlined_call_operand.vmem [shape: bf16[384,128], index: 1, kind: input, shape index: {}]
  %s2 = inlined_call_operand.vmem [shape: f32[1,128], index: 2, kind: input, shape index: {}]
  %s3 = inlined_call_operand.vmem [shape: bf16[128,128], index: 3, kind: output, shape index: {}]
  %s4 = sld [smem:[#allocation0]]
  $region45: #{google_motion_net_forward.7} parent=0
    _
  %s6 = ssub.s32 1, %s4
  %s7 = scalar_select 0, %s6, %s4
  loop: start=0, step=1, limit=4
  $region2: #{google_motion_net_forward.7} parent=0 // loop_pre_header
    _
  $region3: #{google_motion_net_forward.7} parent=0 // loop_header
    %s9 = sphi 0, %s13
    %p10 = scmp.ge.s32.totalorder %s9, 4
    %s16 = sphi 0, %s28
    %s17 = sphi 0, %s24
    %s18 = sphi 0, %s16
    %s19 = sphi 0, %s17
    %s20 = sphi 0, %s18
    %s21 = sphi 0, %s19
    %s31 = sphi 0, %s33
    %s34 = sphi 0, %s31
    %s35 = sphi 0, %s34
    %s51 = sphi 0, %s35
    %s57 = sphi 0, %s59
    %s60 = sphi 0, %s57
    %s61 = sphi 0, %s60
    %s77 = sphi 0, %s61
    %s83 = sphi 0, %s85
    %s86 = sphi 0, %s83
    %s87 = sphi 0, %s86
    %s103 = sphi 0, %s87
    %s111 = sphi 0, %s113
    %s114 = sphi 0, %s111
    %s115 = sphi 0, %s114
    %s131 = sphi 0, %s115
  $region4: #{google_motion_net_forward.7} parent=0 // loop_header_branch
    %12 = sbr.rel (%p10) target = $region8
  $region5: #{google_motion_net_forward.7} parent=0 // loop_body
    %s14 = ssub.s32 %s9, 1
    %s15 = ssub.s32 %s9, 2
    %s22 = sadd.s32 1, %s17
    %p23 = scmp.ge.s32.totalorder %s22, 1
    %s24 = scalar_select %p23, 0, %s22
    %s25 = sadd.s32 1, %s16
    %s26 = scalar_select %p23, %s25, %s16
    %p27 = scmp.ge.s32.totalorder %s26, 2
    %s28 = scalar_select %p27, 0, %s26
    %s29 = ssub.s32 %s16, %s28
    %p30 = scmp.eq.s32.totalorder %s29, 0
    %s32 = sadd.s32 %s31, 1
    %s33 = scalar_select %p30, %s31, %s32
    %p36 = pneg %p30
    %p37 = scmp.eq.s32.totalorder %s9, 1
    %p38 = por %p36, %p37
    %p39 = scmp.ne.s32.totalorder %s31, %s34
    %p40 = scmp.eq.s32.totalorder %s9, 0
    %p41 = por %p39, %p40
    %p42 = scmp.ne.s32.totalorder %s31, %s34
    %p43 = scmp.eq.s32.totalorder %s14, 1
    %p44 = por %p42, %p43
    %p45 = scmp.ne.s32.totalorder %s34, %s35
    %p46 = scmp.eq.s32.totalorder %s14, 0
    %p47 = por %p45, %p46
    %p48 = scmp.ne.s32.totalorder %s34, %s35
    %p49 = scmp.eq.s32.totalorder %s15, 1
    %p50 = por %p48, %p49
    %p52 = scmp.ne.s32.totalorder %s35, %s51
    %p53 = scmp.eq.s32.totalorder %s15, 0
    %p54 = por %p52, %p53
    %s55 = ssub.s32 %s17, %s24
    %p56 = scmp.eq.s32.totalorder %s55, 0
    %s58 = sadd.s32 %s57, 1
    %s59 = scalar_select %p56, %s57, %s58
    %p62 = pneg %p56
    %p63 = scmp.eq.s32.totalorder %s9, 1
    %p64 = por %p62, %p63
    %p65 = scmp.ne.s32.totalorder %s57, %s60
    %p66 = scmp.eq.s32.totalorder %s9, 0
    %p67 = por %p65, %p66
    %p68 = scmp.ne.s32.totalorder %s57, %s60
    %p69 = scmp.eq.s32.totalorder %s14, 1
    %p70 = por %p68, %p69
    %p71 = scmp.ne.s32.totalorder %s60, %s61
    %p72 = scmp.eq.s32.totalorder %s14, 0
    %p73 = por %p71, %p72
    %p74 = scmp.ne.s32.totalorder %s60, %s61
    %p75 = scmp.eq.s32.totalorder %s15, 1
    %p76 = por %p74, %p75
    %p78 = scmp.ne.s32.totalorder %s61, %s77
    %p79 = scmp.eq.s32.totalorder %s15, 0
    %p80 = por %p78, %p79
    %s81 = ssub.s32 %s17, %s24
    %p82 = scmp.eq.s32.totalorder %s81, 0
    %s84 = sadd.s32 %s83, 1
    %s85 = scalar_select %p82, %s83, %s84
    %p88 = pneg %p82
    %p89 = scmp.eq.s32.totalorder %s9, 1
    %p90 = por %p88, %p89
    %p91 = scmp.ne.s32.totalorder %s83, %s86
    %p92 = scmp.eq.s32.totalorder %s9, 0
    %p93 = por %p91, %p92
    %p94 = scmp.ne.s32.totalorder %s83, %s86
    %p95 = scmp.eq.s32.totalorder %s14, 1
    %p96 = por %p94, %p95
    %p97 = scmp.ne.s32.totalorder %s86, %s87
    %p98 = scmp.eq.s32.totalorder %s14, 0
    %p99 = por %p97, %p98
    %p100 = scmp.ne.s32.totalorder %s86, %s87
    %p101 = scmp.eq.s32.totalorder %s15, 1
    %p102 = por %p100, %p101
    %p104 = scmp.ne.s32.totalorder %s87, %s103
    %p105 = scmp.eq.s32.totalorder %s15, 0
    %p106 = por %p104, %p105
    %s107 = ssub.s32 %s16, %s28
    %s108 = ssub.s32 %s17, %s24
    %s109 = sor.u32 %s107, %s108
    %p110 = scmp.eq.s32.totalorder %s109, 0
    %s112 = sadd.s32 %s111, 1
    %s113 = scalar_select %p110, %s111, %s112
    %p116 = pneg %p110
    %p117 = scmp.eq.s32.totalorder %s9, 1
    %p118 = por %p116, %p117
    %p119 = scmp.ne.s32.totalorder %s111, %s114
    %p120 = scmp.eq.s32.totalorder %s9, 0
    %p121 = por %p119, %p120
    %p122 = scmp.ne.s32.totalorder %s111, %s114
    %p123 = scmp.eq.s32.totalorder %s14, 1
    %p124 = por %p122, %p123
    %p125 = scmp.ne.s32.totalorder %s114, %s115
    %p126 = scmp.eq.s32.totalorder %s14, 0
    %p127 = por %p125, %p126
    %p128 = scmp.ne.s32.totalorder %s114, %s115
    %p129 = scmp.eq.s32.totalorder %s15, 1
    %p130 = por %p128, %p129
    %p132 = scmp.ne.s32.totalorder %s115, %s131
    %p133 = scmp.eq.s32.totalorder %s15, 0
    %p134 = por %p132, %p133
    %p135 = scmp.le.s32.totalorder 1, %s9
    %p136 = scmp.lt.s32.totalorder %s9, 3
    %p137 = pnand %p135, %p136
    %p138 = pneg %p137
    // Predicated region
    $region9: #{google_motion_net_forward.7} parent=5 // pred_check
      _
    $region10: #{google_motion_net_forward.7} parent=5 // pred_check_branch
      %140 = sbr.rel (%p137) target = $region12
    $region11: #{google_motion_net_forward.7} parent=5 // pred_region
      %s141 = ssub.s32 %s9, 1
      // Predicated region
      $region13: #{google_motion_net_forward.7} parent=11 // pred_check
        %p142 = pneg %p73
      $region14: #{google_motion_net_forward.7} parent=11 // pred_check_branch
        %144 = sbr.rel (%p142) target = $region16
      $region15: #{google_motion_net_forward.7} parent=11 // pred_region
        %p145 = scmp.lt.s32.totalorder %s19, 0
        %s146 = scalar_select %p145, %s19, 0
        %s147 = smul.addr %s146, 4
        %s148 = scalar_lea.vmem %s1, %s147
      $region16: #{google_motion_net_forward.7} parent=11 // pred_fallthru
        _
      // Predicated region
      $region17: #{google_motion_net_forward.7} parent=11 // pred_check
        %p149 = pneg %p99
      $region18: #{google_motion_net_forward.7} parent=11 // pred_check_branch
        %151 = sbr.rel (%p149) target = $region20
      $region19: #{google_motion_net_forward.7} parent=11 // pred_region
        %p152 = scmp.lt.s32.totalorder %s19, 0
        %s153 = scalar_select %p152, %s19, 0
        %s154 = scalar_lea.vmem %s2, %s153
      $region20: #{google_motion_net_forward.7} parent=11 // pred_fallthru
        _
    $region12: #{google_motion_net_forward.7} parent=5 // pred_fallthru
      _
    %p155 = scmp.lt.s32.totalorder %s9, 2
    // Predicated region
    $region21: #{google_motion_net_forward.7} parent=5 // pred_check
      %p156 = pneg %p155
    $region22: #{google_motion_net_forward.7} parent=5 // pred_check_branch
      %158 = sbr.rel (%p156) target = $region24
    $region23: #{google_motion_net_forward.7} parent=5 // pred_region
      // Predicated region
      $region25: #{google_motion_net_forward.7} parent=23 // pred_check
        %p159 = pneg %p41
      $region26: #{google_motion_net_forward.7} parent=23 // pred_check_branch
        %161 = sbr.rel (%p159) target = $region28
      $region27: #{google_motion_net_forward.7} parent=23 // pred_region
        %s162 = smul.u32 8, %s16
        %p163 = scmp.lt.s32.totalorder %s162, 15
        %s164 = scalar_select %p163, %s162, 15
        %s165 = smul.addr %s164, 3
        %s166 = smul.addr %s165, 4
        %s167 = scalar_lea.vmem %s0, %s166
        %s168 = smul.u32 8, %s16
      $region28: #{google_motion_net_forward.7} parent=23 // pred_fallthru
        _
    $region24: #{google_motion_net_forward.7} parent=5 // pred_fallthru
      _
    %p169 = scmp.le.s32.totalorder 1, %s9
    %p170 = scmp.lt.s32.totalorder %s9, 3
    %p171 = pnand %p169, %p170
    %p172 = pneg %p171
    // Predicated region
    $region29: #{google_motion_net_forward.7} parent=5 // pred_check
      _
    $region30: #{google_motion_net_forward.7} parent=5 // pred_check_branch
      %174 = sbr.rel (%p171) target = $region32
    $region31: #{google_motion_net_forward.7} parent=5 // pred_region
      %s175 = ssub.s32 %s9, 1
      %s176 = smul.u32 8, %s18
      %p177 = scmp.lt.s32.totalorder %s176, 15
      %s178 = scalar_select %p177, %s176, 15
      %s179 = smul.addr %s178, 3
      %s180 = smul.addr %s179, 4
      %s181 = scalar_lea.vmem %s0, %s180
      %p182 = pneg %p47
      %p183 = pneg %p44
      %p184 = scmp.lt.s32.totalorder %s19, 0
      %s185 = scalar_select %p184, %s19, 0
      %s186 = smul.addr %s185, 4
      %s187 = scalar_lea.vmem %s1, %s186
      %p188 = pneg %p73
      %p189 = pneg %p70
      %p190 = scmp.lt.s32.totalorder %s19, 0
      %s191 = scalar_select %p190, %s19, 0
      %s192 = scalar_lea.vmem %s2, %s191
      %p193 = pneg %p99
      %p194 = pneg %p96
      %p195 = pneg %p127
      %p196 = pneg %p124
      %s197 = smul.u32 8, %s18
      %p198 = scmp.lt.s32.totalorder %s197, 15
      %s199 = scalar_select %p198, %s197, 15
      %p200 = scmp.lt.s32.totalorder %s19, 0
      %s201 = scalar_select %p200, %s19, 0
      %s202 = sadd.s32 %s201, %s199
      %s203 = smul.addr %s202, 4
      %s204 = scalar_lea.vmem %s3, %s203
      %s205 = smul.u32 8, %s18
      %p206 = scmp.lt.s32.totalorder %s205, 15
      %s207 = scalar_select %p206, %s205, 15
      %s208 = smul.addr %s207, 3
      %s209 = smul.addr %s208, 4
      %s210 = scalar_lea.vmem %s0, %s209
      %s211 = smul.u32 8, %s18
      %p212 = scmp.lt.s32.totalorder %s19, 0
      %s213 = scalar_select %p212, %s19, 0
      %s214 = smul.addr %s213, 4
      %s215 = scalar_lea.vmem %s1, %s214
      %p216 = scmp.lt.s32.totalorder %s19, 0
      %s217 = scalar_select %p216, %s19, 0
      %s218 = scalar_lea.vmem %s2, %s217
      %s219 = smul.u32 8, %s18
      %p220 = scmp.lt.s32.totalorder %s219, 15
      %s221 = scalar_select %p220, %s219, 15
      %p222 = scmp.lt.s32.totalorder %s19, 0
      %s223 = scalar_select %p222, %s19, 0
      %s224 = sadd.s32 %s223, %s221
      %s225 = smul.addr %s224, 4
      %s226 = scalar_lea.vmem %s3, %s225
      %s227 = smul.u32 8, %s18
      %v229 = vld [vmem:[%s210] sm:$0xff]
      %v230 = vld [vmem:[%s210 + $0x8] sm:$0xf]
      %v231 = vld [vmem:[%s210 + $0xc] sm:$0xff]
      %v232 = vld [vmem:[%s210 + $0x14] sm:$0xf]
      %v233 = vld [vmem:[%s210 + $0x18] sm:$0xff]
      %v234 = vld [vmem:[%s210 + $0x20] sm:$0xf]
      %v235 = vld [vmem:[%s210 + $0x24] sm:$0xff]
      %v236 = vld [vmem:[%s210 + $0x2c] sm:$0xf]
      %v237 = vld [vmem:[%s210 + $0x30] sm:$0xff]
      %v238 = vld [vmem:[%s210 + $0x38] sm:$0xf]
      %v239 = vld [vmem:[%s210 + $0x3c] sm:$0xff]
      %v240 = vld [vmem:[%s210 + $0x44] sm:$0xf]
      %v241 = vld [vmem:[%s210 + $0x48] sm:$0xff]
      %v242 = vld [vmem:[%s210 + $0x50] sm:$0xf]
      %v243 = vld [vmem:[%s210 + $0x54] sm:$0xff]
      %v244 = vld [vmem:[%s210 + $0x5c] sm:$0xf]
      %v245 = vld [vmem:[%s215] sm:$0xf]
      %v246 = vld [vmem:[%s215 + $0x4] sm:$0xf]
      %v247 = vld [vmem:[%s215 + $0x8] sm:$0xf]
      %v248 = vld [vmem:[%s215 + $0xc] sm:$0xf]
      %v249 = vld [vmem:[%s215 + $0x10] sm:$0xf]
      %v250 = vld [vmem:[%s215 + $0x14] sm:$0xf]
      %v251 = vld [vmem:[%s215 + $0x18] sm:$0xf]
      %v252 = vld [vmem:[%s215 + $0x1c] sm:$0xf]
      %v253 = vld [vmem:[%s215 + $0x20] sm:$0xf]
      %v254 = vld [vmem:[%s215 + $0x24] sm:$0xf]
      %v255 = vld [vmem:[%s215 + $0x28] sm:$0xf]
      %v256 = vld [vmem:[%s215 + $0x2c] sm:$0xf]
      %v257 = vld [vmem:[%s215 + $0x30] sm:$0xf]
      %v258 = vld [vmem:[%s215 + $0x34] sm:$0xf]
      %v259 = vld [vmem:[%s215 + $0x38] sm:$0xf]
      %v260 = vld [vmem:[%s215 + $0x3c] sm:$0xf]
      %v261 = vld [vmem:[%s215 + $0x40] sm:$0xf]
      %v262 = vld [vmem:[%s215 + $0x44] sm:$0xf]
      %v263 = vld [vmem:[%s215 + $0x48] sm:$0xf]
      %v264 = vld [vmem:[%s215 + $0x4c] sm:$0xf]
      %v265 = vld [vmem:[%s215 + $0x50] sm:$0xf]
      %v266 = vld [vmem:[%s215 + $0x54] sm:$0xf]
      %v267 = vld [vmem:[%s215 + $0x58] sm:$0xf]
      %v268 = vld [vmem:[%s215 + $0x5c] sm:$0xf]
      %v269 = vld [vmem:[%s215 + $0x60] sm:$0xf]
      %v270 = vld [vmem:[%s215 + $0x64] sm:$0xf]
      %v271 = vld [vmem:[%s215 + $0x68] sm:$0xf]
      %v272 = vld [vmem:[%s215 + $0x6c] sm:$0xf]
      %v273 = vld [vmem:[%s215 + $0x70] sm:$0xf]
      %v274 = vld [vmem:[%s215 + $0x74] sm:$0xf]
      %v275 = vld [vmem:[%s215 + $0x78] sm:$0xf]
      %v276 = vld [vmem:[%s215 + $0x7c] sm:$0xf]
      %v277 = vld [vmem:[%s215 + $0x80] sm:$0xf]
      %v278 = vld [vmem:[%s215 + $0x84] sm:$0xf]
      %v279 = vld [vmem:[%s215 + $0x88] sm:$0xf]
      %v280 = vld [vmem:[%s215 + $0x8c] sm:$0xf]
      %v281 = vld [vmem:[%s215 + $0x90] sm:$0xf]
      %v282 = vld [vmem:[%s215 + $0x94] sm:$0xf]
      %v283 = vld [vmem:[%s215 + $0x98] sm:$0xf]
      %v284 = vld [vmem:[%s215 + $0x9c] sm:$0xf]
      %v285 = vld [vmem:[%s215 + $0xa0] sm:$0xf]
      %v286 = vld [vmem:[%s215 + $0xa4] sm:$0xf]
      %v287 = vld [vmem:[%s215 + $0xa8] sm:$0xf]
      %v288 = vld [vmem:[%s215 + $0xac] sm:$0xf]
      %v289 = vld [vmem:[%s215 + $0xb0] sm:$0xf]
      %v290 = vld [vmem:[%s215 + $0xb4] sm:$0xf]
      %v291 = vld [vmem:[%s215 + $0xb8] sm:$0xf]
      %v292 = vld [vmem:[%s215 + $0xbc] sm:$0xf]
      %v293 = vld [vmem:[%s218] sm:$0x1]
      %v295 = vlaneseq
      %v296 = vshrl.u32 %v295, 7
      %v297 = vsub.s32 0, %v296
      %v298 = vrot.slane %v293, %v297
      %v316 = vunpack.c.l.b16 %v229
      %v317 = vunpack.c.h.b16 %v229
      %v318 = vunpack.c.l.b16 %v230
      %v319 = vunpack.c.l.b16 %v231
      %v320 = vunpack.c.h.b16 %v231
      %v321 = vunpack.c.l.b16 %v232
      %v322 = vunpack.c.l.b16 %v233
      %v323 = vunpack.c.h.b16 %v233
      %v324 = vunpack.c.l.b16 %v234
      %v325 = vunpack.c.l.b16 %v235
      %v326 = vunpack.c.h.b16 %v235
      %v327 = vunpack.c.l.b16 %v236
      %v328 = vunpack.c.l.b16 %v237
      %v329 = vunpack.c.h.b16 %v237
      %v330 = vunpack.c.l.b16 %v238
      %v331 = vunpack.c.l.b16 %v239
      %v332 = vunpack.c.h.b16 %v239
      %v333 = vunpack.c.l.b16 %v240
      %v334 = vunpack.c.l.b16 %v241
      %v335 = vunpack.c.h.b16 %v241
      %v336 = vunpack.c.l.b16 %v242
      %v337 = vunpack.c.l.b16 %v243
      %v338 = vunpack.c.h.b16 %v243
      %v339 = vunpack.c.l.b16 %v244
      %v340 = vpack.c.b16 %v319, %v316
      %v341 = vpack.c.b16 %v320, %v317
      %v342 = vpack.c.b16 %v321, %v318
      %v343 = vpack.c.b16 %v325, %v322
      %v344 = vpack.c.b16 %v326, %v323
      %v345 = vpack.c.b16 %v327, %v324
      %v346 = vpack.c.b16 %v331, %v328
      %v347 = vpack.c.b16 %v332, %v329
      %v348 = vpack.c.b16 %v333, %v330
      %v349 = vpack.c.b16 %v337, %v334
      %v350 = vpack.c.b16 %v338, %v335
      %v351 = vpack.c.b16 %v339, %v336
      %v412 = vunpack.c.l.b16 %v245
      %v413 = vunpack.c.l.b16 %v246
      %v414 = vunpack.c.l.b16 %v247
      %v415 = vunpack.c.l.b16 %v248
      %v416 = vunpack.c.l.b16 %v249
      %v417 = vunpack.c.l.b16 %v250
      %v418 = vunpack.c.l.b16 %v251
      %v419 = vunpack.c.l.b16 %v252
      %v420 = vunpack.c.l.b16 %v253
      %v421 = vunpack.c.l.b16 %v254
      %v422 = vunpack.c.l.b16 %v255
      %v423 = vunpack.c.l.b16 %v256
      %v424 = vunpack.c.l.b16 %v257
      %v425 = vunpack.c.l.b16 %v258
      %v426 = vunpack.c.l.b16 %v259
      %v427 = vunpack.c.l.b16 %v260
      %v428 = vunpack.c.l.b16 %v261
      %v429 = vunpack.c.l.b16 %v262
      %v430 = vunpack.c.l.b16 %v263
      %v431 = vunpack.c.l.b16 %v264
      %v432 = vunpack.c.l.b16 %v265
      %v433 = vunpack.c.l.b16 %v266
      %v434 = vunpack.c.l.b16 %v267
      %v435 = vunpack.c.l.b16 %v268
      %v436 = vunpack.c.l.b16 %v269
      %v437 = vunpack.c.l.b16 %v270
      %v438 = vunpack.c.l.b16 %v271
      %v439 = vunpack.c.l.b16 %v272
      %v440 = vunpack.c.l.b16 %v273
      %v441 = vunpack.c.l.b16 %v274
      %v442 = vunpack.c.l.b16 %v275
      %v443 = vunpack.c.l.b16 %v276
      %v444 = vunpack.c.l.b16 %v277
      %v445 = vunpack.c.l.b16 %v278
      %v446 = vunpack.c.l.b16 %v279
      %v447 = vunpack.c.l.b16 %v280
      %v448 = vunpack.c.l.b16 %v281
      %v449 = vunpack.c.l.b16 %v282
      %v450 = vunpack.c.l.b16 %v283
      %v451 = vunpack.c.l.b16 %v284
      %v452 = vunpack.c.l.b16 %v285
      %v453 = vunpack.c.l.b16 %v286
      %v454 = vunpack.c.l.b16 %v287
      %v455 = vunpack.c.l.b16 %v288
      %v456 = vunpack.c.l.b16 %v289
      %v457 = vunpack.c.l.b16 %v290
      %v458 = vunpack.c.l.b16 %v291
      %v459 = vunpack.c.l.b16 %v292
      %v460 = vpack.c.b16 %v413, %v412
      %v461 = vpack.c.b16 %v415, %v414
      %v462 = vpack.c.b16 %v417, %v416
      %v463 = vpack.c.b16 %v419, %v418
      %v464 = vpack.c.b16 %v421, %v420
      %v465 = vpack.c.b16 %v423, %v422
      %v466 = vpack.c.b16 %v425, %v424
      %v467 = vpack.c.b16 %v427, %v426
      %v468 = vpack.c.b16 %v429, %v428
      %v469 = vpack.c.b16 %v431, %v430
      %v470 = vpack.c.b16 %v433, %v432
      %v471 = vpack.c.b16 %v435, %v434
      %v472 = vpack.c.b16 %v437, %v436
      %v473 = vpack.c.b16 %v439, %v438
      %v474 = vpack.c.b16 %v441, %v440
      %v475 = vpack.c.b16 %v443, %v442
      %v476 = vpack.c.b16 %v445, %v444
      %v477 = vpack.c.b16 %v447, %v446
      %v478 = vpack.c.b16 %v449, %v448
      %v479 = vpack.c.b16 %v451, %v450
      %v480 = vpack.c.b16 %v453, %v452
      %v481 = vpack.c.b16 %v455, %v454
      %v482 = vpack.c.b16 %v457, %v456
      %v483 = vpack.c.b16 %v459, %v458
      %508 = vmatprep.subr.bf16.mxu0 0
      %509 = vmatpush1.bf16.msra.mxu0 %v460
      %510 = vmatprep.subr.bf16.mxu0 0
      %511 = vmatpush1.bf16.msra.mxu0 %v461
      %512 = vmatprep.subr.bf16.mxu0 0
      %513 = vmatpush1.bf16.msra.mxu0 %v462
      %514 = vmatprep.subr.bf16.mxu0 0
      %515 = vmatpush1.bf16.msra.mxu0 %v463
      %516 = vmatprep.subr.bf16.mxu0 0
      %517 = vmatpush1.bf16.msra.mxu0 %v464
      %518 = vmatprep.subr.bf16.mxu0 0
      %519 = vmatpush1.bf16.msra.mxu0 %v465
      %520 = vmatprep.subr.bf16.mxu0 0
      %521 = vmatpush1.bf16.msra.mxu0 %v466
      %522 = vmatprep.subr.bf16.mxu0 0
      %523 = vmatpush1.bf16.msra.mxu0 %v467
      %524 = vmatprep.subr.bf16.mxu0 0
      %525 = vmatpush1.bf16.msra.mxu0 %v468
      %526 = vmatprep.subr.bf16.mxu0 0
      %527 = vmatpush1.bf16.msra.mxu0 %v469
      %528 = vmatprep.subr.bf16.mxu0 0
      %529 = vmatpush1.bf16.msra.mxu0 %v470
      %530 = vmatprep.subr.bf16.mxu0 0
      %531 = vmatpush1.bf16.msra.mxu0 %v471
      %532 = vmatprep.subr.bf16.mxu0 0
      %533 = vmatpush1.bf16.msra.mxu0 %v472
      %534 = vmatprep.subr.bf16.mxu0 0
      %535 = vmatpush1.bf16.msra.mxu0 %v473
      %536 = vmatprep.subr.bf16.mxu0 0
      %537 = vmatpush1.bf16.msra.mxu0 %v474
      %538 = vmatprep.subr.bf16.mxu0 0
      %539 = vmatpush1.bf16.msra.mxu0 %v475
      %540 = vmatprep.mubr.bf16.mxu0 %v341
      %541 = vmatmul.mubr.bf16.gmra.mrb[0].mxu0 %v340
      %v542 = vpop.f32.mrb[0].mxu0
      %v543 = vadd.f32 %v298, %v542
      %v544 = vpop.f32.mrb[0].mxu0
      %v545 = vpop.f32.mrb[0].mxu0
      %v546 = vadd.f32 %v298, %v545
      %v547 = vpop.f32.mrb[0].mxu0
      %548 = vmatprep.mubr.bf16.mxu0 %v344
      %549 = vmatmul.mubr.bf16.gmra.mrb[0].mxu0 %v343
      %v550 = vpop.f32.mrb[0].mxu0
      %v551 = vadd.f32 %v298, %v550
      %v552 = vpop.f32.mrb[0].mxu0
      %v553 = vpop.f32.mrb[0].mxu0
      %v554 = vadd.f32 %v298, %v553
      %v555 = vpop.f32.mrb[0].mxu0
      %556 = vmatprep.mubr.bf16.mxu0 %v347
      %557 = vmatmul.mubr.bf16.gmra.mrb[0].mxu0 %v346
      %v558 = vpop.f32.mrb[0].mxu0
      %v559 = vadd.f32 %v298, %v558
      %v560 = vpop.f32.mrb[0].mxu0
      %v561 = vpop.f32.mrb[0].mxu0
      %v562 = vadd.f32 %v298, %v561
      %v563 = vpop.f32.mrb[0].mxu0
      %564 = vmatprep.mubr.bf16.mxu0 %v350
      %565 = vmatmul.mubr.bf16.gmra.mrb[0].mxu0 %v349
      %v566 = vpop.f32.mrb[0].mxu0
      %v567 = vadd.f32 %v298, %v566
      %v568 = vpop.f32.mrb[0].mxu0
      %v569 = vpop.f32.mrb[0].mxu0
      %v570 = vadd.f32 %v298, %v569
      %v571 = vpop.f32.mrb[0].mxu0
      %572 = vdwg.mxu0
      %573 = vmatprep.subr.bf16.mxu0 0
      %574 = vmatpush1.bf16.msra.mxu0 %v476
      %575 = vmatprep.subr.bf16.mxu0 0
      %576 = vmatpush1.bf16.msra.mxu0 %v477
      %577 = vmatprep.subr.bf16.mxu0 0
      %578 = vmatpush1.bf16.msra.mxu0 %v478
      %579 = vmatprep.subr.bf16.mxu0 0
      %580 = vmatpush1.bf16.msra.mxu0 %v479
      %581 = vmatprep.subr.bf16.mxu0 0
      %582 = vmatpush1.bf16.msra.mxu0 %v480
      %583 = vmatprep.subr.bf16.mxu0 0
      %584 = vmatpush1.bf16.msra.mxu0 %v481
      %585 = vmatprep.subr.bf16.mxu0 0
      %586 = vmatpush1.bf16.msra.mxu0 %v482
      %587 = vmatprep.subr.bf16.mxu0 0
      %588 = vmatpush1.bf16.msra.mxu0 %v483
      %589 = vmatprep.subr.bf16.mxu0 0
      %590 = vmatpush1.bf16.msra.mxu0 0
      %591 = vmatprep.subr.bf16.mxu0 0
      %592 = vmatpush1.bf16.msra.mxu0 0
      %593 = vmatprep.subr.bf16.mxu0 0
      %594 = vmatpush1.bf16.msra.mxu0 0
      %595 = vmatprep.subr.bf16.mxu0 0
      %596 = vmatpush1.bf16.msra.mxu0 0
      %597 = vmatprep.subr.bf16.mxu0 0
      %598 = vmatpush1.bf16.msra.mxu0 0
      %599 = vmatprep.subr.bf16.mxu0 0
      %600 = vmatpush1.bf16.msra.mxu0 0
      %601 = vmatprep.subr.bf16.mxu0 0
      %602 = vmatpush1.bf16.msra.mxu0 0
      %603 = vmatprep.subr.bf16.mxu0 0
      %604 = vmatpush1.bf16.msra.mxu0 0
      %605 = vmatprep.mubr.bf16.mxu0 0
      %606 = vmatmul.mubr.bf16.gmra.mrb[0].mxu0 %v342
      %v607 = vpop.f32.mrb[0].mxu0
      %v608 = vadd.f32 %v543, %v607
      %v609 = vpop.f32.mrb[0].mxu0
      %v610 = vpop.f32.mrb[0].mxu0
      %v611 = vadd.f32 %v546, %v610
      %v612 = vpop.f32.mrb[0].mxu0
      %613 = vmatprep.mubr.bf16.mxu0 0
      %614 = vmatmul.mubr.bf16.gmra.mrb[0].mxu0 %v345
      %v615 = vpop.f32.mrb[0].mxu0
      %v616 = vadd.f32 %v551, %v615
      %v617 = vpop.f32.mrb[0].mxu0
      %v618 = vpop.f32.mrb[0].mxu0
      %v619 = vadd.f32 %v554, %v618
      %v620 = vpop.f32.mrb[0].mxu0
      %621 = vmatprep.mubr.bf16.mxu0 0
      %622 = vmatmul.mubr.bf16.gmra.mrb[0].mxu0 %v348
      %v623 = vpop.f32.mrb[0].mxu0
      %v624 = vadd.f32 %v559, %v623
      %v625 = vpop.f32.mrb[0].mxu0
      %v626 = vpop.f32.mrb[0].mxu0
      %v627 = vadd.f32 %v562, %v626
      %v628 = vpop.f32.mrb[0].mxu0
      %629 = vmatprep.mubr.bf16.mxu0 0
      %630 = vmatmul.mubr.bf16.gmra.mrb[0].mxu0 %v351
      %v631 = vpop.f32.mrb[0].mxu0
      %v632 = vadd.f32 %v567, %v631
      %v633 = vpop.f32.mrb[0].mxu0
      %v634 = vpop.f32.mrb[0].mxu0
      %v635 = vadd.f32 %v570, %v634
      %v636 = vpop.f32.mrb[0].mxu0
      %637 = vdwg.mxu0
      %v638 = vmax.f32 %v608, 0.0
      %v639 = vmax.f32 %v611, 0.0
      %v640 = vmax.f32 %v616, 0.0
      %v641 = vmax.f32 %v619, 0.0
      %v642 = vmax.f32 %v624, 0.0
      %v643 = vmax.f32 %v627, 0.0
      %v644 = vmax.f32 %v632, 0.0
      %v645 = vmax.f32 %v635, 0.0
      %v646 = vpack.c.bf16 %v639, %v638
      %v647 = vpack.c.bf16 %v641, %v640
      %v648 = vpack.c.bf16 %v643, %v642
      %v649 = vpack.c.bf16 %v645, %v644
      %v654 = vunpack.c.l.b16 %v646
      %v655 = vunpack.c.h.b16 %v646
      %v656 = vunpack.c.l.b16 %v647
      %v657 = vunpack.c.h.b16 %v647
      %v658 = vunpack.c.l.b16 %v648
      %v659 = vunpack.c.h.b16 %v648
      %v660 = vunpack.c.l.b16 %v649
      %v661 = vunpack.c.h.b16 %v649
      %v662 = vpack.c.b16 %v654, %v654
      %v663 = vpack.c.b16 %v655, %v655
      %v664 = vpack.c.b16 %v656, %v656
      %v665 = vpack.c.b16 %v657, %v657
      %v666 = vpack.c.b16 %v658, %v658
      %v667 = vpack.c.b16 %v659, %v659
      %v668 = vpack.c.b16 %v660, %v660
      %v669 = vpack.c.b16 %v661, %v661
      %678 = vst [vmem:[%s226] sm:$0xf] %v662
      %679 = vst [vmem:[%s226 + $0x4] sm:$0xf] %v663
      %680 = vst [vmem:[%s226 + $0x8] sm:$0xf] %v664
      %681 = vst [vmem:[%s226 + $0xc] sm:$0xf] %v665
      %682 = vst [vmem:[%s226 + $0x10] sm:$0xf] %v666
      %683 = vst [vmem:[%s226 + $0x14] sm:$0xf] %v667
      %684 = vst [vmem:[%s226 + $0x18] sm:$0xf] %v668
      %685 = vst [vmem:[%s226 + $0x1c] sm:$0xf] %v669
      %s686 = smul.u32 8, %s18
      %p687 = scmp.lt.s32.totalorder %s686, 15
      %s688 = scalar_select %p687, %s686, 15
      %p689 = scmp.lt.s32.totalorder %s19, 0
      %s690 = scalar_select %p689, %s19, 0
      %s691 = sadd.s32 %s690, %s688
      %s692 = smul.addr %s691, 4
      %s693 = scalar_lea.vmem %s3, %s692
      // Predicated region
      $region33: #{google_motion_net_forward.7} parent=31 // pred_check
        %p694 = pneg %p124
      $region34: #{google_motion_net_forward.7} parent=31 // pred_check_branch
        %696 = sbr.rel (%p694) target = $region36
      $region35: #{google_motion_net_forward.7} parent=31 // pred_region
        %s697 = smul.u32 8, %s18
      $region36: #{google_motion_net_forward.7} parent=31 // pred_fallthru
        _
    $region32: #{google_motion_net_forward.7} parent=5 // pred_fallthru
      _
    %p698 = scmp.le.s32.totalorder 2, %s9
    // Predicated region
    $region37: #{google_motion_net_forward.7} parent=5 // pred_check
      %p699 = pneg %p698
    $region38: #{google_motion_net_forward.7} parent=5 // pred_check_branch
      %701 = sbr.rel (%p699) target = $region40
    $region39: #{google_motion_net_forward.7} parent=5 // pred_region
      %s702 = ssub.s32 %s9, 2
      // Predicated region
      $region41: #{google_motion_net_forward.7} parent=39 // pred_check
        %p703 = pneg %p130
      $region42: #{google_motion_net_forward.7} parent=39 // pred_check_branch
        %705 = sbr.rel (%p703) target = $region44
      $region43: #{google_motion_net_forward.7} parent=39 // pred_region
        %s706 = smul.u32 8, %s20
        %p707 = scmp.lt.s32.totalorder %s706, 15
        %s708 = scalar_select %p707, %s706, 15
        %p709 = scmp.lt.s32.totalorder %s21, 0
        %s710 = scalar_select %p709, %s21, 0
        %s711 = sadd.s32 %s710, %s708
        %s712 = smul.addr %s711, 4
        %s713 = scalar_lea.vmem %s3, %s712
      $region44: #{google_motion_net_forward.7} parent=39 // pred_fallthru
        _
    $region40: #{google_motion_net_forward.7} parent=5 // pred_fallthru
      _
  $region6: #{google_motion_net_forward.7} parent=0 // loop_footer
    %s13 = sadd.s32 1, %s9
  $region7: #{google_motion_net_forward.7} parent=0 // loop_footer_branch
    %8 = sbr.rel target = $region3
  $region8: #{google_motion_net_forward.7} parent=0 // loop_exit
    _

// kernel: google_motion_net_forward.8
$region0: #{google_motion_net_forward.8}
  #allocation0 [shape = 'u32[]', space=smem, size = 0x4, offset = 0x4, fixed_abs, tag = 'smem constant byte address 0x4 - core index']
  #allocation1 [shape = 'u32[144,128]{1,0:T(1,128)}', space=vmem, size = 0x12000, scoped, tag = 'internal scratch']
  %s0 = inlined_call_operand.vmem [shape: bf16[128,256], index: 0, kind: input, shape index: {}]
  %s1 = inlined_call_operand.vmem [shape: bf16[256,128], index: 1, kind: input, shape index: {}]
  %s2 = inlined_call_operand.vmem [shape: f32[1,128], index: 2, kind: input, shape index: {}]
  %s3 = inlined_call_operand.vmem [shape: bf16[128,128], index: 3, kind: output, shape index: {}]
  %s4 = sld [smem:[#allocation0]]
  $region45: #{google_motion_net_forward.8} parent=0
    _
  %s6 = ssub.s32 1, %s4
  %s7 = scalar_select 0, %s6, %s4
  loop: start=0, step=1, limit=4
  $region2: #{google_motion_net_forward.8} parent=0 // loop_pre_header
    _
  $region3: #{google_motion_net_forward.8} parent=0 // loop_header
    %s9 = sphi 0, %s13
    %p10 = scmp.ge.s32.totalorder %s9, 4
    %s16 = sphi 0, %s28
    %s17 = sphi 0, %s24
    %s18 = sphi 0, %s16
    %s19 = sphi 0, %s17
    %s20 = sphi 0, %s18
    %s21 = sphi 0, %s19
    %s31 = sphi 0, %s33
    %s34 = sphi 0, %s31
    %s35 = sphi 0, %s34
    %s51 = sphi 0, %s35
    %s57 = sphi 0, %s59
    %s60 = sphi 0, %s57
    %s61 = sphi 0, %s60
    %s77 = sphi 0, %s61
    %s83 = sphi 0, %s85
    %s86 = sphi 0, %s83
    %s87 = sphi 0, %s86
    %s103 = sphi 0, %s87
    %s111 = sphi 0, %s113
    %s114 = sphi 0, %s111
    %s115 = sphi 0, %s114
    %s131 = sphi 0, %s115
  $region4: #{google_motion_net_forward.8} parent=0 // loop_header_branch
    %12 = sbr.rel (%p10) target = $region8
  $region5: #{google_motion_net_forward.8} parent=0 // loop_body
    %s14 = ssub.s32 %s9, 1
    %s15 = ssub.s32 %s9, 2
    %s22 = sadd.s32 1, %s17
    %p23 = scmp.ge.s32.totalorder %s22, 1
    %s24 = scalar_select %p23, 0, %s22
    %s25 = sadd.s32 1, %s16
    %s26 = scalar_select %p23, %s25, %s16
    %p27 = scmp.ge.s32.totalorder %s26, 2
    %s28 = scalar_select %p27, 0, %s26
    %s29 = ssub.s32 %s16, %s28
    %p30 = scmp.eq.s32.totalorder %s29, 0
    %s32 = sadd.s32 %s31, 1
    %s33 = scalar_select %p30, %s31, %s32
    %p36 = pneg %p30
    %p37 = scmp.eq.s32.totalorder %s9, 1
    %p38 = por %p36, %p37
    %p39 = scmp.ne.s32.totalorder %s31, %s34
    %p40 = scmp.eq.s32.totalorder %s9, 0
    %p41 = por %p39, %p40
    %p42 = scmp.ne.s32.totalorder %s31, %s34
    %p43 = scmp.eq.s32.totalorder %s14, 1
    %p44 = por %p42, %p43
    %p45 = scmp.ne.s32.totalorder %s34, %s35
    %p46 = scmp.eq.s32.totalorder %s14, 0
    %p47 = por %p45, %p46
    %p48 = scmp.ne.s32.totalorder %s34, %s35
    %p49 = scmp.eq.s32.totalorder %s15, 1
    %p50 = por %p48, %p49
    %p52 = scmp.ne.s32.totalorder %s35, %s51
    %p53 = scmp.eq.s32.totalorder %s15, 0
    %p54 = por %p52, %p53
    %s55 = ssub.s32 %s17, %s24
    %p56 = scmp.eq.s32.totalorder %s55, 0
    %s58 = sadd.s32 %s57, 1
    %s59 = scalar_select %p56, %s57, %s58
    %p62 = pneg %p56
    %p63 = scmp.eq.s32.totalorder %s9, 1
    %p64 = por %p62, %p63
    %p65 = scmp.ne.s32.totalorder %s57, %s60
    %p66 = scmp.eq.s32.totalorder %s9, 0
    %p67 = por %p65, %p66
    %p68 = scmp.ne.s32.totalorder %s57, %s60
    %p69 = scmp.eq.s32.totalorder %s14, 1
    %p70 = por %p68, %p69
    %p71 = scmp.ne.s32.totalorder %s60, %s61
    %p72 = scmp.eq.s32.totalorder %s14, 0
    %p73 = por %p71, %p72
    %p74 = scmp.ne.s32.totalorder %s60, %s61
    %p75 = scmp.eq.s32.totalorder %s15, 1
    %p76 = por %p74, %p75
    %p78 = scmp.ne.s32.totalorder %s61, %s77
    %p79 = scmp.eq.s32.totalorder %s15, 0
    %p80 = por %p78, %p79
    %s81 = ssub.s32 %s17, %s24
    %p82 = scmp.eq.s32.totalorder %s81, 0
    %s84 = sadd.s32 %s83, 1
    %s85 = scalar_select %p82, %s83, %s84
    %p88 = pneg %p82
    %p89 = scmp.eq.s32.totalorder %s9, 1
    %p90 = por %p88, %p89
    %p91 = scmp.ne.s32.totalorder %s83, %s86
    %p92 = scmp.eq.s32.totalorder %s9, 0
    %p93 = por %p91, %p92
    %p94 = scmp.ne.s32.totalorder %s83, %s86
    %p95 = scmp.eq.s32.totalorder %s14, 1
    %p96 = por %p94, %p95
    %p97 = scmp.ne.s32.totalorder %s86, %s87
    %p98 = scmp.eq.s32.totalorder %s14, 0
    %p99 = por %p97, %p98
    %p100 = scmp.ne.s32.totalorder %s86, %s87
    %p101 = scmp.eq.s32.totalorder %s15, 1
    %p102 = por %p100, %p101
    %p104 = scmp.ne.s32.totalorder %s87, %s103
    %p105 = scmp.eq.s32.totalorder %s15, 0
    %p106 = por %p104, %p105
    %s107 = ssub.s32 %s16, %s28
    %s108 = ssub.s32 %s17, %s24
    %s109 = sor.u32 %s107, %s108
    %p110 = scmp.eq.s32.totalorder %s109, 0
    %s112 = sadd.s32 %s111, 1
    %s113 = scalar_select %p110, %s111, %s112
    %p116 = pneg %p110
    %p117 = scmp.eq.s32.totalorder %s9, 1
    %p118 = por %p116, %p117
    %p119 = scmp.ne.s32.totalorder %s111, %s114
    %p120 = scmp.eq.s32.totalorder %s9, 0
    %p121 = por %p119, %p120
    %p122 = scmp.ne.s32.totalorder %s111, %s114
    %p123 = scmp.eq.s32.totalorder %s14, 1
    %p124 = por %p122, %p123
    %p125 = scmp.ne.s32.totalorder %s114, %s115
    %p126 = scmp.eq.s32.totalorder %s14, 0
    %p127 = por %p125, %p126
    %p128 = scmp.ne.s32.totalorder %s114, %s115
    %p129 = scmp.eq.s32.totalorder %s15, 1
    %p130 = por %p128, %p129
    %p132 = scmp.ne.s32.totalorder %s115, %s131
    %p133 = scmp.eq.s32.totalorder %s15, 0
    %p134 = por %p132, %p133
    %p135 = scmp.le.s32.totalorder 1, %s9
    %p136 = scmp.lt.s32.totalorder %s9, 3
    %p137 = pnand %p135, %p136
    %p138 = pneg %p137
    // Predicated region
    $region9: #{google_motion_net_forward.8} parent=5 // pred_check
      _
    $region10: #{google_motion_net_forward.8} parent=5 // pred_check_branch
      %140 = sbr.rel (%p137) target = $region12
    $region11: #{google_motion_net_forward.8} parent=5 // pred_region
      %s141 = ssub.s32 %s9, 1
      // Predicated region
      $region13: #{google_motion_net_forward.8} parent=11 // pred_check
        %p142 = pneg %p73
      $region14: #{google_motion_net_forward.8} parent=11 // pred_check_branch
        %144 = sbr.rel (%p142) target = $region16
      $region15: #{google_motion_net_forward.8} parent=11 // pred_region
        %p145 = scmp.lt.s32.totalorder %s19, 0
        %s146 = scalar_select %p145, %s19, 0
        %s147 = smul.addr %s146, 4
        %s148 = scalar_lea.vmem %s1, %s147
      $region16: #{google_motion_net_forward.8} parent=11 // pred_fallthru
        _
      // Predicated region
      $region17: #{google_motion_net_forward.8} parent=11 // pred_check
        %p149 = pneg %p99
      $region18: #{google_motion_net_forward.8} parent=11 // pred_check_branch
        %151 = sbr.rel (%p149) target = $region20
      $region19: #{google_motion_net_forward.8} parent=11 // pred_region
        %p152 = scmp.lt.s32.totalorder %s19, 0
        %s153 = scalar_select %p152, %s19, 0
        %s154 = scalar_lea.vmem %s2, %s153
      $region20: #{google_motion_net_forward.8} parent=11 // pred_fallthru
        _
    $region12: #{google_motion_net_forward.8} parent=5 // pred_fallthru
      _
    %p155 = scmp.lt.s32.totalorder %s9, 2
    // Predicated region
    $region21: #{google_motion_net_forward.8} parent=5 // pred_check
      %p156 = pneg %p155
    $region22: #{google_motion_net_forward.8} parent=5 // pred_check_branch
      %158 = sbr.rel (%p156) target = $region24
    $region23: #{google_motion_net_forward.8} parent=5 // pred_region
      // Predicated region
      $region25: #{google_motion_net_forward.8} parent=23 // pred_check
        %p159 = pneg %p41
      $region26: #{google_motion_net_forward.8} parent=23 // pred_check_branch
        %161 = sbr.rel (%p159) target = $region28
      $region27: #{google_motion_net_forward.8} parent=23 // pred_region
        %s162 = smul.u32 8, %s16
        %p163 = scmp.lt.s32.totalorder %s162, 15
        %s164 = scalar_select %p163, %s162, 15
        %s165 = smul.addr %s164, 2
        %s166 = smul.addr %s165, 4
        %s167 = scalar_lea.vmem %s0, %s166
        %s168 = smul.u32 8, %s16
      $region28: #{google_motion_net_forward.8} parent=23 // pred_fallthru
        _
    $region24: #{google_motion_net_forward.8} parent=5 // pred_fallthru
      _
    %p169 = scmp.le.s32.totalorder 1, %s9
    %p170 = scmp.lt.s32.totalorder %s9, 3
    %p171 = pnand %p169, %p170
    %p172 = pneg %p171
    // Predicated region
    $region29: #{google_motion_net_forward.8} parent=5 // pred_check
      _
    $region30: #{google_motion_net_forward.8} parent=5 // pred_check_branch
      %174 = sbr.rel (%p171) target = $region32
    $region31: #{google_motion_net_forward.8} parent=5 // pred_region
      %s175 = ssub.s32 %s9, 1
      %s176 = smul.u32 8, %s18
      %p177 = scmp.lt.s32.totalorder %s176, 15
      %s178 = scalar_select %p177, %s176, 15
      %s179 = smul.addr %s178, 2
      %s180 = smul.addr %s179, 4
      %s181 = scalar_lea.vmem %s0, %s180
      %p182 = pneg %p47
      %p183 = pneg %p44
      %p184 = scmp.lt.s32.totalorder %s19, 0
      %s185 = scalar_select %p184, %s19, 0
      %s186 = smul.addr %s185, 4
      %s187 = scalar_lea.vmem %s1, %s186
      %p188 = pneg %p73
      %p189 = pneg %p70
      %p190 = scmp.lt.s32.totalorder %s19, 0
      %s191 = scalar_select %p190, %s19, 0
      %s192 = scalar_lea.vmem %s2, %s191
      %p193 = pneg %p99
      %p194 = pneg %p96
      %p195 = pneg %p127
      %p196 = pneg %p124
      %s197 = smul.u32 8, %s18
      %p198 = scmp.lt.s32.totalorder %s197, 15
      %s199 = scalar_select %p198, %s197, 15
      %p200 = scmp.lt.s32.totalorder %s19, 0
      %s201 = scalar_select %p200, %s19, 0
      %s202 = sadd.s32 %s201, %s199
      %s203 = smul.addr %s202, 4
      %s204 = scalar_lea.vmem %s3, %s203
      %s205 = smul.u32 8, %s18
      %p206 = scmp.lt.s32.totalorder %s205, 15
      %s207 = scalar_select %p206, %s205, 15
      %s208 = smul.addr %s207, 2
      %s209 = smul.addr %s208, 4
      %s210 = scalar_lea.vmem %s0, %s209
      %s211 = smul.u32 8, %s18
      %p212 = scmp.lt.s32.totalorder %s19, 0
      %s213 = scalar_select %p212, %s19, 0
      %s214 = smul.addr %s213, 4
      %s215 = scalar_lea.vmem %s1, %s214
      %p216 = scmp.lt.s32.totalorder %s19, 0
      %s217 = scalar_select %p216, %s19, 0
      %s218 = scalar_lea.vmem %s2, %s217
      %s219 = smul.u32 8, %s18
      %p220 = scmp.lt.s32.totalorder %s219, 15
      %s221 = scalar_select %p220, %s219, 15
      %p222 = scmp.lt.s32.totalorder %s19, 0
      %s223 = scalar_select %p222, %s19, 0
      %s224 = sadd.s32 %s223, %s221
      %s225 = smul.addr %s224, 4
      %s226 = scalar_lea.vmem %s3, %s225
      %s227 = smul.u32 8, %s18
      %v229 = vld [vmem:[%s210] sm:$0xff]
      %v230 = vld [vmem:[%s210 + $0x8] sm:$0xff]
      %v231 = vld [vmem:[%s210 + $0x10] sm:$0xff]
      %v232 = vld [vmem:[%s210 + $0x18] sm:$0xff]
      %v233 = vld [vmem:[%s210 + $0x20] sm:$0xff]
      %v234 = vld [vmem:[%s210 + $0x28] sm:$0xff]
      %v235 = vld [vmem:[%s210 + $0x30] sm:$0xff]
      %v236 = vld [vmem:[%s210 + $0x38] sm:$0xff]
      %v237 = vld [vmem:[%s215] sm:$0xf]
      %v238 = vld [vmem:[%s215 + $0x4] sm:$0xf]
      %v239 = vld [vmem:[%s215 + $0x8] sm:$0xf]
      %v240 = vld [vmem:[%s215 + $0xc] sm:$0xf]
      %v241 = vld [vmem:[%s215 + $0x10] sm:$0xf]
      %v242 = vld [vmem:[%s215 + $0x14] sm:$0xf]
      %v243 = vld [vmem:[%s215 + $0x18] sm:$0xf]
      %v244 = vld [vmem:[%s215 + $0x1c] sm:$0xf]
      %v245 = vld [vmem:[%s215 + $0x20] sm:$0xf]
      %v246 = vld [vmem:[%s215 + $0x24] sm:$0xf]
      %v247 = vld [vmem:[%s215 + $0x28] sm:$0xf]
      %v248 = vld [vmem:[%s215 + $0x2c] sm:$0xf]
      %v249 = vld [vmem:[%s215 + $0x30] sm:$0xf]
      %v250 = vld [vmem:[%s215 + $0x34] sm:$0xf]
      %v251 = vld [vmem:[%s215 + $0x38] sm:$0xf]
      %v252 = vld [vmem:[%s215 + $0x3c] sm:$0xf]
      %v253 = vld [vmem:[%s215 + $0x40] sm:$0xf]
      %v254 = vld [vmem:[%s215 + $0x44] sm:$0xf]
      %v255 = vld [vmem:[%s215 + $0x48] sm:$0xf]
      %v256 = vld [vmem:[%s215 + $0x4c] sm:$0xf]
      %v257 = vld [vmem:[%s215 + $0x50] sm:$0xf]
      %v258 = vld [vmem:[%s215 + $0x54] sm:$0xf]
      %v259 = vld [vmem:[%s215 + $0x58] sm:$0xf]
      %v260 = vld [vmem:[%s215 + $0x5c] sm:$0xf]
      %v261 = vld [vmem:[%s215 + $0x60] sm:$0xf]
      %v262 = vld [vmem:[%s215 + $0x64] sm:$0xf]
      %v263 = vld [vmem:[%s215 + $0x68] sm:$0xf]
      %v264 = vld [vmem:[%s215 + $0x6c] sm:$0xf]
      %v265 = vld [vmem:[%s215 + $0x70] sm:$0xf]
      %v266 = vld [vmem:[%s215 + $0x74] sm:$0xf]
      %v267 = vld [vmem:[%s215 + $0x78] sm:$0xf]
      %v268 = vld [vmem:[%s215 + $0x7c] sm:$0xf]
      %v269 = vld [vmem:[%s218] sm:$0x1]
      %v271 = vlaneseq
      %v272 = vshrl.u32 %v271, 7
      %v273 = vsub.s32 0, %v272
      %v274 = vrot.slane %v269, %v273
      %v284 = vunpack.c.l.b16 %v229
      %v285 = vunpack.c.h.b16 %v229
      %v286 = vunpack.c.l.b16 %v230
      %v287 = vunpack.c.h.b16 %v230
      %v288 = vunpack.c.l.b16 %v231
      %v289 = vunpack.c.h.b16 %v231
      %v290 = vunpack.c.l.b16 %v232
      %v291 = vunpack.c.h.b16 %v232
      %v292 = vunpack.c.l.b16 %v233
      %v293 = vunpack.c.h.b16 %v233
      %v294 = vunpack.c.l.b16 %v234
      %v295 = vunpack.c.h.b16 %v234
      %v296 = vunpack.c.l.b16 %v235
      %v297 = vunpack.c.h.b16 %v235
      %v298 = vunpack.c.l.b16 %v236
      %v299 = vunpack.c.h.b16 %v236
      %v300 = vpack.c.b16 %v286, %v284
      %v301 = vpack.c.b16 %v287, %v285
      %v302 = vpack.c.b16 %v290, %v288
      %v303 = vpack.c.b16 %v291, %v289
      %v304 = vpack.c.b16 %v294, %v292
      %v305 = vpack.c.b16 %v295, %v293
      %v306 = vpack.c.b16 %v298, %v296
      %v307 = vpack.c.b16 %v299, %v297
      %v348 = vunpack.c.l.b16 %v237
      %v349 = vunpack.c.l.b16 %v238
      %v350 = vunpack.c.l.b16 %v239
      %v351 = vunpack.c.l.b16 %v240
      %v352 = vunpack.c.l.b16 %v241
      %v353 = vunpack.c.l.b16 %v242
      %v354 = vunpack.c.l.b16 %v243
      %v355 = vunpack.c.l.b16 %v244
      %v356 = vunpack.c.l.b16 %v245
      %v357 = vunpack.c.l.b16 %v246
      %v358 = vunpack.c.l.b16 %v247
      %v359 = vunpack.c.l.b16 %v248
      %v360 = vunpack.c.l.b16 %v249
      %v361 = vunpack.c.l.b16 %v250
      %v362 = vunpack.c.l.b16 %v251
      %v363 = vunpack.c.l.b16 %v252
      %v364 = vunpack.c.l.b16 %v253
      %v365 = vunpack.c.l.b16 %v254
      %v366 = vunpack.c.l.b16 %v255
      %v367 = vunpack.c.l.b16 %v256
      %v368 = vunpack.c.l.b16 %v257
      %v369 = vunpack.c.l.b16 %v258
      %v370 = vunpack.c.l.b16 %v259
      %v371 = vunpack.c.l.b16 %v260
      %v372 = vunpack.c.l.b16 %v261
      %v373 = vunpack.c.l.b16 %v262
      %v374 = vunpack.c.l.b16 %v263
      %v375 = vunpack.c.l.b16 %v264
      %v376 = vunpack.c.l.b16 %v265
      %v377 = vunpack.c.l.b16 %v266
      %v378 = vunpack.c.l.b16 %v267
      %v379 = vunpack.c.l.b16 %v268
      %v380 = vpack.c.b16 %v349, %v348
      %v381 = vpack.c.b16 %v351, %v350
      %v382 = vpack.c.b16 %v353, %v352
      %v383 = vpack.c.b16 %v355, %v354
      %v384 = vpack.c.b16 %v357, %v356
      %v385 = vpack.c.b16 %v359, %v358
      %v386 = vpack.c.b16 %v361, %v360
      %v387 = vpack.c.b16 %v363, %v362
      %v388 = vpack.c.b16 %v365, %v364
      %v389 = vpack.c.b16 %v367, %v366
      %v390 = vpack.c.b16 %v369, %v368
      %v391 = vpack.c.b16 %v371, %v370
      %v392 = vpack.c.b16 %v373, %v372
      %v393 = vpack.c.b16 %v375, %v374
      %v394 = vpack.c.b16 %v377, %v376
      %v395 = vpack.c.b16 %v379, %v378
      %412 = vmatprep.subr.bf16.mxu0 0
      %413 = vmatpush1.bf16.msra.mxu0 %v380
      %414 = vmatprep.subr.bf16.mxu0 0
      %415 = vmatpush1.bf16.msra.mxu0 %v381
      %416 = vmatprep.subr.bf16.mxu0 0
      %417 = vmatpush1.bf16.msra.mxu0 %v382
      %418 = vmatprep.subr.bf16.mxu0 0
      %419 = vmatpush1.bf16.msra.mxu0 %v383
      %420 = vmatprep.subr.bf16.mxu0 0
      %421 = vmatpush1.bf16.msra.mxu0 %v384
      %422 = vmatprep.subr.bf16.mxu0 0
      %423 = vmatpush1.bf16.msra.mxu0 %v385
      %424 = vmatprep.subr.bf16.mxu0 0
      %425 = vmatpush1.bf16.msra.mxu0 %v386
      %426 = vmatprep.subr.bf16.mxu0 0
      %427 = vmatpush1.bf16.msra.mxu0 %v387
      %428 = vmatprep.subr.bf16.mxu0 0
      %429 = vmatpush1.bf16.msra.mxu0 %v388
      %430 = vmatprep.subr.bf16.mxu0 0
      %431 = vmatpush1.bf16.msra.mxu0 %v389
      %432 = vmatprep.subr.bf16.mxu0 0
      %433 = vmatpush1.bf16.msra.mxu0 %v390
      %434 = vmatprep.subr.bf16.mxu0 0
      %435 = vmatpush1.bf16.msra.mxu0 %v391
      %436 = vmatprep.subr.bf16.mxu0 0
      %437 = vmatpush1.bf16.msra.mxu0 %v392
      %438 = vmatprep.subr.bf16.mxu0 0
      %439 = vmatpush1.bf16.msra.mxu0 %v393
      %440 = vmatprep.subr.bf16.mxu0 0
      %441 = vmatpush1.bf16.msra.mxu0 %v394
      %442 = vmatprep.subr.bf16.mxu0 0
      %443 = vmatpush1.bf16.msra.mxu0 %v395
      %444 = vmatprep.mubr.bf16.mxu0 %v301
      %445 = vmatmul.mubr.bf16.gmra.mrb[0].mxu0 %v300
      %v446 = vpop.f32.mrb[0].mxu0
      %v447 = vadd.f32 %v274, %v446
      %v448 = vpop.f32.mrb[0].mxu0
      %v449 = vpop.f32.mrb[0].mxu0
      %v450 = vadd.f32 %v274, %v449
      %v451 = vpop.f32.mrb[0].mxu0
      %452 = vmatprep.mubr.bf16.mxu0 %v303
      %453 = vmatmul.mubr.bf16.gmra.mrb[0].mxu0 %v302
      %v454 = vpop.f32.mrb[0].mxu0
      %v455 = vadd.f32 %v274, %v454
      %v456 = vpop.f32.mrb[0].mxu0
      %v457 = vpop.f32.mrb[0].mxu0
      %v458 = vadd.f32 %v274, %v457
      %v459 = vpop.f32.mrb[0].mxu0
      %460 = vmatprep.mubr.bf16.mxu0 %v305
      %461 = vmatmul.mubr.bf16.gmra.mrb[0].mxu0 %v304
      %v462 = vpop.f32.mrb[0].mxu0
      %v463 = vadd.f32 %v274, %v462
      %v464 = vpop.f32.mrb[0].mxu0
      %v465 = vpop.f32.mrb[0].mxu0
      %v466 = vadd.f32 %v274, %v465
      %v467 = vpop.f32.mrb[0].mxu0
      %468 = vmatprep.mubr.bf16.mxu0 %v307
      %469 = vmatmul.mubr.bf16.gmra.mrb[0].mxu0 %v306
      %v470 = vpop.f32.mrb[0].mxu0
      %v471 = vadd.f32 %v274, %v470
      %v472 = vpop.f32.mrb[0].mxu0
      %v473 = vpop.f32.mrb[0].mxu0
      %v474 = vadd.f32 %v274, %v473
      %v475 = vpop.f32.mrb[0].mxu0
      %476 = vdwg.mxu0
      %v477 = vmax.f32 %v447, 0.0
      %v478 = vmax.f32 %v450, 0.0
      %v479 = vmax.f32 %v455, 0.0
      %v480 = vmax.f32 %v458, 0.0
      %v481 = vmax.f32 %v463, 0.0
      %v482 = vmax.f32 %v466, 0.0
      %v483 = vmax.f32 %v471, 0.0
      %v484 = vmax.f32 %v474, 0.0
      %v485 = vpack.c.bf16 %v478, %v477
      %v486 = vpack.c.bf16 %v480, %v479
      %v487 = vpack.c.bf16 %v482, %v481
      %v488 = vpack.c.bf16 %v484, %v483
      %v493 = vunpack.c.l.b16 %v485
      %v494 = vunpack.c.h.b16 %v485
      %v495 = vunpack.c.l.b16 %v486
      %v496 = vunpack.c.h.b16 %v486
      %v497 = vunpack.c.l.b16 %v487
      %v498 = vunpack.c.h.b16 %v487
      %v499 = vunpack.c.l.b16 %v488
      %v500 = vunpack.c.h.b16 %v488
      %v501 = vpack.c.b16 %v493, %v493
      %v502 = vpack.c.b16 %v494, %v494
      %v503 = vpack.c.b16 %v495, %v495
      %v504 = vpack.c.b16 %v496, %v496
      %v505 = vpack.c.b16 %v497, %v497
      %v506 = vpack.c.b16 %v498, %v498
      %v507 = vpack.c.b16 %v499, %v499
      %v508 = vpack.c.b16 %v500, %v500
      %517 = vst [vmem:[%s226] sm:$0xf] %v501
      %518 = vst [vmem:[%s226 + $0x4] sm:$0xf] %v502
      %519 = vst [vmem:[%s226 + $0x8] sm:$0xf] %v503
      %520 = vst [vmem:[%s226 + $0xc] sm:$0xf] %v504
      %521 = vst [vmem:[%s226 + $0x10] sm:$0xf] %v505
      %522 = vst [vmem:[%s226 + $0x14] sm:$0xf] %v506
      %523 = vst [vmem:[%s226 + $0x18] sm:$0xf] %v507
      %524 = vst [vmem:[%s226 + $0x1c] sm:$0xf] %v508
      %s525 = smul.u32 8, %s18
      %p526 = scmp.lt.s32.totalorder %s525, 15
      %s527 = scalar_select %p526, %s525, 15
      %p528 = scmp.lt.s32.totalorder %s19, 0
      %s529 = scalar_select %p528, %s19, 0
      %s530 = sadd.s32 %s529, %s527
      %s531 = smul.addr %s530, 4
      %s532 = scalar_lea.vmem %s3, %s531
      // Predicated region
      $region33: #{google_motion_net_forward.8} parent=31 // pred_check
        %p533 = pneg %p124
      $region34: #{google_motion_net_forward.8} parent=31 // pred_check_branch
        %535 = sbr.rel (%p533) target = $region36
      $region35: #{google_motion_net_forward.8} parent=31 // pred_region
        %s536 = smul.u32 8, %s18
      $region36: #{google_motion_net_forward.8} parent=31 // pred_fallthru
        _
    $region32: #{google_motion_net_forward.8} parent=5 // pred_fallthru
      _
    %p537 = scmp.le.s32.totalorder 2, %s9
    // Predicated region
    $region37: #{google_motion_net_forward.8} parent=5 // pred_check
      %p538 = pneg %p537
    $region38: #{google_motion_net_forward.8} parent=5 // pred_check_branch
      %540 = sbr.rel (%p538) target = $region40
    $region39: #{google_motion_net_forward.8} parent=5 // pred_region
      %s541 = ssub.s32 %s9, 2
      // Predicated region
      $region41: #{google_motion_net_forward.8} parent=39 // pred_check
        %p542 = pneg %p130
      $region42: #{google_motion_net_forward.8} parent=39 // pred_check_branch
        %544 = sbr.rel (%p542) target = $region44
      $region43: #{google_motion_net_forward.8} parent=39 // pred_region
        %s545 = smul.u32 8, %s20
        %p546 = scmp.lt.s32.totalorder %s545, 15
        %s547 = scalar_select %p546, %s545, 15
        %p548 = scmp.lt.s32.totalorder %s21, 0
        %s549 = scalar_select %p548, %s21, 0
        %s550 = sadd.s32 %s549, %s547
        %s551 = smul.addr %s550, 4
        %s552 = scalar_lea.vmem %s3, %s551
      $region44: #{google_motion_net_forward.8} parent=39 // pred_fallthru
        _
    $region40: #{google_motion_net_forward.8} parent=5 // pred_fallthru
      _
  $region6: #{google_motion_net_forward.8} parent=0 // loop_footer
    %s13 = sadd.s32 1, %s9
  $region7: #{google_motion_net_forward.8} parent=0 // loop_footer_branch
    %8 = sbr.rel target = $region3
  $region8: #{google_motion_net_forward.8} parent=0 // loop_exit
    _

// kernel: google_motion_net_forward.9
$region0: #{google_motion_net_forward.9}
  #allocation0 [shape = 'u32[]', space=smem, size = 0x4, offset = 0x4, fixed_abs, tag = 'smem constant byte address 0x4 - core index']
  #allocation1 [shape = 'u32[144,128]{1,0:T(1,128)}', space=vmem, size = 0x12000, scoped, tag = 'internal scratch']
  %s0 = inlined_call_operand.vmem [shape: bf16[128,256], index: 0, kind: input, shape index: {}]
  %s1 = inlined_call_operand.vmem [shape: bf16[256,128], index: 1, kind: input, shape index: {}]
  %s2 = inlined_call_operand.vmem [shape: f32[1,128], index: 2, kind: input, shape index: {}]
  %s3 = inlined_call_operand.vmem [shape: bf16[128,128], index: 3, kind: output, shape index: {}]
  %s4 = sld [smem:[#allocation0]]
  $region45: #{google_motion_net_forward.9} parent=0
    _
  %s6 = ssub.s32 1, %s4
  %s7 = scalar_select 0, %s6, %s4
  loop: start=0, step=1, limit=4
  $region2: #{google_motion_net_forward.9} parent=0 // loop_pre_header
    _
  $region3: #{google_motion_net_forward.9} parent=0 // loop_header
    %s9 = sphi 0, %s13
    %p10 = scmp.ge.s32.totalorder %s9, 4
    %s16 = sphi 0, %s28
    %s17 = sphi 0, %s24
    %s18 = sphi 0, %s16
    %s19 = sphi 0, %s17
    %s20 = sphi 0, %s18
    %s21 = sphi 0, %s19
    %s31 = sphi 0, %s33
    %s34 = sphi 0, %s31
    %s35 = sphi 0, %s34
    %s51 = sphi 0, %s35
    %s57 = sphi 0, %s59
    %s60 = sphi 0, %s57
    %s61 = sphi 0, %s60
    %s77 = sphi 0, %s61
    %s83 = sphi 0, %s85
    %s86 = sphi 0, %s83
    %s87 = sphi 0, %s86
    %s103 = sphi 0, %s87
    %s111 = sphi 0, %s113
    %s114 = sphi 0, %s111
    %s115 = sphi 0, %s114
    %s131 = sphi 0, %s115
  $region4: #{google_motion_net_forward.9} parent=0 // loop_header_branch
    %12 = sbr.rel (%p10) target = $region8
  $region5: #{google_motion_net_forward.9} parent=0 // loop_body
    %s14 = ssub.s32 %s9, 1
    %s15 = ssub.s32 %s9, 2
    %s22 = sadd.s32 1, %s17
    %p23 = scmp.ge.s32.totalorder %s22, 1
    %s24 = scalar_select %p23, 0, %s22
    %s25 = sadd.s32 1, %s16
    %s26 = scalar_select %p23, %s25, %s16
    %p27 = scmp.ge.s32.totalorder %s26, 2
    %s28 = scalar_select %p27, 0, %s26
    %s29 = ssub.s32 %s16, %s28
    %p30 = scmp.eq.s32.totalorder %s29, 0
    %s32 = sadd.s32 %s31, 1
    %s33 = scalar_select %p30, %s31, %s32
    %p36 = pneg %p30
    %p37 = scmp.eq.s32.totalorder %s9, 1
    %p38 = por %p36, %p37
    %p39 = scmp.ne.s32.totalorder %s31, %s34
    %p40 = scmp.eq.s32.totalorder %s9, 0
    %p41 = por %p39, %p40
    %p42 = scmp.ne.s32.totalorder %s31, %s34
    %p43 = scmp.eq.s32.totalorder %s14, 1
    %p44 = por %p42, %p43
    %p45 = scmp.ne.s32.totalorder %s34, %s35
    %p46 = scmp.eq.s32.totalorder %s14, 0
    %p47 = por %p45, %p46
    %p48 = scmp.ne.s32.totalorder %s34, %s35
    %p49 = scmp.eq.s32.totalorder %s15, 1
    %p50 = por %p48, %p49
    %p52 = scmp.ne.s32.totalorder %s35, %s51
    %p53 = scmp.eq.s32.totalorder %s15, 0
    %p54 = por %p52, %p53
    %s55 = ssub.s32 %s17, %s24
    %p56 = scmp.eq.s32.totalorder %s55, 0
    %s58 = sadd.s32 %s57, 1
    %s59 = scalar_select %p56, %s57, %s58
    %p62 = pneg %p56
    %p63 = scmp.eq.s32.totalorder %s9, 1
    %p64 = por %p62, %p63
    %p65 = scmp.ne.s32.totalorder %s57, %s60
    %p66 = scmp.eq.s32.totalorder %s9, 0
    %p67 = por %p65, %p66
    %p68 = scmp.ne.s32.totalorder %s57, %s60
    %p69 = scmp.eq.s32.totalorder %s14, 1
    %p70 = por %p68, %p69
    %p71 = scmp.ne.s32.totalorder %s60, %s61
    %p72 = scmp.eq.s32.totalorder %s14, 0
    %p73 = por %p71, %p72
    %p74 = scmp.ne.s32.totalorder %s60, %s61
    %p75 = scmp.eq.s32.totalorder %s15, 1
    %p76 = por %p74, %p75
    %p78 = scmp.ne.s32.totalorder %s61, %s77
    %p79 = scmp.eq.s32.totalorder %s15, 0
    %p80 = por %p78, %p79
    %s81 = ssub.s32 %s17, %s24
    %p82 = scmp.eq.s32.totalorder %s81, 0
    %s84 = sadd.s32 %s83, 1
    %s85 = scalar_select %p82, %s83, %s84
    %p88 = pneg %p82
    %p89 = scmp.eq.s32.totalorder %s9, 1
    %p90 = por %p88, %p89
    %p91 = scmp.ne.s32.totalorder %s83, %s86
    %p92 = scmp.eq.s32.totalorder %s9, 0
    %p93 = por %p91, %p92
    %p94 = scmp.ne.s32.totalorder %s83, %s86
    %p95 = scmp.eq.s32.totalorder %s14, 1
    %p96 = por %p94, %p95
    %p97 = scmp.ne.s32.totalorder %s86, %s87
    %p98 = scmp.eq.s32.totalorder %s14, 0
    %p99 = por %p97, %p98
    %p100 = scmp.ne.s32.totalorder %s86, %s87
    %p101 = scmp.eq.s32.totalorder %s15, 1
    %p102 = por %p100, %p101
    %p104 = scmp.ne.s32.totalorder %s87, %s103
    %p105 = scmp.eq.s32.totalorder %s15, 0
    %p106 = por %p104, %p105
    %s107 = ssub.s32 %s16, %s28
    %s108 = ssub.s32 %s17, %s24
    %s109 = sor.u32 %s107, %s108
    %p110 = scmp.eq.s32.totalorder %s109, 0
    %s112 = sadd.s32 %s111, 1
    %s113 = scalar_select %p110, %s111, %s112
    %p116 = pneg %p110
    %p117 = scmp.eq.s32.totalorder %s9, 1
    %p118 = por %p116, %p117
    %p119 = scmp.ne.s32.totalorder %s111, %s114
    %p120 = scmp.eq.s32.totalorder %s9, 0
    %p121 = por %p119, %p120
    %p122 = scmp.ne.s32.totalorder %s111, %s114
    %p123 = scmp.eq.s32.totalorder %s14, 1
    %p124 = por %p122, %p123
    %p125 = scmp.ne.s32.totalorder %s114, %s115
    %p126 = scmp.eq.s32.totalorder %s14, 0
    %p127 = por %p125, %p126
    %p128 = scmp.ne.s32.totalorder %s114, %s115
    %p129 = scmp.eq.s32.totalorder %s15, 1
    %p130 = por %p128, %p129
    %p132 = scmp.ne.s32.totalorder %s115, %s131
    %p133 = scmp.eq.s32.totalorder %s15, 0
    %p134 = por %p132, %p133
    %p135 = scmp.le.s32.totalorder 1, %s9
    %p136 = scmp.lt.s32.totalorder %s9, 3
    %p137 = pnand %p135, %p136
    %p138 = pneg %p137
    // Predicated region
    $region9: #{google_motion_net_forward.9} parent=5 // pred_check
      _
    $region10: #{google_motion_net_forward.9} parent=5 // pred_check_branch
      %140 = sbr.rel (%p137) target = $region12
    $region11: #{google_motion_net_forward.9} parent=5 // pred_region
      %s141 = ssub.s32 %s9, 1
      // Predicated region
      $region13: #{google_motion_net_forward.9} parent=11 // pred_check
        %p142 = pneg %p73
      $region14: #{google_motion_net_forward.9} parent=11 // pred_check_branch
        %144 = sbr.rel (%p142) target = $region16
      $region15: #{google_motion_net_forward.9} parent=11 // pred_region
        %p145 = scmp.lt.s32.totalorder %s19, 0
        %s146 = scalar_select %p145, %s19, 0
        %s147 = smul.addr %s146, 4
        %s148 = scalar_lea.vmem %s1, %s147
      $region16: #{google_motion_net_forward.9} parent=11 // pred_fallthru
        _
      // Predicated region
      $region17: #{google_motion_net_forward.9} parent=11 // pred_check
        %p149 = pneg %p99
      $region18: #{google_motion_net_forward.9} parent=11 // pred_check_branch
        %151 = sbr.rel (%p149) target = $region20
      $region19: #{google_motion_net_forward.9} parent=11 // pred_region
        %p152 = scmp.lt.s32.totalorder %s19, 0
        %s153 = scalar_select %p152, %s19, 0
        %s154 = scalar_lea.vmem %s2, %s153
      $region20: #{google_motion_net_forward.9} parent=11 // pred_fallthru
        _
    $region12: #{google_motion_net_forward.9} parent=5 // pred_fallthru
      _
    %p155 = scmp.lt.s32.totalorder %s9, 2
    // Predicated region
    $region21: #{google_motion_net_forward.9} parent=5 // pred_check
      %p156 = pneg %p155
    $region22: #{google_motion_net_forward.9} parent=5 // pred_check_branch
      %158 = sbr.rel (%p156) target = $region24
    $region23: #{google_motion_net_forward.9} parent=5 // pred_region
      // Predicated region
      $region25: #{google_motion_net_forward.9} parent=23 // pred_check
        %p159 = pneg %p41
      $region26: #{google_motion_net_forward.9} parent=23 // pred_check_branch
        %161 = sbr.rel (%p159) target = $region28
      $region27: #{google_motion_net_forward.9} parent=23 // pred_region
        %s162 = smul.u32 8, %s16
        %p163 = scmp.lt.s32.totalorder %s162, 15
        %s164 = scalar_select %p163, %s162, 15
        %s165 = smul.addr %s164, 2
        %s166 = smul.addr %s165, 4
        %s167 = scalar_lea.vmem %s0, %s166
        %s168 = smul.u32 8, %s16
      $region28: #{google_motion_net_forward.9} parent=23 // pred_fallthru
        _
    $region24: #{google_motion_net_forward.9} parent=5 // pred_fallthru
      _
    %p169 = scmp.le.s32.totalorder 1, %s9
    %p170 = scmp.lt.s32.totalorder %s9, 3
    %p171 = pnand %p169, %p170
    %p172 = pneg %p171
    // Predicated region
    $region29: #{google_motion_net_forward.9} parent=5 // pred_check
      _
    $region30: #{google_motion_net_forward.9} parent=5 // pred_check_branch
      %174 = sbr.rel (%p171) target = $region32
    $region31: #{google_motion_net_forward.9} parent=5 // pred_region
      %s175 = ssub.s32 %s9, 1
      %s176 = smul.u32 8, %s18
      %p177 = scmp.lt.s32.totalorder %s176, 15
      %s178 = scalar_select %p177, %s176, 15
      %s179 = smul.addr %s178, 2
      %s180 = smul.addr %s179, 4
      %s181 = scalar_lea.vmem %s0, %s180
      %p182 = pneg %p47
      %p183 = pneg %p44
      %p184 = scmp.lt.s32.totalorder %s19, 0
      %s185 = scalar_select %p184, %s19, 0
      %s186 = smul.addr %s185, 4
      %s187 = scalar_lea.vmem %s1, %s186
      %p188 = pneg %p73
      %p189 = pneg %p70
      %p190 = scmp.lt.s32.totalorder %s19, 0
      %s191 = scalar_select %p190, %s19, 0
      %s192 = scalar_lea.vmem %s2, %s191
      %p193 = pneg %p99
      %p194 = pneg %p96
      %p195 = pneg %p127
      %p196 = pneg %p124
      %s197 = smul.u32 8, %s18
      %p198 = scmp.lt.s32.totalorder %s197, 15
      %s199 = scalar_select %p198, %s197, 15
      %p200 = scmp.lt.s32.totalorder %s19, 0
      %s201 = scalar_select %p200, %s19, 0
      %s202 = sadd.s32 %s201, %s199
      %s203 = smul.addr %s202, 4
      %s204 = scalar_lea.vmem %s3, %s203
      %s205 = smul.u32 8, %s18
      %p206 = scmp.lt.s32.totalorder %s205, 15
      %s207 = scalar_select %p206, %s205, 15
      %s208 = smul.addr %s207, 2
      %s209 = smul.addr %s208, 4
      %s210 = scalar_lea.vmem %s0, %s209
      %s211 = smul.u32 8, %s18
      %p212 = scmp.lt.s32.totalorder %s19, 0
      %s213 = scalar_select %p212, %s19, 0
      %s214 = smul.addr %s213, 4
      %s215 = scalar_lea.vmem %s1, %s214
      %p216 = scmp.lt.s32.totalorder %s19, 0
      %s217 = scalar_select %p216, %s19, 0
      %s218 = scalar_lea.vmem %s2, %s217
      %s219 = smul.u32 8, %s18
      %p220 = scmp.lt.s32.totalorder %s219, 15
      %s221 = scalar_select %p220, %s219, 15
      %p222 = scmp.lt.s32.totalorder %s19, 0
      %s223 = scalar_select %p222, %s19, 0
      %s224 = sadd.s32 %s223, %s221
      %s225 = smul.addr %s224, 4
      %s226 = scalar_lea.vmem %s3, %s225
      %s227 = smul.u32 8, %s18
      %v229 = vld [vmem:[%s210] sm:$0xff]
      %v230 = vld [vmem:[%s210 + $0x8] sm:$0xff]
      %v231 = vld [vmem:[%s210 + $0x10] sm:$0xff]
      %v232 = vld [vmem:[%s210 + $0x18] sm:$0xff]
      %v233 = vld [vmem:[%s210 + $0x20] sm:$0xff]
      %v234 = vld [vmem:[%s210 + $0x28] sm:$0xff]
      %v235 = vld [vmem:[%s210 + $0x30] sm:$0xff]
      %v236 = vld [vmem:[%s210 + $0x38] sm:$0xff]
      %v237 = vld [vmem:[%s215] sm:$0xf]
      %v238 = vld [vmem:[%s215 + $0x4] sm:$0xf]
      %v239 = vld [vmem:[%s215 + $0x8] sm:$0xf]
      %v240 = vld [vmem:[%s215 + $0xc] sm:$0xf]
      %v241 = vld [vmem:[%s215 + $0x10] sm:$0xf]
      %v242 = vld [vmem:[%s215 + $0x14] sm:$0xf]
      %v243 = vld [vmem:[%s215 + $0x18] sm:$0xf]
      %v244 = vld [vmem:[%s215 + $0x1c] sm:$0xf]
      %v245 = vld [vmem:[%s215 + $0x20] sm:$0xf]
      %v246 = vld [vmem:[%s215 + $0x24] sm:$0xf]
      %v247 = vld [vmem:[%s215 + $0x28] sm:$0xf]
      %v248 = vld [vmem:[%s215 + $0x2c] sm:$0xf]
      %v249 = vld [vmem:[%s215 + $0x30] sm:$0xf]
      %v250 = vld [vmem:[%s215 + $0x34] sm:$0xf]
      %v251 = vld [vmem:[%s215 + $0x38] sm:$0xf]
      %v252 = vld [vmem:[%s215 + $0x3c] sm:$0xf]
      %v253 = vld [vmem:[%s215 + $0x40] sm:$0xf]
      %v254 = vld [vmem:[%s215 + $0x44] sm:$0xf]
      %v255 = vld [vmem:[%s215 + $0x48] sm:$0xf]
      %v256 = vld [vmem:[%s215 + $0x4c] sm:$0xf]
      %v257 = vld [vmem:[%s215 + $0x50] sm:$0xf]
      %v258 = vld [vmem:[%s215 + $0x54] sm:$0xf]
      %v259 = vld [vmem:[%s215 + $0x58] sm:$0xf]
      %v260 = vld [vmem:[%s215 + $0x5c] sm:$0xf]
      %v261 = vld [vmem:[%s215 + $0x60] sm:$0xf]
      %v262 = vld [vmem:[%s215 + $0x64] sm:$0xf]
      %v263 = vld [vmem:[%s215 + $0x68] sm:$0xf]
      %v264 = vld [vmem:[%s215 + $0x6c] sm:$0xf]
      %v265 = vld [vmem:[%s215 + $0x70] sm:$0xf]
      %v266 = vld [vmem:[%s215 + $0x74] sm:$0xf]
      %v267 = vld [vmem:[%s215 + $0x78] sm:$0xf]
      %v268 = vld [vmem:[%s215 + $0x7c] sm:$0xf]
      %v269 = vld [vmem:[%s218] sm:$0x1]
      %v271 = vlaneseq
      %v272 = vshrl.u32 %v271, 7
      %v273 = vsub.s32 0, %v272
      %v274 = vrot.slane %v269, %v273
      %v284 = vunpack.c.l.b16 %v229
      %v285 = vunpack.c.h.b16 %v229
      %v286 = vunpack.c.l.b16 %v230
      %v287 = vunpack.c.h.b16 %v230
      %v288 = vunpack.c.l.b16 %v231
      %v289 = vunpack.c.h.b16 %v231
      %v290 = vunpack.c.l.b16 %v232
      %v291 = vunpack.c.h.b16 %v232
      %v292 = vunpack.c.l.b16 %v233
      %v293 = vunpack.c.h.b16 %v233
      %v294 = vunpack.c.l.b16 %v234
      %v295 = vunpack.c.h.b16 %v234
      %v296 = vunpack.c.l.b16 %v235
      %v297 = vunpack.c.h.b16 %v235
      %v298 = vunpack.c.l.b16 %v236
      %v299 = vunpack.c.h.b16 %v236
      %v300 = vpack.c.b16 %v286, %v284
      %v301 = vpack.c.b16 %v287, %v285
      %v302 = vpack.c.b16 %v290, %v288
      %v303 = vpack.c.b16 %v291, %v289
      %v304 = vpack.c.b16 %v294, %v292
      %v305 = vpack.c.b16 %v295, %v293
      %v306 = vpack.c.b16 %v298, %v296
      %v307 = vpack.c.b16 %v299, %v297
      %v348 = vunpack.c.l.b16 %v237
      %v349 = vunpack.c.l.b16 %v238
      %v350 = vunpack.c.l.b16 %v239
      %v351 = vunpack.c.l.b16 %v240
      %v352 = vunpack.c.l.b16 %v241
      %v353 = vunpack.c.l.b16 %v242
      %v354 = vunpack.c.l.b16 %v243
      %v355 = vunpack.c.l.b16 %v244
      %v356 = vunpack.c.l.b16 %v245
      %v357 = vunpack.c.l.b16 %v246
      %v358 = vunpack.c.l.b16 %v247
      %v359 = vunpack.c.l.b16 %v248
      %v360 = vunpack.c.l.b16 %v249
      %v361 = vunpack.c.l.b16 %v250
      %v362 = vunpack.c.l.b16 %v251
      %v363 = vunpack.c.l.b16 %v252
      %v364 = vunpack.c.l.b16 %v253
      %v365 = vunpack.c.l.b16 %v254
      %v366 = vunpack.c.l.b16 %v255
      %v367 = vunpack.c.l.b16 %v256
      %v368 = vunpack.c.l.b16 %v257
      %v369 = vunpack.c.l.b16 %v258
      %v370 = vunpack.c.l.b16 %v259
      %v371 = vunpack.c.l.b16 %v260
      %v372 = vunpack.c.l.b16 %v261
      %v373 = vunpack.c.l.b16 %v262
      %v374 = vunpack.c.l.b16 %v263
      %v375 = vunpack.c.l.b16 %v264
      %v376 = vunpack.c.l.b16 %v265
      %v377 = vunpack.c.l.b16 %v266
      %v378 = vunpack.c.l.b16 %v267
      %v379 = vunpack.c.l.b16 %v268
      %v380 = vpack.c.b16 %v349, %v348
      %v381 = vpack.c.b16 %v351, %v350
      %v382 = vpack.c.b16 %v353, %v352
      %v383 = vpack.c.b16 %v355, %v354
      %v384 = vpack.c.b16 %v357, %v356
      %v385 = vpack.c.b16 %v359, %v358
      %v386 = vpack.c.b16 %v361, %v360
      %v387 = vpack.c.b16 %v363, %v362
      %v388 = vpack.c.b16 %v365, %v364
      %v389 = vpack.c.b16 %v367, %v366
      %v390 = vpack.c.b16 %v369, %v368
      %v391 = vpack.c.b16 %v371, %v370
      %v392 = vpack.c.b16 %v373, %v372
      %v393 = vpack.c.b16 %v375, %v374
      %v394 = vpack.c.b16 %v377, %v376
      %v395 = vpack.c.b16 %v379, %v378
      %412 = vmatprep.subr.bf16.mxu0 0
      %413 = vmatpush1.bf16.msra.mxu0 %v380
      %414 = vmatprep.subr.bf16.mxu0 0
      %415 = vmatpush1.bf16.msra.mxu0 %v381
      %416 = vmatprep.subr.bf16.mxu0 0
      %417 = vmatpush1.bf16.msra.mxu0 %v382
      %418 = vmatprep.subr.bf16.mxu0 0
      %419 = vmatpush1.bf16.msra.mxu0 %v383
      %420 = vmatprep.subr.bf16.mxu0 0
      %421 = vmatpush1.bf16.msra.mxu0 %v384
      %422 = vmatprep.subr.bf16.mxu0 0
      %423 = vmatpush1.bf16.msra.mxu0 %v385
      %424 = vmatprep.subr.bf16.mxu0 0
      %425 = vmatpush1.bf16.msra.mxu0 %v386
      %426 = vmatprep.subr.bf16.mxu0 0
      %427 = vmatpush1.bf16.msra.mxu0 %v387
      %428 = vmatprep.subr.bf16.mxu0 0
      %429 = vmatpush1.bf16.msra.mxu0 %v388
      %430 = vmatprep.subr.bf16.mxu0 0
      %431 = vmatpush1.bf16.msra.mxu0 %v389
      %432 = vmatprep.subr.bf16.mxu0 0
      %433 = vmatpush1.bf16.msra.mxu0 %v390
      %434 = vmatprep.subr.bf16.mxu0 0
      %435 = vmatpush1.bf16.msra.mxu0 %v391
      %436 = vmatprep.subr.bf16.mxu0 0
      %437 = vmatpush1.bf16.msra.mxu0 %v392
      %438 = vmatprep.subr.bf16.mxu0 0
      %439 = vmatpush1.bf16.msra.mxu0 %v393
      %440 = vmatprep.subr.bf16.mxu0 0
      %441 = vmatpush1.bf16.msra.mxu0 %v394
      %442 = vmatprep.subr.bf16.mxu0 0
      %443 = vmatpush1.bf16.msra.mxu0 %v395
      %444 = vmatprep.mubr.bf16.mxu0 %v301
      %445 = vmatmul.mubr.bf16.gmra.mrb[0].mxu0 %v300
      %v446 = vpop.f32.mrb[0].mxu0
      %v447 = vadd.f32 %v274, %v446
      %v448 = vpop.f32.mrb[0].mxu0
      %v449 = vpop.f32.mrb[0].mxu0
      %v450 = vadd.f32 %v274, %v449
      %v451 = vpop.f32.mrb[0].mxu0
      %452 = vmatprep.mubr.bf16.mxu0 %v303
      %453 = vmatmul.mubr.bf16.gmra.mrb[0].mxu0 %v302
      %v454 = vpop.f32.mrb[0].mxu0
      %v455 = vadd.f32 %v274, %v454
      %v456 = vpop.f32.mrb[0].mxu0
      %v457 = vpop.f32.mrb[0].mxu0
      %v458 = vadd.f32 %v274, %v457
      %v459 = vpop.f32.mrb[0].mxu0
      %460 = vmatprep.mubr.bf16.mxu0 %v305
      %461 = vmatmul.mubr.bf16.gmra.mrb[0].mxu0 %v304
      %v462 = vpop.f32.mrb[0].mxu0
      %v463 = vadd.f32 %v274, %v462
      %v464 = vpop.f32.mrb[0].mxu0
      %v465 = vpop.f32.mrb[0].mxu0
      %v466 = vadd.f32 %v274, %v465
      %v467 = vpop.f32.mrb[0].mxu0
      %468 = vmatprep.mubr.bf16.mxu0 %v307
      %469 = vmatmul.mubr.bf16.gmra.mrb[0].mxu0 %v306
      %v470 = vpop.f32.mrb[0].mxu0
      %v471 = vadd.f32 %v274, %v470
      %v472 = vpop.f32.mrb[0].mxu0
      %v473 = vpop.f32.mrb[0].mxu0
      %v474 = vadd.f32 %v274, %v473
      %v475 = vpop.f32.mrb[0].mxu0
      %476 = vdwg.mxu0
      %v477 = vmax.f32 %v447, 0.0
      %v478 = vmax.f32 %v450, 0.0
      %v479 = vmax.f32 %v455, 0.0
      %v480 = vmax.f32 %v458, 0.0
      %v481 = vmax.f32 %v463, 0.0
      %v482 = vmax.f32 %v466, 0.0
      %v483 = vmax.f32 %v471, 0.0
      %v484 = vmax.f32 %v474, 0.0
      %v485 = vpack.c.bf16 %v478, %v477
      %v486 = vpack.c.bf16 %v480, %v479
      %v487 = vpack.c.bf16 %v482, %v481
      %v488 = vpack.c.bf16 %v484, %v483
      %v493 = vunpack.c.l.b16 %v485
      %v494 = vunpack.c.h.b16 %v485
      %v495 = vunpack.c.l.b16 %v486
      %v496 = vunpack.c.h.b16 %v486
      %v497 = vunpack.c.l.b16 %v487
      %v498 = vunpack.c.h.b16 %v487
      %v499 = vunpack.c.l.b16 %v488
      %v500 = vunpack.c.h.b16 %v488
      %v501 = vpack.c.b16 %v493, %v493
      %v502 = vpack.c.b16 %v494, %v494
      %v503 = vpack.c.b16 %v495, %v495
      %v504 = vpack.c.b16 %v496, %v496
      %v505 = vpack.c.b16 %v497, %v497
      %v506 = vpack.c.b16 %v498, %v498
      %v507 = vpack.c.b16 %v499, %v499
      %v508 = vpack.c.b16 %v500, %v500
      %517 = vst [vmem:[%s226] sm:$0xf] %v501
      %518 = vst [vmem:[%s226 + $0x4] sm:$0xf] %v502
      %519 = vst [vmem:[%s226 + $0x8] sm:$0xf] %v503
      %520 = vst [vmem:[%s226 + $0xc] sm:$0xf] %v504
      %521 = vst [vmem:[%s226 + $0x10] sm:$0xf] %v505
      %522 = vst [vmem:[%s226 + $0x14] sm:$0xf] %v506
      %523 = vst [vmem:[%s226 + $0x18] sm:$0xf] %v507
      %524 = vst [vmem:[%s226 + $0x1c] sm:$0xf] %v508
      %s525 = smul.u32 8, %s18
      %p526 = scmp.lt.s32.totalorder %s525, 15
      %s527 = scalar_select %p526, %s525, 15
      %p528 = scmp.lt.s32.totalorder %s19, 0
      %s529 = scalar_select %p528, %s19, 0
      %s530 = sadd.s32 %s529, %s527
      %s531 = smul.addr %s530, 4
      %s532 = scalar_lea.vmem %s3, %s531
      // Predicated region
      $region33: #{google_motion_net_forward.9} parent=31 // pred_check
        %p533 = pneg %p124
      $region34: #{google_motion_net_forward.9} parent=31 // pred_check_branch
        %535 = sbr.rel (%p533) target = $region36
      $region35: #{google_motion_net_forward.9} parent=31 // pred_region
        %s536 = smul.u32 8, %s18
      $region36: #{google_motion_net_forward.9} parent=31 // pred_fallthru
        _
    $region32: #{google_motion_net_forward.9} parent=5 // pred_fallthru
      _
    %p537 = scmp.le.s32.totalorder 2, %s9
    // Predicated region
    $region37: #{google_motion_net_forward.9} parent=5 // pred_check
      %p538 = pneg %p537
    $region38: #{google_motion_net_forward.9} parent=5 // pred_check_branch
      %540 = sbr.rel (%p538) target = $region40
    $region39: #{google_motion_net_forward.9} parent=5 // pred_region
      %s541 = ssub.s32 %s9, 2
      // Predicated region
      $region41: #{google_motion_net_forward.9} parent=39 // pred_check
        %p542 = pneg %p130
      $region42: #{google_motion_net_forward.9} parent=39 // pred_check_branch
        %544 = sbr.rel (%p542) target = $region44
      $region43: #{google_motion_net_forward.9} parent=39 // pred_region
        %s545 = smul.u32 8, %s20
        %p546 = scmp.lt.s32.totalorder %s545, 15
        %s547 = scalar_select %p546, %s545, 15
        %p548 = scmp.lt.s32.totalorder %s21, 0
        %s549 = scalar_select %p548, %s21, 0
        %s550 = sadd.s32 %s549, %s547
        %s551 = smul.addr %s550, 4
        %s552 = scalar_lea.vmem %s3, %s551
      $region44: #{google_motion_net_forward.9} parent=39 // pred_fallthru
        _
    $region40: #{google_motion_net_forward.9} parent=5 // pred_fallthru
      _
  $region6: #{google_motion_net_forward.9} parent=0 // loop_footer
    %s13 = sadd.s32 1, %s9
  $region7: #{google_motion_net_forward.9} parent=0 // loop_footer_branch
    %8 = sbr.rel target = $region3
  $region8: #{google_motion_net_forward.9} parent=0 // loop_exit
    _

// kernel: google_motion_net_forward.10
$region0: #{google_motion_net_forward.10}
  #allocation0 [shape = 'u32[]', space=smem, size = 0x4, offset = 0x4, fixed_abs, tag = 'smem constant byte address 0x4 - core index']
  #allocation1 [shape = 'u32[144,128]{1,0:T(1,128)}', space=vmem, size = 0x12000, scoped, tag = 'internal scratch']
  %s0 = inlined_call_operand.vmem [shape: bf16[128,32], index: 0, kind: input, shape index: {}]
  %s1 = inlined_call_operand.vmem [shape: bf16[32,128], index: 1, kind: input, shape index: {}]
  %s2 = inlined_call_operand.vmem [shape: f32[1,128], index: 2, kind: input, shape index: {}]
  %s3 = inlined_call_operand.vmem [shape: f32[128,128], index: 3, kind: input, shape index: {}]
  %s4 = inlined_call_operand.vmem [shape: f32[128,128], index: 4, kind: output, shape index: {}]
  %s5 = sld [smem:[#allocation0]]
  $region49: #{google_motion_net_forward.10} parent=0
    _
  %s7 = ssub.s32 1, %s5
  %s8 = scalar_select 0, %s7, %s5
  loop: start=0, step=1, limit=4
  $region2: #{google_motion_net_forward.10} parent=0 // loop_pre_header
    _
  $region3: #{google_motion_net_forward.10} parent=0 // loop_header
    %s10 = sphi 0, %s14
    %p11 = scmp.ge.s32.totalorder %s10, 4
    %s17 = sphi 0, %s29
    %s18 = sphi 0, %s25
    %s19 = sphi 0, %s17
    %s20 = sphi 0, %s18
    %s21 = sphi 0, %s19
    %s22 = sphi 0, %s20
    %s32 = sphi 0, %s34
    %s35 = sphi 0, %s32
    %s36 = sphi 0, %s35
    %s52 = sphi 0, %s36
    %s58 = sphi 0, %s60
    %s61 = sphi 0, %s58
    %s62 = sphi 0, %s61
    %s78 = sphi 0, %s62
    %s84 = sphi 0, %s86
    %s87 = sphi 0, %s84
    %s88 = sphi 0, %s87
    %s104 = sphi 0, %s88
    %s112 = sphi 0, %s114
    %s115 = sphi 0, %s112
    %s116 = sphi 0, %s115
    %s132 = sphi 0, %s116
    %s140 = sphi 0, %s142
    %s143 = sphi 0, %s140
    %s144 = sphi 0, %s143
    %s160 = sphi 0, %s144
  $region4: #{google_motion_net_forward.10} parent=0 // loop_header_branch
    %13 = sbr.rel (%p11) target = $region8
  $region5: #{google_motion_net_forward.10} parent=0 // loop_body
    %s15 = ssub.s32 %s10, 1
    %s16 = ssub.s32 %s10, 2
    %s23 = sadd.s32 1, %s18
    %p24 = scmp.ge.s32.totalorder %s23, 1
    %s25 = scalar_select %p24, 0, %s23
    %s26 = sadd.s32 1, %s17
    %s27 = scalar_select %p24, %s26, %s17
    %p28 = scmp.ge.s32.totalorder %s27, 2
    %s29 = scalar_select %p28, 0, %s27
    %s30 = ssub.s32 %s17, %s29
    %p31 = scmp.eq.s32.totalorder %s30, 0
    %s33 = sadd.s32 %s32, 1
    %s34 = scalar_select %p31, %s32, %s33
    %p37 = pneg %p31
    %p38 = scmp.eq.s32.totalorder %s10, 1
    %p39 = por %p37, %p38
    %p40 = scmp.ne.s32.totalorder %s32, %s35
    %p41 = scmp.eq.s32.totalorder %s10, 0
    %p42 = por %p40, %p41
    %p43 = scmp.ne.s32.totalorder %s32, %s35
    %p44 = scmp.eq.s32.totalorder %s15, 1
    %p45 = por %p43, %p44
    %p46 = scmp.ne.s32.totalorder %s35, %s36
    %p47 = scmp.eq.s32.totalorder %s15, 0
    %p48 = por %p46, %p47
    %p49 = scmp.ne.s32.totalorder %s35, %s36
    %p50 = scmp.eq.s32.totalorder %s16, 1
    %p51 = por %p49, %p50
    %p53 = scmp.ne.s32.totalorder %s36, %s52
    %p54 = scmp.eq.s32.totalorder %s16, 0
    %p55 = por %p53, %p54
    %s56 = ssub.s32 %s18, %s25
    %p57 = scmp.eq.s32.totalorder %s56, 0
    %s59 = sadd.s32 %s58, 1
    %s60 = scalar_select %p57, %s58, %s59
    %p63 = pneg %p57
    %p64 = scmp.eq.s32.totalorder %s10, 1
    %p65 = por %p63, %p64
    %p66 = scmp.ne.s32.totalorder %s58, %s61
    %p67 = scmp.eq.s32.totalorder %s10, 0
    %p68 = por %p66, %p67
    %p69 = scmp.ne.s32.totalorder %s58, %s61
    %p70 = scmp.eq.s32.totalorder %s15, 1
    %p71 = por %p69, %p70
    %p72 = scmp.ne.s32.totalorder %s61, %s62
    %p73 = scmp.eq.s32.totalorder %s15, 0
    %p74 = por %p72, %p73
    %p75 = scmp.ne.s32.totalorder %s61, %s62
    %p76 = scmp.eq.s32.totalorder %s16, 1
    %p77 = por %p75, %p76
    %p79 = scmp.ne.s32.totalorder %s62, %s78
    %p80 = scmp.eq.s32.totalorder %s16, 0
    %p81 = por %p79, %p80
    %s82 = ssub.s32 %s18, %s25
    %p83 = scmp.eq.s32.totalorder %s82, 0
    %s85 = sadd.s32 %s84, 1
    %s86 = scalar_select %p83, %s84, %s85
    %p89 = pneg %p83
    %p90 = scmp.eq.s32.totalorder %s10, 1
    %p91 = por %p89, %p90
    %p92 = scmp.ne.s32.totalorder %s84, %s87
    %p93 = scmp.eq.s32.totalorder %s10, 0
    %p94 = por %p92, %p93
    %p95 = scmp.ne.s32.totalorder %s84, %s87
    %p96 = scmp.eq.s32.totalorder %s15, 1
    %p97 = por %p95, %p96
    %p98 = scmp.ne.s32.totalorder %s87, %s88
    %p99 = scmp.eq.s32.totalorder %s15, 0
    %p100 = por %p98, %p99
    %p101 = scmp.ne.s32.totalorder %s87, %s88
    %p102 = scmp.eq.s32.totalorder %s16, 1
    %p103 = por %p101, %p102
    %p105 = scmp.ne.s32.totalorder %s88, %s104
    %p106 = scmp.eq.s32.totalorder %s16, 0
    %p107 = por %p105, %p106
    %s108 = ssub.s32 %s17, %s29
    %s109 = ssub.s32 %s18, %s25
    %s110 = sor.u32 %s108, %s109
    %p111 = scmp.eq.s32.totalorder %s110, 0
    %s113 = sadd.s32 %s112, 1
    %s114 = scalar_select %p111, %s112, %s113
    %p117 = pneg %p111
    %p118 = scmp.eq.s32.totalorder %s10, 1
    %p119 = por %p117, %p118
    %p120 = scmp.ne.s32.totalorder %s112, %s115
    %p121 = scmp.eq.s32.totalorder %s10, 0
    %p122 = por %p120, %p121
    %p123 = scmp.ne.s32.totalorder %s112, %s115
    %p124 = scmp.eq.s32.totalorder %s15, 1
    %p125 = por %p123, %p124
    %p126 = scmp.ne.s32.totalorder %s115, %s116
    %p127 = scmp.eq.s32.totalorder %s15, 0
    %p128 = por %p126, %p127
    %p129 = scmp.ne.s32.totalorder %s115, %s116
    %p130 = scmp.eq.s32.totalorder %s16, 1
    %p131 = por %p129, %p130
    %p133 = scmp.ne.s32.totalorder %s116, %s132
    %p134 = scmp.eq.s32.totalorder %s16, 0
    %p135 = por %p133, %p134
    %s136 = ssub.s32 %s17, %s29
    %s137 = ssub.s32 %s18, %s25
    %s138 = sor.u32 %s136, %s137
    %p139 = scmp.eq.s32.totalorder %s138, 0
    %s141 = sadd.s32 %s140, 1
    %s142 = scalar_select %p139, %s140, %s141
    %p145 = pneg %p139
    %p146 = scmp.eq.s32.totalorder %s10, 1
    %p147 = por %p145, %p146
    %p148 = scmp.ne.s32.totalorder %s140, %s143
    %p149 = scmp.eq.s32.totalorder %s10, 0
    %p150 = por %p148, %p149
    %p151 = scmp.ne.s32.totalorder %s140, %s143
    %p152 = scmp.eq.s32.totalorder %s15, 1
    %p153 = por %p151, %p152
    %p154 = scmp.ne.s32.totalorder %s143, %s144
    %p155 = scmp.eq.s32.totalorder %s15, 0
    %p156 = por %p154, %p155
    %p157 = scmp.ne.s32.totalorder %s143, %s144
    %p158 = scmp.eq.s32.totalorder %s16, 1
    %p159 = por %p157, %p158
    %p161 = scmp.ne.s32.totalorder %s144, %s160
    %p162 = scmp.eq.s32.totalorder %s16, 0
    %p163 = por %p161, %p162
    %p164 = scmp.le.s32.totalorder 1, %s10
    %p165 = scmp.lt.s32.totalorder %s10, 3
    %p166 = pnand %p164, %p165
    %p167 = pneg %p166
    // Predicated region
    $region9: #{google_motion_net_forward.10} parent=5 // pred_check
      _
    $region10: #{google_motion_net_forward.10} parent=5 // pred_check_branch
      %169 = sbr.rel (%p166) target = $region12
    $region11: #{google_motion_net_forward.10} parent=5 // pred_region
      %s170 = ssub.s32 %s10, 1
      // Predicated region
      $region13: #{google_motion_net_forward.10} parent=11 // pred_check
        %p171 = pneg %p74
      $region14: #{google_motion_net_forward.10} parent=11 // pred_check_branch
        %173 = sbr.rel (%p171) target = $region16
      $region15: #{google_motion_net_forward.10} parent=11 // pred_region
        %p174 = scmp.lt.s32.totalorder %s20, 0
        %s175 = scalar_select %p174, %s20, 0
        %s176 = smul.addr %s175, 4
        %s177 = scalar_lea.vmem %s1, %s176
      $region16: #{google_motion_net_forward.10} parent=11 // pred_fallthru
        _
      // Predicated region
      $region17: #{google_motion_net_forward.10} parent=11 // pred_check
        %p178 = pneg %p100
      $region18: #{google_motion_net_forward.10} parent=11 // pred_check_branch
        %180 = sbr.rel (%p178) target = $region20
      $region19: #{google_motion_net_forward.10} parent=11 // pred_region
        %p181 = scmp.lt.s32.totalorder %s20, 0
        %s182 = scalar_select %p181, %s20, 0
        %s183 = scalar_lea.vmem %s2, %s182
      $region20: #{google_motion_net_forward.10} parent=11 // pred_fallthru
        _
    $region12: #{google_motion_net_forward.10} parent=5 // pred_fallthru
      _
    %p184 = scmp.lt.s32.totalorder %s10, 2
    // Predicated region
    $region21: #{google_motion_net_forward.10} parent=5 // pred_check
      %p185 = pneg %p184
    $region22: #{google_motion_net_forward.10} parent=5 // pred_check_branch
      %187 = sbr.rel (%p185) target = $region24
    $region23: #{google_motion_net_forward.10} parent=5 // pred_region
      // Predicated region
      $region25: #{google_motion_net_forward.10} parent=23 // pred_check
        %p188 = pneg %p42
      $region26: #{google_motion_net_forward.10} parent=23 // pred_check_branch
        %190 = sbr.rel (%p188) target = $region28
      $region27: #{google_motion_net_forward.10} parent=23 // pred_region
        %s191 = smul.u32 8, %s17
        %p192 = scmp.lt.s32.totalorder %s191, 15
        %s193 = scalar_select %p192, %s191, 15
        %s194 = smul.addr %s193, 4
        %s195 = scalar_lea.vmem %s0, %s194
        %s196 = smul.u32 8, %s17
      $region28: #{google_motion_net_forward.10} parent=23 // pred_fallthru
        _
      // Predicated region
      $region29: #{google_motion_net_forward.10} parent=23 // pred_check
        %p197 = pneg %p122
      $region30: #{google_motion_net_forward.10} parent=23 // pred_check_branch
        %199 = sbr.rel (%p197) target = $region32
      $region31: #{google_motion_net_forward.10} parent=23 // pred_region
        %s200 = smul.u32 8, %s17
        %p201 = scmp.lt.s32.totalorder %s200, 15
        %s202 = scalar_select %p201, %s200, 15
        %p203 = scmp.lt.s32.totalorder %s18, 0
        %s204 = scalar_select %p203, %s18, 0
        %s205 = sadd.s32 %s204, %s202
        %s206 = smul.addr %s205, 8
        %s207 = scalar_lea.vmem %s3, %s206
        %s208 = smul.u32 8, %s17
      $region32: #{google_motion_net_forward.10} parent=23 // pred_fallthru
        _
    $region24: #{google_motion_net_forward.10} parent=5 // pred_fallthru
      _
    %p209 = scmp.le.s32.totalorder 1, %s10
    %p210 = scmp.lt.s32.totalorder %s10, 3
    %p211 = pnand %p209, %p210
    %p212 = pneg %p211
    // Predicated region
    $region33: #{google_motion_net_forward.10} parent=5 // pred_check
      _
    $region34: #{google_motion_net_forward.10} parent=5 // pred_check_branch
      %214 = sbr.rel (%p211) target = $region36
    $region35: #{google_motion_net_forward.10} parent=5 // pred_region
      %s215 = ssub.s32 %s10, 1
      %s216 = smul.u32 8, %s19
      %p217 = scmp.lt.s32.totalorder %s216, 15
      %s218 = scalar_select %p217, %s216, 15
      %s219 = smul.addr %s218, 4
      %s220 = scalar_lea.vmem %s0, %s219
      %p221 = pneg %p48
      %p222 = pneg %p45
      %p223 = scmp.lt.s32.totalorder %s20, 0
      %s224 = scalar_select %p223, %s20, 0
      %s225 = smul.addr %s224, 4
      %s226 = scalar_lea.vmem %s1, %s225
      %p227 = pneg %p74
      %p228 = pneg %p71
      %p229 = scmp.lt.s32.totalorder %s20, 0
      %s230 = scalar_select %p229, %s20, 0
      %s231 = scalar_lea.vmem %s2, %s230
      %p232 = pneg %p100
      %p233 = pneg %p97
      %s234 = smul.u32 8, %s19
      %p235 = scmp.lt.s32.totalorder %s234, 15
      %s236 = scalar_select %p235, %s234, 15
      %p237 = scmp.lt.s32.totalorder %s20, 0
      %s238 = scalar_select %p237, %s20, 0
      %s239 = sadd.s32 %s238, %s236
      %s240 = smul.addr %s239, 8
      %s241 = scalar_lea.vmem %s3, %s240
      %p242 = pneg %p128
      %p243 = pneg %p125
      %p244 = pneg %p156
      %p245 = pneg %p153
      %s246 = smul.u32 8, %s19
      %p247 = scmp.lt.s32.totalorder %s246, 15
      %s248 = scalar_select %p247, %s246, 15
      %p249 = scmp.lt.s32.totalorder %s20, 0
      %s250 = scalar_select %p249, %s20, 0
      %s251 = sadd.s32 %s250, %s248
      %s252 = smul.addr %s251, 8
      %s253 = scalar_lea.vmem %s4, %s252
      %s254 = smul.u32 8, %s19
      %p255 = scmp.lt.s32.totalorder %s254, 15
      %s256 = scalar_select %p255, %s254, 15
      %s257 = smul.addr %s256, 4
      %s258 = scalar_lea.vmem %s0, %s257
      %s259 = smul.u32 8, %s19
      %p260 = scmp.lt.s32.totalorder %s20, 0
      %s261 = scalar_select %p260, %s20, 0
      %s262 = smul.addr %s261, 4
      %s263 = scalar_lea.vmem %s1, %s262
      %p264 = scmp.lt.s32.totalorder %s20, 0
      %s265 = scalar_select %p264, %s20, 0
      %s266 = scalar_lea.vmem %s2, %s265
      %s267 = smul.u32 8, %s19
      %p268 = scmp.lt.s32.totalorder %s267, 15
      %s269 = scalar_select %p268, %s267, 15
      %p270 = scmp.lt.s32.totalorder %s20, 0
      %s271 = scalar_select %p270, %s20, 0
      %s272 = sadd.s32 %s271, %s269
      %s273 = smul.addr %s272, 8
      %s274 = scalar_lea.vmem %s3, %s273
      %s275 = smul.u32 8, %s19
      %s276 = smul.u32 8, %s19
      %p277 = scmp.lt.s32.totalorder %s276, 15
      %s278 = scalar_select %p277, %s276, 15
      %p279 = scmp.lt.s32.totalorder %s20, 0
      %s280 = scalar_select %p279, %s20, 0
      %s281 = sadd.s32 %s280, %s278
      %s282 = smul.addr %s281, 8
      %s283 = scalar_lea.vmem %s4, %s282
      %s284 = smul.u32 8, %s19
      %v286 = vld [vmem:[%s258] sm:$0xf]
      %v287 = vld [vmem:[%s258 + $0x4] sm:$0xf]
      %v288 = vld [vmem:[%s258 + $0x8] sm:$0xf]
      %v289 = vld [vmem:[%s258 + $0xc] sm:$0xf]
      %v290 = vld [vmem:[%s258 + $0x10] sm:$0xf]
      %v291 = vld [vmem:[%s258 + $0x14] sm:$0xf]
      %v292 = vld [vmem:[%s258 + $0x18] sm:$0xf]
      %v293 = vld [vmem:[%s258 + $0x1c] sm:$0xf]
      %v294 = vld [vmem:[%s263] sm:$0xf]
      %v295 = vld [vmem:[%s263 + $0x4] sm:$0xf]
      %v296 = vld [vmem:[%s263 + $0x8] sm:$0xf]
      %v297 = vld [vmem:[%s263 + $0xc] sm:$0xf]
      %v298 = vld [vmem:[%s266] sm:$0x1]
      %v300 = vlaneseq
      %v301 = vshrl.u32 %v300, 7
      %v302 = vsub.s32 0, %v301
      %v303 = vrot.slane %v298, %v302
      %v313 = vunpack.c.l.b16 %v286
      %v314 = vunpack.c.l.b16 %v287
      %v315 = vunpack.c.l.b16 %v288
      %v316 = vunpack.c.l.b16 %v289
      %v317 = vunpack.c.l.b16 %v290
      %v318 = vunpack.c.l.b16 %v291
      %v319 = vunpack.c.l.b16 %v292
      %v320 = vunpack.c.l.b16 %v293
      %v321 = vpack.c.b16 %v314, %v313
      %v322 = vpack.c.b16 %v316, %v315
      %v323 = vpack.c.b16 %v318, %v317
      %v324 = vpack.c.b16 %v320, %v319
      %v329 = vunpack.c.l.b16 %v294
      %v330 = vunpack.c.l.b16 %v295
      %v331 = vunpack.c.l.b16 %v296
      %v332 = vunpack.c.l.b16 %v297
      %v333 = vpack.c.b16 %v330, %v329
      %v334 = vpack.c.b16 %v332, %v331
      %vm337 = vcmask 261120
      %v339 = vsel %vm337, %v321, 0
      %v342 = vsel %vm337, %v322, 0
      %v345 = vsel %vm337, %v323, 0
      %v348 = vsel %vm337, %v324, 0
      %350 = vmatprep.subr.bf16.mxu0 0
      %351 = vmatpush1.bf16.msra.mxu0 %v333
      %352 = vmatprep.subr.bf16.mxu0 0
      %353 = vmatpush1.bf16.msra.mxu0 %v334
      %354 = vmatprep.subr.bf16.mxu0 0
      %355 = vmatpush1.bf16.msra.mxu0 0
      %356 = vmatprep.subr.bf16.mxu0 0
      %357 = vmatpush1.bf16.msra.mxu0 0
      %358 = vmatprep.subr.bf16.mxu0 0
      %359 = vmatpush1.bf16.msra.mxu0 0
      %360 = vmatprep.subr.bf16.mxu0 0
      %361 = vmatpush1.bf16.msra.mxu0 0
      %362 = vmatprep.subr.bf16.mxu0 0
      %363 = vmatpush1.bf16.msra.mxu0 0
      %364 = vmatprep.subr.bf16.mxu0 0
      %365 = vmatpush1.bf16.msra.mxu0 0
      %366 = vmatprep.subr.bf16.mxu0 0
      %367 = vmatpush1.bf16.msra.mxu0 0
      %368 = vmatprep.subr.bf16.mxu0 0
      %369 = vmatpush1.bf16.msra.mxu0 0
      %370 = vmatprep.subr.bf16.mxu0 0
      %371 = vmatpush1.bf16.msra.mxu0 0
      %372 = vmatprep.subr.bf16.mxu0 0
      %373 = vmatpush1.bf16.msra.mxu0 0
      %374 = vmatprep.subr.bf16.mxu0 0
      %375 = vmatpush1.bf16.msra.mxu0 0
      %376 = vmatprep.subr.bf16.mxu0 0
      %377 = vmatpush1.bf16.msra.mxu0 0
      %378 = vmatprep.subr.bf16.mxu0 0
      %379 = vmatpush1.bf16.msra.mxu0 0
      %380 = vmatprep.subr.bf16.mxu0 0
      %381 = vmatpush1.bf16.msra.mxu0 0
      %382 = vmatprep.mubr.bf16.mxu0 0
      %383 = vmatmul.mubr.bf16.gmra.mrb[0].mxu0 %v339
      %v384 = vpop.f32.mrb[0].mxu0
      %v385 = vadd.f32 %v303, %v384
      %v386 = vpop.f32.mrb[0].mxu0
      %v387 = vpop.f32.mrb[0].mxu0
      %v388 = vadd.f32 %v303, %v387
      %v389 = vpop.f32.mrb[0].mxu0
      %390 = vmatprep.mubr.bf16.mxu0 0
      %391 = vmatmul.mubr.bf16.gmra.mrb[0].mxu0 %v342
      %v392 = vpop.f32.mrb[0].mxu0
      %v393 = vadd.f32 %v303, %v392
      %v394 = vpop.f32.mrb[0].mxu0
      %v395 = vpop.f32.mrb[0].mxu0
      %v396 = vadd.f32 %v303, %v395
      %v397 = vpop.f32.mrb[0].mxu0
      %398 = vmatprep.mubr.bf16.mxu0 0
      %399 = vmatmul.mubr.bf16.gmra.mrb[0].mxu0 %v345
      %v400 = vpop.f32.mrb[0].mxu0
      %v401 = vadd.f32 %v303, %v400
      %v402 = vpop.f32.mrb[0].mxu0
      %v403 = vpop.f32.mrb[0].mxu0
      %v404 = vadd.f32 %v303, %v403
      %v405 = vpop.f32.mrb[0].mxu0
      %406 = vmatprep.mubr.bf16.mxu0 0
      %407 = vmatmul.mubr.bf16.gmra.mrb[0].mxu0 %v348
      %v408 = vpop.f32.mrb[0].mxu0
      %v409 = vadd.f32 %v303, %v408
      %v410 = vpop.f32.mrb[0].mxu0
      %v411 = vpop.f32.mrb[0].mxu0
      %v412 = vadd.f32 %v303, %v411
      %v413 = vpop.f32.mrb[0].mxu0
      %414 = vdwg.mxu0
      %v415 = vmax.f32 %v385, 0.0
      %v416 = vmax.f32 %v388, 0.0
      %v417 = vmax.f32 %v393, 0.0
      %v418 = vmax.f32 %v396, 0.0
      %v419 = vmax.f32 %v401, 0.0
      %v420 = vmax.f32 %v404, 0.0
      %v421 = vmax.f32 %v409, 0.0
      %v422 = vmax.f32 %v412, 0.0
      %v423 = vld [vmem:[%s274] sm:$0xff]
      %v424 = vld [vmem:[%s274 + $0x8] sm:$0xff]
      %v425 = vld [vmem:[%s274 + $0x10] sm:$0xff]
      %v426 = vld [vmem:[%s274 + $0x18] sm:$0xff]
      %v427 = vld [vmem:[%s274 + $0x20] sm:$0xff]
      %v428 = vld [vmem:[%s274 + $0x28] sm:$0xff]
      %v429 = vld [vmem:[%s274 + $0x30] sm:$0xff]
      %v430 = vld [vmem:[%s274 + $0x38] sm:$0xff]
      %v431 = vadd.f32 %v415, %v423
      %v432 = vadd.f32 %v416, %v424
      %v433 = vadd.f32 %v417, %v425
      %v434 = vadd.f32 %v418, %v426
      %v435 = vadd.f32 %v419, %v427
      %v436 = vadd.f32 %v420, %v428
      %v437 = vadd.f32 %v421, %v429
      %v438 = vadd.f32 %v422, %v430
      %439 = vst [vmem:[%s283] sm:$0xff] %v431
      %440 = vst [vmem:[%s283 + $0x8] sm:$0xff] %v432
      %441 = vst [vmem:[%s283 + $0x10] sm:$0xff] %v433
      %442 = vst [vmem:[%s283 + $0x18] sm:$0xff] %v434
      %443 = vst [vmem:[%s283 + $0x20] sm:$0xff] %v435
      %444 = vst [vmem:[%s283 + $0x28] sm:$0xff] %v436
      %445 = vst [vmem:[%s283 + $0x30] sm:$0xff] %v437
      %446 = vst [vmem:[%s283 + $0x38] sm:$0xff] %v438
      %s447 = smul.u32 8, %s19
      %p448 = scmp.lt.s32.totalorder %s447, 15
      %s449 = scalar_select %p448, %s447, 15
      %p450 = scmp.lt.s32.totalorder %s20, 0
      %s451 = scalar_select %p450, %s20, 0
      %s452 = sadd.s32 %s451, %s449
      %s453 = smul.addr %s452, 8
      %s454 = scalar_lea.vmem %s4, %s453
      // Predicated region
      $region37: #{google_motion_net_forward.10} parent=35 // pred_check
        %p455 = pneg %p153
      $region38: #{google_motion_net_forward.10} parent=35 // pred_check_branch
        %457 = sbr.rel (%p455) target = $region40
      $region39: #{google_motion_net_forward.10} parent=35 // pred_region
        %s458 = smul.u32 8, %s19
      $region40: #{google_motion_net_forward.10} parent=35 // pred_fallthru
        _
    $region36: #{google_motion_net_forward.10} parent=5 // pred_fallthru
      _
    %p459 = scmp.le.s32.totalorder 2, %s10
    // Predicated region
    $region41: #{google_motion_net_forward.10} parent=5 // pred_check
      %p460 = pneg %p459
    $region42: #{google_motion_net_forward.10} parent=5 // pred_check_branch
      %462 = sbr.rel (%p460) target = $region44
    $region43: #{google_motion_net_forward.10} parent=5 // pred_region
      %s463 = ssub.s32 %s10, 2
      // Predicated region
      $region45: #{google_motion_net_forward.10} parent=43 // pred_check
        %p464 = pneg %p159
      $region46: #{google_motion_net_forward.10} parent=43 // pred_check_branch
        %466 = sbr.rel (%p464) target = $region48
      $region47: #{google_motion_net_forward.10} parent=43 // pred_region
        %s467 = smul.u32 8, %s21
        %p468 = scmp.lt.s32.totalorder %s467, 15
        %s469 = scalar_select %p468, %s467, 15
        %p470 = scmp.lt.s32.totalorder %s22, 0
        %s471 = scalar_select %p470, %s22, 0
        %s472 = sadd.s32 %s471, %s469
        %s473 = smul.addr %s472, 8
        %s474 = scalar_lea.vmem %s4, %s473
      $region48: #{google_motion_net_forward.10} parent=43 // pred_fallthru
        _
    $region44: #{google_motion_net_forward.10} parent=5 // pred_fallthru
      _
  $region6: #{google_motion_net_forward.10} parent=0 // loop_footer
    %s14 = sadd.s32 1, %s10
  $region7: #{google_motion_net_forward.10} parent=0 // loop_footer_branch
    %9 = sbr.rel target = $region3
  $region8: #{google_motion_net_forward.10} parent=0 // loop_exit
    _

// kernel: google_motion_net_forward.11
$region0: #{google_motion_net_forward.11}
  #allocation0 [shape = 'u32[]', space=smem, size = 0x4, offset = 0x4, fixed_abs, tag = 'smem constant byte address 0x4 - core index']
  #allocation1 [shape = 'u32[144,128]{1,0:T(1,128)}', space=vmem, size = 0x12000, scoped, tag = 'internal scratch']
  %s0 = inlined_call_operand.vmem [shape: bf16[512,128], index: 0, kind: input, shape index: {}]
  %s1 = inlined_call_operand.vmem [shape: bf16[128,128], index: 1, kind: input, shape index: {}]
  %s2 = inlined_call_operand.vmem [shape: f32[1,128], index: 2, kind: input, shape index: {}]
  %s3 = inlined_call_operand.vmem [shape: bf16[512,128], index: 3, kind: output, shape index: {}]
  %s4 = sld [smem:[#allocation0]]
  $region45: #{google_motion_net_forward.11} parent=0
    _
  %s6 = ssub.s32 1, %s4
  %s7 = scalar_select 0, %s6, %s4
  loop: start=0, step=1, limit=4
  $region2: #{google_motion_net_forward.11} parent=0 // loop_pre_header
    _
  $region3: #{google_motion_net_forward.11} parent=0 // loop_header
    %s9 = sphi 0, %s13
    %p10 = scmp.ge.s32.totalorder %s9, 4
    %s16 = sphi 0, %s28
    %s17 = sphi 0, %s24
    %s18 = sphi 0, %s16
    %s19 = sphi 0, %s17
    %s20 = sphi 0, %s18
    %s21 = sphi 0, %s19
    %s31 = sphi 0, %s33
    %s34 = sphi 0, %s31
    %s35 = sphi 0, %s34
    %s51 = sphi 0, %s35
    %s57 = sphi 0, %s59
    %s60 = sphi 0, %s57
    %s61 = sphi 0, %s60
    %s77 = sphi 0, %s61
    %s83 = sphi 0, %s85
    %s86 = sphi 0, %s83
    %s87 = sphi 0, %s86
    %s103 = sphi 0, %s87
    %s111 = sphi 0, %s113
    %s114 = sphi 0, %s111
    %s115 = sphi 0, %s114
    %s131 = sphi 0, %s115
  $region4: #{google_motion_net_forward.11} parent=0 // loop_header_branch
    %12 = sbr.rel (%p10) target = $region8
  $region5: #{google_motion_net_forward.11} parent=0 // loop_body
    %s14 = ssub.s32 %s9, 1
    %s15 = ssub.s32 %s9, 2
    %s22 = sadd.s32 1, %s17
    %p23 = scmp.ge.s32.totalorder %s22, 1
    %s24 = scalar_select %p23, 0, %s22
    %s25 = sadd.s32 1, %s16
    %s26 = scalar_select %p23, %s25, %s16
    %p27 = scmp.ge.s32.totalorder %s26, 2
    %s28 = scalar_select %p27, 0, %s26
    %s29 = ssub.s32 %s16, %s28
    %p30 = scmp.eq.s32.totalorder %s29, 0
    %s32 = sadd.s32 %s31, 1
    %s33 = scalar_select %p30, %s31, %s32
    %p36 = pneg %p30
    %p37 = scmp.eq.s32.totalorder %s9, 1
    %p38 = por %p36, %p37
    %p39 = scmp.ne.s32.totalorder %s31, %s34
    %p40 = scmp.eq.s32.totalorder %s9, 0
    %p41 = por %p39, %p40
    %p42 = scmp.ne.s32.totalorder %s31, %s34
    %p43 = scmp.eq.s32.totalorder %s14, 1
    %p44 = por %p42, %p43
    %p45 = scmp.ne.s32.totalorder %s34, %s35
    %p46 = scmp.eq.s32.totalorder %s14, 0
    %p47 = por %p45, %p46
    %p48 = scmp.ne.s32.totalorder %s34, %s35
    %p49 = scmp.eq.s32.totalorder %s15, 1
    %p50 = por %p48, %p49
    %p52 = scmp.ne.s32.totalorder %s35, %s51
    %p53 = scmp.eq.s32.totalorder %s15, 0
    %p54 = por %p52, %p53
    %s55 = ssub.s32 %s17, %s24
    %p56 = scmp.eq.s32.totalorder %s55, 0
    %s58 = sadd.s32 %s57, 1
    %s59 = scalar_select %p56, %s57, %s58
    %p62 = pneg %p56
    %p63 = scmp.eq.s32.totalorder %s9, 1
    %p64 = por %p62, %p63
    %p65 = scmp.ne.s32.totalorder %s57, %s60
    %p66 = scmp.eq.s32.totalorder %s9, 0
    %p67 = por %p65, %p66
    %p68 = scmp.ne.s32.totalorder %s57, %s60
    %p69 = scmp.eq.s32.totalorder %s14, 1
    %p70 = por %p68, %p69
    %p71 = scmp.ne.s32.totalorder %s60, %s61
    %p72 = scmp.eq.s32.totalorder %s14, 0
    %p73 = por %p71, %p72
    %p74 = scmp.ne.s32.totalorder %s60, %s61
    %p75 = scmp.eq.s32.totalorder %s15, 1
    %p76 = por %p74, %p75
    %p78 = scmp.ne.s32.totalorder %s61, %s77
    %p79 = scmp.eq.s32.totalorder %s15, 0
    %p80 = por %p78, %p79
    %s81 = ssub.s32 %s17, %s24
    %p82 = scmp.eq.s32.totalorder %s81, 0
    %s84 = sadd.s32 %s83, 1
    %s85 = scalar_select %p82, %s83, %s84
    %p88 = pneg %p82
    %p89 = scmp.eq.s32.totalorder %s9, 1
    %p90 = por %p88, %p89
    %p91 = scmp.ne.s32.totalorder %s83, %s86
    %p92 = scmp.eq.s32.totalorder %s9, 0
    %p93 = por %p91, %p92
    %p94 = scmp.ne.s32.totalorder %s83, %s86
    %p95 = scmp.eq.s32.totalorder %s14, 1
    %p96 = por %p94, %p95
    %p97 = scmp.ne.s32.totalorder %s86, %s87
    %p98 = scmp.eq.s32.totalorder %s14, 0
    %p99 = por %p97, %p98
    %p100 = scmp.ne.s32.totalorder %s86, %s87
    %p101 = scmp.eq.s32.totalorder %s15, 1
    %p102 = por %p100, %p101
    %p104 = scmp.ne.s32.totalorder %s87, %s103
    %p105 = scmp.eq.s32.totalorder %s15, 0
    %p106 = por %p104, %p105
    %s107 = ssub.s32 %s16, %s28
    %s108 = ssub.s32 %s17, %s24
    %s109 = sor.u32 %s107, %s108
    %p110 = scmp.eq.s32.totalorder %s109, 0
    %s112 = sadd.s32 %s111, 1
    %s113 = scalar_select %p110, %s111, %s112
    %p116 = pneg %p110
    %p117 = scmp.eq.s32.totalorder %s9, 1
    %p118 = por %p116, %p117
    %p119 = scmp.ne.s32.totalorder %s111, %s114
    %p120 = scmp.eq.s32.totalorder %s9, 0
    %p121 = por %p119, %p120
    %p122 = scmp.ne.s32.totalorder %s111, %s114
    %p123 = scmp.eq.s32.totalorder %s14, 1
    %p124 = por %p122, %p123
    %p125 = scmp.ne.s32.totalorder %s114, %s115
    %p126 = scmp.eq.s32.totalorder %s14, 0
    %p127 = por %p125, %p126
    %p128 = scmp.ne.s32.totalorder %s114, %s115
    %p129 = scmp.eq.s32.totalorder %s15, 1
    %p130 = por %p128, %p129
    %p132 = scmp.ne.s32.totalorder %s115, %s131
    %p133 = scmp.eq.s32.totalorder %s15, 0
    %p134 = por %p132, %p133
    %p135 = scmp.le.s32.totalorder 1, %s9
    %p136 = scmp.lt.s32.totalorder %s9, 3
    %p137 = pnand %p135, %p136
    %p138 = pneg %p137
    // Predicated region
    $region9: #{google_motion_net_forward.11} parent=5 // pred_check
      _
    $region10: #{google_motion_net_forward.11} parent=5 // pred_check_branch
      %140 = sbr.rel (%p137) target = $region12
    $region11: #{google_motion_net_forward.11} parent=5 // pred_region
      %s141 = ssub.s32 %s9, 1
      // Predicated region
      $region13: #{google_motion_net_forward.11} parent=11 // pred_check
        %p142 = pneg %p73
      $region14: #{google_motion_net_forward.11} parent=11 // pred_check_branch
        %144 = sbr.rel (%p142) target = $region16
      $region15: #{google_motion_net_forward.11} parent=11 // pred_region
        %p145 = scmp.lt.s32.totalorder %s19, 0
        %s146 = scalar_select %p145, %s19, 0
        %s147 = smul.addr %s146, 4
        %s148 = scalar_lea.vmem %s1, %s147
      $region16: #{google_motion_net_forward.11} parent=11 // pred_fallthru
        _
      // Predicated region
      $region17: #{google_motion_net_forward.11} parent=11 // pred_check
        %p149 = pneg %p99
      $region18: #{google_motion_net_forward.11} parent=11 // pred_check_branch
        %151 = sbr.rel (%p149) target = $region20
      $region19: #{google_motion_net_forward.11} parent=11 // pred_region
        %p152 = scmp.lt.s32.totalorder %s19, 0
        %s153 = scalar_select %p152, %s19, 0
        %s154 = scalar_lea.vmem %s2, %s153
      $region20: #{google_motion_net_forward.11} parent=11 // pred_fallthru
        _
    $region12: #{google_motion_net_forward.11} parent=5 // pred_fallthru
      _
    %p155 = scmp.lt.s32.totalorder %s9, 2
    // Predicated region
    $region21: #{google_motion_net_forward.11} parent=5 // pred_check
      %p156 = pneg %p155
    $region22: #{google_motion_net_forward.11} parent=5 // pred_check_branch
      %158 = sbr.rel (%p156) target = $region24
    $region23: #{google_motion_net_forward.11} parent=5 // pred_region
      // Predicated region
      $region25: #{google_motion_net_forward.11} parent=23 // pred_check
        %p159 = pneg %p41
      $region26: #{google_motion_net_forward.11} parent=23 // pred_check_branch
        %161 = sbr.rel (%p159) target = $region28
      $region27: #{google_motion_net_forward.11} parent=23 // pred_region
        %s162 = smul.u32 32, %s16
        %p163 = scmp.lt.s32.totalorder %s162, 63
        %s164 = scalar_select %p163, %s162, 63
        %s165 = smul.addr %s164, 4
        %s166 = scalar_lea.vmem %s0, %s165
        %s167 = smul.u32 32, %s16
      $region28: #{google_motion_net_forward.11} parent=23 // pred_fallthru
        _
    $region24: #{google_motion_net_forward.11} parent=5 // pred_fallthru
      _
    %p168 = scmp.le.s32.totalorder 1, %s9
    %p169 = scmp.lt.s32.totalorder %s9, 3
    %p170 = pnand %p168, %p169
    %p171 = pneg %p170
    // Predicated region
    $region29: #{google_motion_net_forward.11} parent=5 // pred_check
      _
    $region30: #{google_motion_net_forward.11} parent=5 // pred_check_branch
      %173 = sbr.rel (%p170) target = $region32
    $region31: #{google_motion_net_forward.11} parent=5 // pred_region
      %s174 = ssub.s32 %s9, 1
      %s175 = smul.u32 32, %s18
      %p176 = scmp.lt.s32.totalorder %s175, 63
      %s177 = scalar_select %p176, %s175, 63
      %s178 = smul.addr %s177, 4
      %s179 = scalar_lea.vmem %s0, %s178
      %p180 = pneg %p47
      %p181 = pneg %p44
      %p182 = scmp.lt.s32.totalorder %s19, 0
      %s183 = scalar_select %p182, %s19, 0
      %s184 = smul.addr %s183, 4
      %s185 = scalar_lea.vmem %s1, %s184
      %p186 = pneg %p73
      %p187 = pneg %p70
      %p188 = scmp.lt.s32.totalorder %s19, 0
      %s189 = scalar_select %p188, %s19, 0
      %s190 = scalar_lea.vmem %s2, %s189
      %p191 = pneg %p99
      %p192 = pneg %p96
      %p193 = pneg %p127
      %p194 = pneg %p124
      %s195 = smul.u32 32, %s18
      %p196 = scmp.lt.s32.totalorder %s195, 63
      %s197 = scalar_select %p196, %s195, 63
      %p198 = scmp.lt.s32.totalorder %s19, 0
      %s199 = scalar_select %p198, %s19, 0
      %s200 = sadd.s32 %s199, %s197
      %s201 = smul.addr %s200, 4
      %s202 = scalar_lea.vmem %s3, %s201
      %s203 = smul.u32 32, %s18
      %p204 = scmp.lt.s32.totalorder %s203, 63
      %s205 = scalar_select %p204, %s203, 63
      %s206 = smul.addr %s205, 4
      %s207 = scalar_lea.vmem %s0, %s206
      %s208 = smul.u32 32, %s18
      %p209 = scmp.lt.s32.totalorder %s19, 0
      %s210 = scalar_select %p209, %s19, 0
      %s211 = smul.addr %s210, 4
      %s212 = scalar_lea.vmem %s1, %s211
      %p213 = scmp.lt.s32.totalorder %s19, 0
      %s214 = scalar_select %p213, %s19, 0
      %s215 = scalar_lea.vmem %s2, %s214
      %s216 = smul.u32 32, %s18
      %p217 = scmp.lt.s32.totalorder %s216, 63
      %s218 = scalar_select %p217, %s216, 63
      %p219 = scmp.lt.s32.totalorder %s19, 0
      %s220 = scalar_select %p219, %s19, 0
      %s221 = sadd.s32 %s220, %s218
      %s222 = smul.addr %s221, 4
      %s223 = scalar_lea.vmem %s3, %s222
      %s224 = smul.u32 32, %s18
      %v226 = vld [vmem:[%s207] sm:$0xf]
      %v227 = vld [vmem:[%s207 + $0x4] sm:$0xf]
      %v228 = vld [vmem:[%s207 + $0x8] sm:$0xf]
      %v229 = vld [vmem:[%s207 + $0xc] sm:$0xf]
      %v230 = vld [vmem:[%s207 + $0x10] sm:$0xf]
      %v231 = vld [vmem:[%s207 + $0x14] sm:$0xf]
      %v232 = vld [vmem:[%s207 + $0x18] sm:$0xf]
      %v233 = vld [vmem:[%s207 + $0x1c] sm:$0xf]
      %v234 = vld [vmem:[%s207 + $0x20] sm:$0xf]
      %v235 = vld [vmem:[%s207 + $0x24] sm:$0xf]
      %v236 = vld [vmem:[%s207 + $0x28] sm:$0xf]
      %v237 = vld [vmem:[%s207 + $0x2c] sm:$0xf]
      %v238 = vld [vmem:[%s207 + $0x30] sm:$0xf]
      %v239 = vld [vmem:[%s207 + $0x34] sm:$0xf]
      %v240 = vld [vmem:[%s207 + $0x38] sm:$0xf]
      %v241 = vld [vmem:[%s207 + $0x3c] sm:$0xf]
      %v242 = vld [vmem:[%s207 + $0x40] sm:$0xf]
      %v243 = vld [vmem:[%s207 + $0x44] sm:$0xf]
      %v244 = vld [vmem:[%s207 + $0x48] sm:$0xf]
      %v245 = vld [vmem:[%s207 + $0x4c] sm:$0xf]
      %v246 = vld [vmem:[%s207 + $0x50] sm:$0xf]
      %v247 = vld [vmem:[%s207 + $0x54] sm:$0xf]
      %v248 = vld [vmem:[%s207 + $0x58] sm:$0xf]
      %v249 = vld [vmem:[%s207 + $0x5c] sm:$0xf]
      %v250 = vld [vmem:[%s207 + $0x60] sm:$0xf]
      %v251 = vld [vmem:[%s207 + $0x64] sm:$0xf]
      %v252 = vld [vmem:[%s207 + $0x68] sm:$0xf]
      %v253 = vld [vmem:[%s207 + $0x6c] sm:$0xf]
      %v254 = vld [vmem:[%s207 + $0x70] sm:$0xf]
      %v255 = vld [vmem:[%s207 + $0x74] sm:$0xf]
      %v256 = vld [vmem:[%s207 + $0x78] sm:$0xf]
      %v257 = vld [vmem:[%s207 + $0x7c] sm:$0xf]
      %v258 = vld [vmem:[%s212] sm:$0xf]
      %v259 = vld [vmem:[%s212 + $0x4] sm:$0xf]
      %v260 = vld [vmem:[%s212 + $0x8] sm:$0xf]
      %v261 = vld [vmem:[%s212 + $0xc] sm:$0xf]
      %v262 = vld [vmem:[%s212 + $0x10] sm:$0xf]
      %v263 = vld [vmem:[%s212 + $0x14] sm:$0xf]
      %v264 = vld [vmem:[%s212 + $0x18] sm:$0xf]
      %v265 = vld [vmem:[%s212 + $0x1c] sm:$0xf]
      %v266 = vld [vmem:[%s212 + $0x20] sm:$0xf]
      %v267 = vld [vmem:[%s212 + $0x24] sm:$0xf]
      %v268 = vld [vmem:[%s212 + $0x28] sm:$0xf]
      %v269 = vld [vmem:[%s212 + $0x2c] sm:$0xf]
      %v270 = vld [vmem:[%s212 + $0x30] sm:$0xf]
      %v271 = vld [vmem:[%s212 + $0x34] sm:$0xf]
      %v272 = vld [vmem:[%s212 + $0x38] sm:$0xf]
      %v273 = vld [vmem:[%s212 + $0x3c] sm:$0xf]
      %v274 = vld [vmem:[%s215] sm:$0x1]
      %v276 = vlaneseq
      %v277 = vshrl.u32 %v276, 7
      %v278 = vsub.s32 0, %v277
      %v279 = vrot.slane %v274, %v278
      %v313 = vunpack.c.l.b16 %v226
      %v314 = vunpack.c.l.b16 %v227
      %v315 = vunpack.c.l.b16 %v228
      %v316 = vunpack.c.l.b16 %v229
      %v317 = vunpack.c.l.b16 %v230
      %v318 = vunpack.c.l.b16 %v231
      %v319 = vunpack.c.l.b16 %v232
      %v320 = vunpack.c.l.b16 %v233
      %v321 = vunpack.c.l.b16 %v234
      %v322 = vunpack.c.l.b16 %v235
      %v323 = vunpack.c.l.b16 %v236
      %v324 = vunpack.c.l.b16 %v237
      %v325 = vunpack.c.l.b16 %v238
      %v326 = vunpack.c.l.b16 %v239
      %v327 = vunpack.c.l.b16 %v240
      %v328 = vunpack.c.l.b16 %v241
      %v329 = vunpack.c.l.b16 %v242
      %v330 = vunpack.c.l.b16 %v243
      %v331 = vunpack.c.l.b16 %v244
      %v332 = vunpack.c.l.b16 %v245
      %v333 = vunpack.c.l.b16 %v246
      %v334 = vunpack.c.l.b16 %v247
      %v335 = vunpack.c.l.b16 %v248
      %v336 = vunpack.c.l.b16 %v249
      %v337 = vunpack.c.l.b16 %v250
      %v338 = vunpack.c.l.b16 %v251
      %v339 = vunpack.c.l.b16 %v252
      %v340 = vunpack.c.l.b16 %v253
      %v341 = vunpack.c.l.b16 %v254
      %v342 = vunpack.c.l.b16 %v255
      %v343 = vunpack.c.l.b16 %v256
      %v344 = vunpack.c.l.b16 %v257
      %v345 = vpack.c.b16 %v314, %v313
      %v346 = vpack.c.b16 %v316, %v315
      %v347 = vpack.c.b16 %v318, %v317
      %v348 = vpack.c.b16 %v320, %v319
      %v349 = vpack.c.b16 %v322, %v321
      %v350 = vpack.c.b16 %v324, %v323
      %v351 = vpack.c.b16 %v326, %v325
      %v352 = vpack.c.b16 %v328, %v327
      %v353 = vpack.c.b16 %v330, %v329
      %v354 = vpack.c.b16 %v332, %v331
      %v355 = vpack.c.b16 %v334, %v333
      %v356 = vpack.c.b16 %v336, %v335
      %v357 = vpack.c.b16 %v338, %v337
      %v358 = vpack.c.b16 %v340, %v339
      %v359 = vpack.c.b16 %v342, %v341
      %v360 = vpack.c.b16 %v344, %v343
      %v393 = vunpack.c.l.b16 %v258
      %v394 = vunpack.c.l.b16 %v259
      %v395 = vunpack.c.l.b16 %v260
      %v396 = vunpack.c.l.b16 %v261
      %v397 = vunpack.c.l.b16 %v262
      %v398 = vunpack.c.l.b16 %v263
      %v399 = vunpack.c.l.b16 %v264
      %v400 = vunpack.c.l.b16 %v265
      %v401 = vunpack.c.l.b16 %v266
      %v402 = vunpack.c.l.b16 %v267
      %v403 = vunpack.c.l.b16 %v268
      %v404 = vunpack.c.l.b16 %v269
      %v405 = vunpack.c.l.b16 %v270
      %v406 = vunpack.c.l.b16 %v271
      %v407 = vunpack.c.l.b16 %v272
      %v408 = vunpack.c.l.b16 %v273
      %v409 = vpack.c.b16 %v394, %v393
      %v410 = vpack.c.b16 %v396, %v395
      %v411 = vpack.c.b16 %v398, %v397
      %v412 = vpack.c.b16 %v400, %v399
      %v413 = vpack.c.b16 %v402, %v401
      %v414 = vpack.c.b16 %v404, %v403
      %v415 = vpack.c.b16 %v406, %v405
      %v416 = vpack.c.b16 %v408, %v407
      %425 = vmatprep.subr.bf16.mxu0 0
      %426 = vmatpush1.bf16.msra.mxu0 %v409
      %427 = vmatprep.subr.bf16.mxu0 0
      %428 = vmatpush1.bf16.msra.mxu0 %v410
      %429 = vmatprep.subr.bf16.mxu0 0
      %430 = vmatpush1.bf16.msra.mxu0 %v411
      %431 = vmatprep.subr.bf16.mxu0 0
      %432 = vmatpush1.bf16.msra.mxu0 %v412
      %433 = vmatprep.subr.bf16.mxu0 0
      %434 = vmatpush1.bf16.msra.mxu0 %v413
      %435 = vmatprep.subr.bf16.mxu0 0
      %436 = vmatpush1.bf16.msra.mxu0 %v414
      %437 = vmatprep.subr.bf16.mxu0 0
      %438 = vmatpush1.bf16.msra.mxu0 %v415
      %439 = vmatprep.subr.bf16.mxu0 0
      %440 = vmatpush1.bf16.msra.mxu0 %v416
      %441 = vmatprep.subr.bf16.mxu0 0
      %442 = vmatpush1.bf16.msra.mxu0 0
      %443 = vmatprep.subr.bf16.mxu0 0
      %444 = vmatpush1.bf16.msra.mxu0 0
      %445 = vmatprep.subr.bf16.mxu0 0
      %446 = vmatpush1.bf16.msra.mxu0 0
      %447 = vmatprep.subr.bf16.mxu0 0
      %448 = vmatpush1.bf16.msra.mxu0 0
      %449 = vmatprep.subr.bf16.mxu0 0
      %450 = vmatpush1.bf16.msra.mxu0 0
      %451 = vmatprep.subr.bf16.mxu0 0
      %452 = vmatpush1.bf16.msra.mxu0 0
      %453 = vmatprep.subr.bf16.mxu0 0
      %454 = vmatpush1.bf16.msra.mxu0 0
      %455 = vmatprep.subr.bf16.mxu0 0
      %456 = vmatpush1.bf16.msra.mxu0 0
      %457 = vmatprep.mubr.bf16.mxu0 0
      %458 = vmatmul.mubr.bf16.gmra.mrb[0].mxu0 %v345
      %v459 = vpop.f32.mrb[0].mxu0
      %v460 = vadd.f32 %v279, %v459
      %v461 = vpop.f32.mrb[0].mxu0
      %v462 = vpop.f32.mrb[0].mxu0
      %v463 = vadd.f32 %v279, %v462
      %v464 = vpop.f32.mrb[0].mxu0
      %465 = vmatprep.mubr.bf16.mxu0 0
      %466 = vmatmul.mubr.bf16.gmra.mrb[0].mxu0 %v346
      %v467 = vpop.f32.mrb[0].mxu0
      %v468 = vadd.f32 %v279, %v467
      %v469 = vpop.f32.mrb[0].mxu0
      %v470 = vpop.f32.mrb[0].mxu0
      %v471 = vadd.f32 %v279, %v470
      %v472 = vpop.f32.mrb[0].mxu0
      %473 = vmatprep.mubr.bf16.mxu0 0
      %474 = vmatmul.mubr.bf16.gmra.mrb[0].mxu0 %v347
      %v475 = vpop.f32.mrb[0].mxu0
      %v476 = vadd.f32 %v279, %v475
      %v477 = vpop.f32.mrb[0].mxu0
      %v478 = vpop.f32.mrb[0].mxu0
      %v479 = vadd.f32 %v279, %v478
      %v480 = vpop.f32.mrb[0].mxu0
      %481 = vmatprep.mubr.bf16.mxu0 0
      %482 = vmatmul.mubr.bf16.gmra.mrb[0].mxu0 %v348
      %v483 = vpop.f32.mrb[0].mxu0
      %v484 = vadd.f32 %v279, %v483
      %v485 = vpop.f32.mrb[0].mxu0
      %v486 = vpop.f32.mrb[0].mxu0
      %v487 = vadd.f32 %v279, %v486
      %v488 = vpop.f32.mrb[0].mxu0
      %489 = vmatprep.mubr.bf16.mxu0 0
      %490 = vmatmul.mubr.bf16.gmra.mrb[0].mxu0 %v349
      %v491 = vpop.f32.mrb[0].mxu0
      %v492 = vadd.f32 %v279, %v491
      %v493 = vpop.f32.mrb[0].mxu0
      %v494 = vpop.f32.mrb[0].mxu0
      %v495 = vadd.f32 %v279, %v494
      %v496 = vpop.f32.mrb[0].mxu0
      %497 = vmatprep.mubr.bf16.mxu0 0
      %498 = vmatmul.mubr.bf16.gmra.mrb[0].mxu0 %v350
      %v499 = vpop.f32.mrb[0].mxu0
      %v500 = vadd.f32 %v279, %v499
      %v501 = vpop.f32.mrb[0].mxu0
      %v502 = vpop.f32.mrb[0].mxu0
      %v503 = vadd.f32 %v279, %v502
      %v504 = vpop.f32.mrb[0].mxu0
      %505 = vmatprep.mubr.bf16.mxu0 0
      %506 = vmatmul.mubr.bf16.gmra.mrb[0].mxu0 %v351
      %v507 = vpop.f32.mrb[0].mxu0
      %v508 = vadd.f32 %v279, %v507
      %v509 = vpop.f32.mrb[0].mxu0
      %v510 = vpop.f32.mrb[0].mxu0
      %v511 = vadd.f32 %v279, %v510
      %v512 = vpop.f32.mrb[0].mxu0
      %513 = vmatprep.mubr.bf16.mxu0 0
      %514 = vmatmul.mubr.bf16.gmra.mrb[0].mxu0 %v352
      %v515 = vpop.f32.mrb[0].mxu0
      %v516 = vadd.f32 %v279, %v515
      %v517 = vpop.f32.mrb[0].mxu0
      %v518 = vpop.f32.mrb[0].mxu0
      %v519 = vadd.f32 %v279, %v518
      %v520 = vpop.f32.mrb[0].mxu0
      %521 = vmatprep.mubr.bf16.mxu0 0
      %522 = vmatmul.mubr.bf16.gmra.mrb[0].mxu0 %v353
      %v523 = vpop.f32.mrb[0].mxu0
      %v524 = vadd.f32 %v279, %v523
      %v525 = vpop.f32.mrb[0].mxu0
      %v526 = vpop.f32.mrb[0].mxu0
      %v527 = vadd.f32 %v279, %v526
      %v528 = vpop.f32.mrb[0].mxu0
      %529 = vmatprep.mubr.bf16.mxu0 0
      %530 = vmatmul.mubr.bf16.gmra.mrb[0].mxu0 %v354
      %v531 = vpop.f32.mrb[0].mxu0
      %v532 = vadd.f32 %v279, %v531
      %v533 = vpop.f32.mrb[0].mxu0
      %v534 = vpop.f32.mrb[0].mxu0
      %v535 = vadd.f32 %v279, %v534
      %v536 = vpop.f32.mrb[0].mxu0
      %537 = vmatprep.mubr.bf16.mxu0 0
      %538 = vmatmul.mubr.bf16.gmra.mrb[0].mxu0 %v355
      %v539 = vpop.f32.mrb[0].mxu0
      %v540 = vadd.f32 %v279, %v539
      %v541 = vpop.f32.mrb[0].mxu0
      %v542 = vpop.f32.mrb[0].mxu0
      %v543 = vadd.f32 %v279, %v542
      %v544 = vpop.f32.mrb[0].mxu0
      %545 = vmatprep.mubr.bf16.mxu0 0
      %546 = vmatmul.mubr.bf16.gmra.mrb[0].mxu0 %v356
      %v547 = vpop.f32.mrb[0].mxu0
      %v548 = vadd.f32 %v279, %v547
      %v549 = vpop.f32.mrb[0].mxu0
      %v550 = vpop.f32.mrb[0].mxu0
      %v551 = vadd.f32 %v279, %v550
      %v552 = vpop.f32.mrb[0].mxu0
      %553 = vmatprep.mubr.bf16.mxu0 0
      %554 = vmatmul.mubr.bf16.gmra.mrb[0].mxu0 %v357
      %v555 = vpop.f32.mrb[0].mxu0
      %v556 = vadd.f32 %v279, %v555
      %v557 = vpop.f32.mrb[0].mxu0
      %v558 = vpop.f32.mrb[0].mxu0
      %v559 = vadd.f32 %v279, %v558
      %v560 = vpop.f32.mrb[0].mxu0
      %561 = vmatprep.mubr.bf16.mxu0 0
      %562 = vmatmul.mubr.bf16.gmra.mrb[0].mxu0 %v358
      %v563 = vpop.f32.mrb[0].mxu0
      %v564 = vadd.f32 %v279, %v563
      %v565 = vpop.f32.mrb[0].mxu0
      %v566 = vpop.f32.mrb[0].mxu0
      %v567 = vadd.f32 %v279, %v566
      %v568 = vpop.f32.mrb[0].mxu0
      %569 = vmatprep.mubr.bf16.mxu0 0
      %570 = vmatmul.mubr.bf16.gmra.mrb[0].mxu0 %v359
      %v571 = vpop.f32.mrb[0].mxu0
      %v572 = vadd.f32 %v279, %v571
      %v573 = vpop.f32.mrb[0].mxu0
      %v574 = vpop.f32.mrb[0].mxu0
      %v575 = vadd.f32 %v279, %v574
      %v576 = vpop.f32.mrb[0].mxu0
      %577 = vmatprep.mubr.bf16.mxu0 0
      %578 = vmatmul.mubr.bf16.gmra.mrb[0].mxu0 %v360
      %v579 = vpop.f32.mrb[0].mxu0
      %v580 = vadd.f32 %v279, %v579
      %v581 = vpop.f32.mrb[0].mxu0
      %v582 = vpop.f32.mrb[0].mxu0
      %v583 = vadd.f32 %v279, %v582
      %v584 = vpop.f32.mrb[0].mxu0
      %585 = vdwg.mxu0
      %v586 = vmax.f32 %v460, 0.0
      %v587 = vmax.f32 %v463, 0.0
      %v588 = vmax.f32 %v468, 0.0
      %v589 = vmax.f32 %v471, 0.0
      %v590 = vmax.f32 %v476, 0.0
      %v591 = vmax.f32 %v479, 0.0
      %v592 = vmax.f32 %v484, 0.0
      %v593 = vmax.f32 %v487, 0.0
      %v594 = vmax.f32 %v492, 0.0
      %v595 = vmax.f32 %v495, 0.0
      %v596 = vmax.f32 %v500, 0.0
      %v597 = vmax.f32 %v503, 0.0
      %v598 = vmax.f32 %v508, 0.0
      %v599 = vmax.f32 %v511, 0.0
      %v600 = vmax.f32 %v516, 0.0
      %v601 = vmax.f32 %v519, 0.0
      %v602 = vmax.f32 %v524, 0.0
      %v603 = vmax.f32 %v527, 0.0
      %v604 = vmax.f32 %v532, 0.0
      %v605 = vmax.f32 %v535, 0.0
      %v606 = vmax.f32 %v540, 0.0
      %v607 = vmax.f32 %v543, 0.0
      %v608 = vmax.f32 %v548, 0.0
      %v609 = vmax.f32 %v551, 0.0
      %v610 = vmax.f32 %v556, 0.0
      %v611 = vmax.f32 %v559, 0.0
      %v612 = vmax.f32 %v564, 0.0
      %v613 = vmax.f32 %v567, 0.0
      %v614 = vmax.f32 %v572, 0.0
      %v615 = vmax.f32 %v575, 0.0
      %v616 = vmax.f32 %v580, 0.0
      %v617 = vmax.f32 %v583, 0.0
      %v618 = vpack.c.bf16 %v587, %v586
      %v619 = vpack.c.bf16 %v589, %v588
      %v620 = vpack.c.bf16 %v591, %v590
      %v621 = vpack.c.bf16 %v593, %v592
      %v622 = vpack.c.bf16 %v595, %v594
      %v623 = vpack.c.bf16 %v597, %v596
      %v624 = vpack.c.bf16 %v599, %v598
      %v625 = vpack.c.bf16 %v601, %v600
      %v626 = vpack.c.bf16 %v603, %v602
      %v627 = vpack.c.bf16 %v605, %v604
      %v628 = vpack.c.bf16 %v607, %v606
      %v629 = vpack.c.bf16 %v609, %v608
      %v630 = vpack.c.bf16 %v611, %v610
      %v631 = vpack.c.bf16 %v613, %v612
      %v632 = vpack.c.bf16 %v615, %v614
      %v633 = vpack.c.bf16 %v617, %v616
      %v650 = vunpack.c.l.b16 %v618
      %v651 = vunpack.c.h.b16 %v618
      %v652 = vunpack.c.l.b16 %v619
      %v653 = vunpack.c.h.b16 %v619
      %v654 = vunpack.c.l.b16 %v620
      %v655 = vunpack.c.h.b16 %v620
      %v656 = vunpack.c.l.b16 %v621
      %v657 = vunpack.c.h.b16 %v621
      %v658 = vunpack.c.l.b16 %v622
      %v659 = vunpack.c.h.b16 %v622
      %v660 = vunpack.c.l.b16 %v623
      %v661 = vunpack.c.h.b16 %v623
      %v662 = vunpack.c.l.b16 %v624
      %v663 = vunpack.c.h.b16 %v624
      %v664 = vunpack.c.l.b16 %v625
      %v665 = vunpack.c.h.b16 %v625
      %v666 = vunpack.c.l.b16 %v626
      %v667 = vunpack.c.h.b16 %v626
      %v668 = vunpack.c.l.b16 %v627
      %v669 = vunpack.c.h.b16 %v627
      %v670 = vunpack.c.l.b16 %v628
      %v671 = vunpack.c.h.b16 %v628
      %v672 = vunpack.c.l.b16 %v629
      %v673 = vunpack.c.h.b16 %v629
      %v674 = vunpack.c.l.b16 %v630
      %v675 = vunpack.c.h.b16 %v630
      %v676 = vunpack.c.l.b16 %v631
      %v677 = vunpack.c.h.b16 %v631
      %v678 = vunpack.c.l.b16 %v632
      %v679 = vunpack.c.h.b16 %v632
      %v680 = vunpack.c.l.b16 %v633
      %v681 = vunpack.c.h.b16 %v633
      %v682 = vpack.c.b16 %v650, %v650
      %v683 = vpack.c.b16 %v651, %v651
      %v684 = vpack.c.b16 %v652, %v652
      %v685 = vpack.c.b16 %v653, %v653
      %v686 = vpack.c.b16 %v654, %v654
      %v687 = vpack.c.b16 %v655, %v655
      %v688 = vpack.c.b16 %v656, %v656
      %v689 = vpack.c.b16 %v657, %v657
      %v690 = vpack.c.b16 %v658, %v658
      %v691 = vpack.c.b16 %v659, %v659
      %v692 = vpack.c.b16 %v660, %v660
      %v693 = vpack.c.b16 %v661, %v661
      %v694 = vpack.c.b16 %v662, %v662
      %v695 = vpack.c.b16 %v663, %v663
      %v696 = vpack.c.b16 %v664, %v664
      %v697 = vpack.c.b16 %v665, %v665
      %v698 = vpack.c.b16 %v666, %v666
      %v699 = vpack.c.b16 %v667, %v667
      %v700 = vpack.c.b16 %v668, %v668
      %v701 = vpack.c.b16 %v669, %v669
      %v702 = vpack.c.b16 %v670, %v670
      %v703 = vpack.c.b16 %v671, %v671
      %v704 = vpack.c.b16 %v672, %v672
      %v705 = vpack.c.b16 %v673, %v673
      %v706 = vpack.c.b16 %v674, %v674
      %v707 = vpack.c.b16 %v675, %v675
      %v708 = vpack.c.b16 %v676, %v676
      %v709 = vpack.c.b16 %v677, %v677
      %v710 = vpack.c.b16 %v678, %v678
      %v711 = vpack.c.b16 %v679, %v679
      %v712 = vpack.c.b16 %v680, %v680
      %v713 = vpack.c.b16 %v681, %v681
      %746 = vst [vmem:[%s223] sm:$0xf] %v682
      %747 = vst [vmem:[%s223 + $0x4] sm:$0xf] %v683
      %748 = vst [vmem:[%s223 + $0x8] sm:$0xf] %v684
      %749 = vst [vmem:[%s223 + $0xc] sm:$0xf] %v685
      %750 = vst [vmem:[%s223 + $0x10] sm:$0xf] %v686
      %751 = vst [vmem:[%s223 + $0x14] sm:$0xf] %v687
      %752 = vst [vmem:[%s223 + $0x18] sm:$0xf] %v688
      %753 = vst [vmem:[%s223 + $0x1c] sm:$0xf] %v689
      %754 = vst [vmem:[%s223 + $0x20] sm:$0xf] %v690
      %755 = vst [vmem:[%s223 + $0x24] sm:$0xf] %v691
      %756 = vst [vmem:[%s223 + $0x28] sm:$0xf] %v692
      %757 = vst [vmem:[%s223 + $0x2c] sm:$0xf] %v693
      %758 = vst [vmem:[%s223 + $0x30] sm:$0xf] %v694
      %759 = vst [vmem:[%s223 + $0x34] sm:$0xf] %v695
      %760 = vst [vmem:[%s223 + $0x38] sm:$0xf] %v696
      %761 = vst [vmem:[%s223 + $0x3c] sm:$0xf] %v697
      %762 = vst [vmem:[%s223 + $0x40] sm:$0xf] %v698
      %763 = vst [vmem:[%s223 + $0x44] sm:$0xf] %v699
      %764 = vst [vmem:[%s223 + $0x48] sm:$0xf] %v700
      %765 = vst [vmem:[%s223 + $0x4c] sm:$0xf] %v701
      %766 = vst [vmem:[%s223 + $0x50] sm:$0xf] %v702
      %767 = vst [vmem:[%s223 + $0x54] sm:$0xf] %v703
      %768 = vst [vmem:[%s223 + $0x58] sm:$0xf] %v704
      %769 = vst [vmem:[%s223 + $0x5c] sm:$0xf] %v705
      %770 = vst [vmem:[%s223 + $0x60] sm:$0xf] %v706
      %771 = vst [vmem:[%s223 + $0x64] sm:$0xf] %v707
      %772 = vst [vmem:[%s223 + $0x68] sm:$0xf] %v708
      %773 = vst [vmem:[%s223 + $0x6c] sm:$0xf] %v709
      %774 = vst [vmem:[%s223 + $0x70] sm:$0xf] %v710
      %775 = vst [vmem:[%s223 + $0x74] sm:$0xf] %v711
      %776 = vst [vmem:[%s223 + $0x78] sm:$0xf] %v712
      %777 = vst [vmem:[%s223 + $0x7c] sm:$0xf] %v713
      %s778 = smul.u32 32, %s18
      %p779 = scmp.lt.s32.totalorder %s778, 63
      %s780 = scalar_select %p779, %s778, 63
      %p781 = scmp.lt.s32.totalorder %s19, 0
      %s782 = scalar_select %p781, %s19, 0
      %s783 = sadd.s32 %s782, %s780
      %s784 = smul.addr %s783, 4
      %s785 = scalar_lea.vmem %s3, %s784
      // Predicated region
      $region33: #{google_motion_net_forward.11} parent=31 // pred_check
        %p786 = pneg %p124
      $region34: #{google_motion_net_forward.11} parent=31 // pred_check_branch
        %788 = sbr.rel (%p786) target = $region36
      $region35: #{google_motion_net_forward.11} parent=31 // pred_region
        %s789 = smul.u32 32, %s18
      $region36: #{google_motion_net_forward.11} parent=31 // pred_fallthru
        _
    $region32: #{google_motion_net_forward.11} parent=5 // pred_fallthru
      _
    %p790 = scmp.le.s32.totalorder 2, %s9
    // Predicated region
    $region37: #{google_motion_net_forward.11} parent=5 // pred_check
      %p791 = pneg %p790
    $region38: #{google_motion_net_forward.11} parent=5 // pred_check_branch
      %793 = sbr.rel (%p791) target = $region40
    $region39: #{google_motion_net_forward.11} parent=5 // pred_region
      %s794 = ssub.s32 %s9, 2
      // Predicated region
      $region41: #{google_motion_net_forward.11} parent=39 // pred_check
        %p795 = pneg %p130
      $region42: #{google_motion_net_forward.11} parent=39 // pred_check_branch
        %797 = sbr.rel (%p795) target = $region44
      $region43: #{google_motion_net_forward.11} parent=39 // pred_region
        %s798 = smul.u32 32, %s20
        %p799 = scmp.lt.s32.totalorder %s798, 63
        %s800 = scalar_select %p799, %s798, 63
        %p801 = scmp.lt.s32.totalorder %s21, 0
        %s802 = scalar_select %p801, %s21, 0
        %s803 = sadd.s32 %s802, %s800
        %s804 = smul.addr %s803, 4
        %s805 = scalar_lea.vmem %s3, %s804
      $region44: #{google_motion_net_forward.11} parent=39 // pred_fallthru
        _
    $region40: #{google_motion_net_forward.11} parent=5 // pred_fallthru
      _
  $region6: #{google_motion_net_forward.11} parent=0 // loop_footer
    %s13 = sadd.s32 1, %s9
  $region7: #{google_motion_net_forward.11} parent=0 // loop_footer_branch
    %8 = sbr.rel target = $region3
  $region8: #{google_motion_net_forward.11} parent=0 // loop_exit
    _

// kernel: google_motion_net_forward.12
$region0: #{google_motion_net_forward.12}
  #allocation0 [shape = 'u32[]', space=smem, size = 0x4, offset = 0x4, fixed_abs, tag = 'smem constant byte address 0x4 - core index']
  #allocation1 [shape = 'u32[144,128]{1,0:T(1,128)}', space=vmem, size = 0x12000, scoped, tag = 'internal scratch']
  %s0 = inlined_call_operand.vmem [shape: bf16[512,128], index: 0, kind: input, shape index: {}]
  %s1 = inlined_call_operand.vmem [shape: bf16[128,128], index: 1, kind: input, shape index: {}]
  %s2 = inlined_call_operand.vmem [shape: f32[1,128], index: 2, kind: input, shape index: {}]
  %s3 = inlined_call_operand.vmem [shape: bf16[512,128], index: 3, kind: output, shape index: {}]
  %s4 = sld [smem:[#allocation0]]
  $region45: #{google_motion_net_forward.12} parent=0
    _
  %s6 = ssub.s32 1, %s4
  %s7 = scalar_select 0, %s6, %s4
  loop: start=0, step=1, limit=4
  $region2: #{google_motion_net_forward.12} parent=0 // loop_pre_header
    _
  $region3: #{google_motion_net_forward.12} parent=0 // loop_header
    %s9 = sphi 0, %s13
    %p10 = scmp.ge.s32.totalorder %s9, 4
    %s16 = sphi 0, %s28
    %s17 = sphi 0, %s24
    %s18 = sphi 0, %s16
    %s19 = sphi 0, %s17
    %s20 = sphi 0, %s18
    %s21 = sphi 0, %s19
    %s31 = sphi 0, %s33
    %s34 = sphi 0, %s31
    %s35 = sphi 0, %s34
    %s51 = sphi 0, %s35
    %s57 = sphi 0, %s59
    %s60 = sphi 0, %s57
    %s61 = sphi 0, %s60
    %s77 = sphi 0, %s61
    %s83 = sphi 0, %s85
    %s86 = sphi 0, %s83
    %s87 = sphi 0, %s86
    %s103 = sphi 0, %s87
    %s111 = sphi 0, %s113
    %s114 = sphi 0, %s111
    %s115 = sphi 0, %s114
    %s131 = sphi 0, %s115
  $region4: #{google_motion_net_forward.12} parent=0 // loop_header_branch
    %12 = sbr.rel (%p10) target = $region8
  $region5: #{google_motion_net_forward.12} parent=0 // loop_body
    %s14 = ssub.s32 %s9, 1
    %s15 = ssub.s32 %s9, 2
    %s22 = sadd.s32 1, %s17
    %p23 = scmp.ge.s32.totalorder %s22, 1
    %s24 = scalar_select %p23, 0, %s22
    %s25 = sadd.s32 1, %s16
    %s26 = scalar_select %p23, %s25, %s16
    %p27 = scmp.ge.s32.totalorder %s26, 2
    %s28 = scalar_select %p27, 0, %s26
    %s29 = ssub.s32 %s16, %s28
    %p30 = scmp.eq.s32.totalorder %s29, 0
    %s32 = sadd.s32 %s31, 1
    %s33 = scalar_select %p30, %s31, %s32
    %p36 = pneg %p30
    %p37 = scmp.eq.s32.totalorder %s9, 1
    %p38 = por %p36, %p37
    %p39 = scmp.ne.s32.totalorder %s31, %s34
    %p40 = scmp.eq.s32.totalorder %s9, 0
    %p41 = por %p39, %p40
    %p42 = scmp.ne.s32.totalorder %s31, %s34
    %p43 = scmp.eq.s32.totalorder %s14, 1
    %p44 = por %p42, %p43
    %p45 = scmp.ne.s32.totalorder %s34, %s35
    %p46 = scmp.eq.s32.totalorder %s14, 0
    %p47 = por %p45, %p46
    %p48 = scmp.ne.s32.totalorder %s34, %s35
    %p49 = scmp.eq.s32.totalorder %s15, 1
    %p50 = por %p48, %p49
    %p52 = scmp.ne.s32.totalorder %s35, %s51
    %p53 = scmp.eq.s32.totalorder %s15, 0
    %p54 = por %p52, %p53
    %s55 = ssub.s32 %s17, %s24
    %p56 = scmp.eq.s32.totalorder %s55, 0
    %s58 = sadd.s32 %s57, 1
    %s59 = scalar_select %p56, %s57, %s58
    %p62 = pneg %p56
    %p63 = scmp.eq.s32.totalorder %s9, 1
    %p64 = por %p62, %p63
    %p65 = scmp.ne.s32.totalorder %s57, %s60
    %p66 = scmp.eq.s32.totalorder %s9, 0
    %p67 = por %p65, %p66
    %p68 = scmp.ne.s32.totalorder %s57, %s60
    %p69 = scmp.eq.s32.totalorder %s14, 1
    %p70 = por %p68, %p69
    %p71 = scmp.ne.s32.totalorder %s60, %s61
    %p72 = scmp.eq.s32.totalorder %s14, 0
    %p73 = por %p71, %p72
    %p74 = scmp.ne.s32.totalorder %s60, %s61
    %p75 = scmp.eq.s32.totalorder %s15, 1
    %p76 = por %p74, %p75
    %p78 = scmp.ne.s32.totalorder %s61, %s77
    %p79 = scmp.eq.s32.totalorder %s15, 0
    %p80 = por %p78, %p79
    %s81 = ssub.s32 %s17, %s24
    %p82 = scmp.eq.s32.totalorder %s81, 0
    %s84 = sadd.s32 %s83, 1
    %s85 = scalar_select %p82, %s83, %s84
    %p88 = pneg %p82
    %p89 = scmp.eq.s32.totalorder %s9, 1
    %p90 = por %p88, %p89
    %p91 = scmp.ne.s32.totalorder %s83, %s86
    %p92 = scmp.eq.s32.totalorder %s9, 0
    %p93 = por %p91, %p92
    %p94 = scmp.ne.s32.totalorder %s83, %s86
    %p95 = scmp.eq.s32.totalorder %s14, 1
    %p96 = por %p94, %p95
    %p97 = scmp.ne.s32.totalorder %s86, %s87
    %p98 = scmp.eq.s32.totalorder %s14, 0
    %p99 = por %p97, %p98
    %p100 = scmp.ne.s32.totalorder %s86, %s87
    %p101 = scmp.eq.s32.totalorder %s15, 1
    %p102 = por %p100, %p101
    %p104 = scmp.ne.s32.totalorder %s87, %s103
    %p105 = scmp.eq.s32.totalorder %s15, 0
    %p106 = por %p104, %p105
    %s107 = ssub.s32 %s16, %s28
    %s108 = ssub.s32 %s17, %s24
    %s109 = sor.u32 %s107, %s108
    %p110 = scmp.eq.s32.totalorder %s109, 0
    %s112 = sadd.s32 %s111, 1
    %s113 = scalar_select %p110, %s111, %s112
    %p116 = pneg %p110
    %p117 = scmp.eq.s32.totalorder %s9, 1
    %p118 = por %p116, %p117
    %p119 = scmp.ne.s32.totalorder %s111, %s114
    %p120 = scmp.eq.s32.totalorder %s9, 0
    %p121 = por %p119, %p120
    %p122 = scmp.ne.s32.totalorder %s111, %s114
    %p123 = scmp.eq.s32.totalorder %s14, 1
    %p124 = por %p122, %p123
    %p125 = scmp.ne.s32.totalorder %s114, %s115
    %p126 = scmp.eq.s32.totalorder %s14, 0
    %p127 = por %p125, %p126
    %p128 = scmp.ne.s32.totalorder %s114, %s115
    %p129 = scmp.eq.s32.totalorder %s15, 1
    %p130 = por %p128, %p129
    %p132 = scmp.ne.s32.totalorder %s115, %s131
    %p133 = scmp.eq.s32.totalorder %s15, 0
    %p134 = por %p132, %p133
    %p135 = scmp.le.s32.totalorder 1, %s9
    %p136 = scmp.lt.s32.totalorder %s9, 3
    %p137 = pnand %p135, %p136
    %p138 = pneg %p137
    // Predicated region
    $region9: #{google_motion_net_forward.12} parent=5 // pred_check
      _
    $region10: #{google_motion_net_forward.12} parent=5 // pred_check_branch
      %140 = sbr.rel (%p137) target = $region12
    $region11: #{google_motion_net_forward.12} parent=5 // pred_region
      %s141 = ssub.s32 %s9, 1
      // Predicated region
      $region13: #{google_motion_net_forward.12} parent=11 // pred_check
        %p142 = pneg %p73
      $region14: #{google_motion_net_forward.12} parent=11 // pred_check_branch
        %144 = sbr.rel (%p142) target = $region16
      $region15: #{google_motion_net_forward.12} parent=11 // pred_region
        %p145 = scmp.lt.s32.totalorder %s19, 0
        %s146 = scalar_select %p145, %s19, 0
        %s147 = smul.addr %s146, 4
        %s148 = scalar_lea.vmem %s1, %s147
      $region16: #{google_motion_net_forward.12} parent=11 // pred_fallthru
        _
      // Predicated region
      $region17: #{google_motion_net_forward.12} parent=11 // pred_check
        %p149 = pneg %p99
      $region18: #{google_motion_net_forward.12} parent=11 // pred_check_branch
        %151 = sbr.rel (%p149) target = $region20
      $region19: #{google_motion_net_forward.12} parent=11 // pred_region
        %p152 = scmp.lt.s32.totalorder %s19, 0
        %s153 = scalar_select %p152, %s19, 0
        %s154 = scalar_lea.vmem %s2, %s153
      $region20: #{google_motion_net_forward.12} parent=11 // pred_fallthru
        _
    $region12: #{google_motion_net_forward.12} parent=5 // pred_fallthru
      _
    %p155 = scmp.lt.s32.totalorder %s9, 2
    // Predicated region
    $region21: #{google_motion_net_forward.12} parent=5 // pred_check
      %p156 = pneg %p155
    $region22: #{google_motion_net_forward.12} parent=5 // pred_check_branch
      %158 = sbr.rel (%p156) target = $region24
    $region23: #{google_motion_net_forward.12} parent=5 // pred_region
      // Predicated region
      $region25: #{google_motion_net_forward.12} parent=23 // pred_check
        %p159 = pneg %p41
      $region26: #{google_motion_net_forward.12} parent=23 // pred_check_branch
        %161 = sbr.rel (%p159) target = $region28
      $region27: #{google_motion_net_forward.12} parent=23 // pred_region
        %s162 = smul.u32 32, %s16
        %p163 = scmp.lt.s32.totalorder %s162, 63
        %s164 = scalar_select %p163, %s162, 63
        %s165 = smul.addr %s164, 4
        %s166 = scalar_lea.vmem %s0, %s165
        %s167 = smul.u32 32, %s16
      $region28: #{google_motion_net_forward.12} parent=23 // pred_fallthru
        _
    $region24: #{google_motion_net_forward.12} parent=5 // pred_fallthru
      _
    %p168 = scmp.le.s32.totalorder 1, %s9
    %p169 = scmp.lt.s32.totalorder %s9, 3
    %p170 = pnand %p168, %p169
    %p171 = pneg %p170
    // Predicated region
    $region29: #{google_motion_net_forward.12} parent=5 // pred_check
      _
    $region30: #{google_motion_net_forward.12} parent=5 // pred_check_branch
      %173 = sbr.rel (%p170) target = $region32
    $region31: #{google_motion_net_forward.12} parent=5 // pred_region
      %s174 = ssub.s32 %s9, 1
      %s175 = smul.u32 32, %s18
      %p176 = scmp.lt.s32.totalorder %s175, 63
      %s177 = scalar_select %p176, %s175, 63
      %s178 = smul.addr %s177, 4
      %s179 = scalar_lea.vmem %s0, %s178
      %p180 = pneg %p47
      %p181 = pneg %p44
      %p182 = scmp.lt.s32.totalorder %s19, 0
      %s183 = scalar_select %p182, %s19, 0
      %s184 = smul.addr %s183, 4
      %s185 = scalar_lea.vmem %s1, %s184
      %p186 = pneg %p73
      %p187 = pneg %p70
      %p188 = scmp.lt.s32.totalorder %s19, 0
      %s189 = scalar_select %p188, %s19, 0
      %s190 = scalar_lea.vmem %s2, %s189
      %p191 = pneg %p99
      %p192 = pneg %p96
      %p193 = pneg %p127
      %p194 = pneg %p124
      %s195 = smul.u32 32, %s18
      %p196 = scmp.lt.s32.totalorder %s195, 63
      %s197 = scalar_select %p196, %s195, 63
      %p198 = scmp.lt.s32.totalorder %s19, 0
      %s199 = scalar_select %p198, %s19, 0
      %s200 = sadd.s32 %s199, %s197
      %s201 = smul.addr %s200, 4
      %s202 = scalar_lea.vmem %s3, %s201
      %s203 = smul.u32 32, %s18
      %p204 = scmp.lt.s32.totalorder %s203, 63
      %s205 = scalar_select %p204, %s203, 63
      %s206 = smul.addr %s205, 4
      %s207 = scalar_lea.vmem %s0, %s206
      %s208 = smul.u32 32, %s18
      %p209 = scmp.lt.s32.totalorder %s19, 0
      %s210 = scalar_select %p209, %s19, 0
      %s211 = smul.addr %s210, 4
      %s212 = scalar_lea.vmem %s1, %s211
      %p213 = scmp.lt.s32.totalorder %s19, 0
      %s214 = scalar_select %p213, %s19, 0
      %s215 = scalar_lea.vmem %s2, %s214
      %s216 = smul.u32 32, %s18
      %p217 = scmp.lt.s32.totalorder %s216, 63
      %s218 = scalar_select %p217, %s216, 63
      %p219 = scmp.lt.s32.totalorder %s19, 0
      %s220 = scalar_select %p219, %s19, 0
      %s221 = sadd.s32 %s220, %s218
      %s222 = smul.addr %s221, 4
      %s223 = scalar_lea.vmem %s3, %s222
      %s224 = smul.u32 32, %s18
      %v226 = vld [vmem:[%s207] sm:$0xf]
      %v227 = vld [vmem:[%s207 + $0x4] sm:$0xf]
      %v228 = vld [vmem:[%s207 + $0x8] sm:$0xf]
      %v229 = vld [vmem:[%s207 + $0xc] sm:$0xf]
      %v230 = vld [vmem:[%s207 + $0x10] sm:$0xf]
      %v231 = vld [vmem:[%s207 + $0x14] sm:$0xf]
      %v232 = vld [vmem:[%s207 + $0x18] sm:$0xf]
      %v233 = vld [vmem:[%s207 + $0x1c] sm:$0xf]
      %v234 = vld [vmem:[%s207 + $0x20] sm:$0xf]
      %v235 = vld [vmem:[%s207 + $0x24] sm:$0xf]
      %v236 = vld [vmem:[%s207 + $0x28] sm:$0xf]
      %v237 = vld [vmem:[%s207 + $0x2c] sm:$0xf]
      %v238 = vld [vmem:[%s207 + $0x30] sm:$0xf]
      %v239 = vld [vmem:[%s207 + $0x34] sm:$0xf]
      %v240 = vld [vmem:[%s207 + $0x38] sm:$0xf]
      %v241 = vld [vmem:[%s207 + $0x3c] sm:$0xf]
      %v242 = vld [vmem:[%s207 + $0x40] sm:$0xf]
      %v243 = vld [vmem:[%s207 + $0x44] sm:$0xf]
      %v244 = vld [vmem:[%s207 + $0x48] sm:$0xf]
      %v245 = vld [vmem:[%s207 + $0x4c] sm:$0xf]
      %v246 = vld [vmem:[%s207 + $0x50] sm:$0xf]
      %v247 = vld [vmem:[%s207 + $0x54] sm:$0xf]
      %v248 = vld [vmem:[%s207 + $0x58] sm:$0xf]
      %v249 = vld [vmem:[%s207 + $0x5c] sm:$0xf]
      %v250 = vld [vmem:[%s207 + $0x60] sm:$0xf]
      %v251 = vld [vmem:[%s207 + $0x64] sm:$0xf]
      %v252 = vld [vmem:[%s207 + $0x68] sm:$0xf]
      %v253 = vld [vmem:[%s207 + $0x6c] sm:$0xf]
      %v254 = vld [vmem:[%s207 + $0x70] sm:$0xf]
      %v255 = vld [vmem:[%s207 + $0x74] sm:$0xf]
      %v256 = vld [vmem:[%s207 + $0x78] sm:$0xf]
      %v257 = vld [vmem:[%s207 + $0x7c] sm:$0xf]
      %v258 = vld [vmem:[%s212] sm:$0xf]
      %v259 = vld [vmem:[%s212 + $0x4] sm:$0xf]
      %v260 = vld [vmem:[%s212 + $0x8] sm:$0xf]
      %v261 = vld [vmem:[%s212 + $0xc] sm:$0xf]
      %v262 = vld [vmem:[%s212 + $0x10] sm:$0xf]
      %v263 = vld [vmem:[%s212 + $0x14] sm:$0xf]
      %v264 = vld [vmem:[%s212 + $0x18] sm:$0xf]
      %v265 = vld [vmem:[%s212 + $0x1c] sm:$0xf]
      %v266 = vld [vmem:[%s212 + $0x20] sm:$0xf]
      %v267 = vld [vmem:[%s212 + $0x24] sm:$0xf]
      %v268 = vld [vmem:[%s212 + $0x28] sm:$0xf]
      %v269 = vld [vmem:[%s212 + $0x2c] sm:$0xf]
      %v270 = vld [vmem:[%s212 + $0x30] sm:$0xf]
      %v271 = vld [vmem:[%s212 + $0x34] sm:$0xf]
      %v272 = vld [vmem:[%s212 + $0x38] sm:$0xf]
      %v273 = vld [vmem:[%s212 + $0x3c] sm:$0xf]
      %v274 = vld [vmem:[%s215] sm:$0x1]
      %v276 = vlaneseq
      %v277 = vshrl.u32 %v276, 7
      %v278 = vsub.s32 0, %v277
      %v279 = vrot.slane %v274, %v278
      %v313 = vunpack.c.l.b16 %v226
      %v314 = vunpack.c.l.b16 %v227
      %v315 = vunpack.c.l.b16 %v228
      %v316 = vunpack.c.l.b16 %v229
      %v317 = vunpack.c.l.b16 %v230
      %v318 = vunpack.c.l.b16 %v231
      %v319 = vunpack.c.l.b16 %v232
      %v320 = vunpack.c.l.b16 %v233
      %v321 = vunpack.c.l.b16 %v234
      %v322 = vunpack.c.l.b16 %v235
      %v323 = vunpack.c.l.b16 %v236
      %v324 = vunpack.c.l.b16 %v237
      %v325 = vunpack.c.l.b16 %v238
      %v326 = vunpack.c.l.b16 %v239
      %v327 = vunpack.c.l.b16 %v240
      %v328 = vunpack.c.l.b16 %v241
      %v329 = vunpack.c.l.b16 %v242
      %v330 = vunpack.c.l.b16 %v243
      %v331 = vunpack.c.l.b16 %v244
      %v332 = vunpack.c.l.b16 %v245
      %v333 = vunpack.c.l.b16 %v246
      %v334 = vunpack.c.l.b16 %v247
      %v335 = vunpack.c.l.b16 %v248
      %v336 = vunpack.c.l.b16 %v249
      %v337 = vunpack.c.l.b16 %v250
      %v338 = vunpack.c.l.b16 %v251
      %v339 = vunpack.c.l.b16 %v252
      %v340 = vunpack.c.l.b16 %v253
      %v341 = vunpack.c.l.b16 %v254
      %v342 = vunpack.c.l.b16 %v255
      %v343 = vunpack.c.l.b16 %v256
      %v344 = vunpack.c.l.b16 %v257
      %v345 = vpack.c.b16 %v314, %v313
      %v346 = vpack.c.b16 %v316, %v315
      %v347 = vpack.c.b16 %v318, %v317
      %v348 = vpack.c.b16 %v320, %v319
      %v349 = vpack.c.b16 %v322, %v321
      %v350 = vpack.c.b16 %v324, %v323
      %v351 = vpack.c.b16 %v326, %v325
      %v352 = vpack.c.b16 %v328, %v327
      %v353 = vpack.c.b16 %v330, %v329
      %v354 = vpack.c.b16 %v332, %v331
      %v355 = vpack.c.b16 %v334, %v333
      %v356 = vpack.c.b16 %v336, %v335
      %v357 = vpack.c.b16 %v338, %v337
      %v358 = vpack.c.b16 %v340, %v339
      %v359 = vpack.c.b16 %v342, %v341
      %v360 = vpack.c.b16 %v344, %v343
      %v393 = vunpack.c.l.b16 %v258
      %v394 = vunpack.c.l.b16 %v259
      %v395 = vunpack.c.l.b16 %v260
      %v396 = vunpack.c.l.b16 %v261
      %v397 = vunpack.c.l.b16 %v262
      %v398 = vunpack.c.l.b16 %v263
      %v399 = vunpack.c.l.b16 %v264
      %v400 = vunpack.c.l.b16 %v265
      %v401 = vunpack.c.l.b16 %v266
      %v402 = vunpack.c.l.b16 %v267
      %v403 = vunpack.c.l.b16 %v268
      %v404 = vunpack.c.l.b16 %v269
      %v405 = vunpack.c.l.b16 %v270
      %v406 = vunpack.c.l.b16 %v271
      %v407 = vunpack.c.l.b16 %v272
      %v408 = vunpack.c.l.b16 %v273
      %v409 = vpack.c.b16 %v394, %v393
      %v410 = vpack.c.b16 %v396, %v395
      %v411 = vpack.c.b16 %v398, %v397
      %v412 = vpack.c.b16 %v400, %v399
      %v413 = vpack.c.b16 %v402, %v401
      %v414 = vpack.c.b16 %v404, %v403
      %v415 = vpack.c.b16 %v406, %v405
      %v416 = vpack.c.b16 %v408, %v407
      %425 = vmatprep.subr.bf16.mxu0 0
      %426 = vmatpush1.bf16.msra.mxu0 %v409
      %427 = vmatprep.subr.bf16.mxu0 0
      %428 = vmatpush1.bf16.msra.mxu0 %v410
      %429 = vmatprep.subr.bf16.mxu0 0
      %430 = vmatpush1.bf16.msra.mxu0 %v411
      %431 = vmatprep.subr.bf16.mxu0 0
      %432 = vmatpush1.bf16.msra.mxu0 %v412
      %433 = vmatprep.subr.bf16.mxu0 0
      %434 = vmatpush1.bf16.msra.mxu0 %v413
      %435 = vmatprep.subr.bf16.mxu0 0
      %436 = vmatpush1.bf16.msra.mxu0 %v414
      %437 = vmatprep.subr.bf16.mxu0 0
      %438 = vmatpush1.bf16.msra.mxu0 %v415
      %439 = vmatprep.subr.bf16.mxu0 0
      %440 = vmatpush1.bf16.msra.mxu0 %v416
      %441 = vmatprep.subr.bf16.mxu0 0
      %442 = vmatpush1.bf16.msra.mxu0 0
      %443 = vmatprep.subr.bf16.mxu0 0
      %444 = vmatpush1.bf16.msra.mxu0 0
      %445 = vmatprep.subr.bf16.mxu0 0
      %446 = vmatpush1.bf16.msra.mxu0 0
      %447 = vmatprep.subr.bf16.mxu0 0
      %448 = vmatpush1.bf16.msra.mxu0 0
      %449 = vmatprep.subr.bf16.mxu0 0
      %450 = vmatpush1.bf16.msra.mxu0 0
      %451 = vmatprep.subr.bf16.mxu0 0
      %452 = vmatpush1.bf16.msra.mxu0 0
      %453 = vmatprep.subr.bf16.mxu0 0
      %454 = vmatpush1.bf16.msra.mxu0 0
      %455 = vmatprep.subr.bf16.mxu0 0
      %456 = vmatpush1.bf16.msra.mxu0 0
      %457 = vmatprep.mubr.bf16.mxu0 0
      %458 = vmatmul.mubr.bf16.gmra.mrb[0].mxu0 %v345
      %v459 = vpop.f32.mrb[0].mxu0
      %v460 = vadd.f32 %v279, %v459
      %v461 = vpop.f32.mrb[0].mxu0
      %v462 = vpop.f32.mrb[0].mxu0
      %v463 = vadd.f32 %v279, %v462
      %v464 = vpop.f32.mrb[0].mxu0
      %465 = vmatprep.mubr.bf16.mxu0 0
      %466 = vmatmul.mubr.bf16.gmra.mrb[0].mxu0 %v346
      %v467 = vpop.f32.mrb[0].mxu0
      %v468 = vadd.f32 %v279, %v467
      %v469 = vpop.f32.mrb[0].mxu0
      %v470 = vpop.f32.mrb[0].mxu0
      %v471 = vadd.f32 %v279, %v470
      %v472 = vpop.f32.mrb[0].mxu0
      %473 = vmatprep.mubr.bf16.mxu0 0
      %474 = vmatmul.mubr.bf16.gmra.mrb[0].mxu0 %v347
      %v475 = vpop.f32.mrb[0].mxu0
      %v476 = vadd.f32 %v279, %v475
      %v477 = vpop.f32.mrb[0].mxu0
      %v478 = vpop.f32.mrb[0].mxu0
      %v479 = vadd.f32 %v279, %v478
      %v480 = vpop.f32.mrb[0].mxu0
      %481 = vmatprep.mubr.bf16.mxu0 0
      %482 = vmatmul.mubr.bf16.gmra.mrb[0].mxu0 %v348
      %v483 = vpop.f32.mrb[0].mxu0
      %v484 = vadd.f32 %v279, %v483
      %v485 = vpop.f32.mrb[0].mxu0
      %v486 = vpop.f32.mrb[0].mxu0
      %v487 = vadd.f32 %v279, %v486
      %v488 = vpop.f32.mrb[0].mxu0
      %489 = vmatprep.mubr.bf16.mxu0 0
      %490 = vmatmul.mubr.bf16.gmra.mrb[0].mxu0 %v349
      %v491 = vpop.f32.mrb[0].mxu0
      %v492 = vadd.f32 %v279, %v491
      %v493 = vpop.f32.mrb[0].mxu0
      %v494 = vpop.f32.mrb[0].mxu0
      %v495 = vadd.f32 %v279, %v494
      %v496 = vpop.f32.mrb[0].mxu0
      %497 = vmatprep.mubr.bf16.mxu0 0
      %498 = vmatmul.mubr.bf16.gmra.mrb[0].mxu0 %v350
      %v499 = vpop.f32.mrb[0].mxu0
      %v500 = vadd.f32 %v279, %v499
      %v501 = vpop.f32.mrb[0].mxu0
      %v502 = vpop.f32.mrb[0].mxu0
      %v503 = vadd.f32 %v279, %v502
      %v504 = vpop.f32.mrb[0].mxu0
      %505 = vmatprep.mubr.bf16.mxu0 0
      %506 = vmatmul.mubr.bf16.gmra.mrb[0].mxu0 %v351
      %v507 = vpop.f32.mrb[0].mxu0
      %v508 = vadd.f32 %v279, %v507
      %v509 = vpop.f32.mrb[0].mxu0
      %v510 = vpop.f32.mrb[0].mxu0
      %v511 = vadd.f32 %v279, %v510
      %v512 = vpop.f32.mrb[0].mxu0
      %513 = vmatprep.mubr.bf16.mxu0 0
      %514 = vmatmul.mubr.bf16.gmra.mrb[0].mxu0 %v352
      %v515 = vpop.f32.mrb[0].mxu0
      %v516 = vadd.f32 %v279, %v515
      %v517 = vpop.f32.mrb[0].mxu0
      %v518 = vpop.f32.mrb[0].mxu0
      %v519 = vadd.f32 %v279, %v518
      %v520 = vpop.f32.mrb[0].mxu0
      %521 = vmatprep.mubr.bf16.mxu0 0
      %522 = vmatmul.mubr.bf16.gmra.mrb[0].mxu0 %v353
      %v523 = vpop.f32.mrb[0].mxu0
      %v524 = vadd.f32 %v279, %v523
      %v525 = vpop.f32.mrb[0].mxu0
      %v526 = vpop.f32.mrb[0].mxu0
      %v527 = vadd.f32 %v279, %v526
      %v528 = vpop.f32.mrb[0].mxu0
      %529 = vmatprep.mubr.bf16.mxu0 0
      %530 = vmatmul.mubr.bf16.gmra.mrb[0].mxu0 %v354
      %v531 = vpop.f32.mrb[0].mxu0
      %v532 = vadd.f32 %v279, %v531
      %v533 = vpop.f32.mrb[0].mxu0
      %v534 = vpop.f32.mrb[0].mxu0
      %v535 = vadd.f32 %v279, %v534
      %v536 = vpop.f32.mrb[0].mxu0
      %537 = vmatprep.mubr.bf16.mxu0 0
      %538 = vmatmul.mubr.bf16.gmra.mrb[0].mxu0 %v355
      %v539 = vpop.f32.mrb[0].mxu0
      %v540 = vadd.f32 %v279, %v539
      %v541 = vpop.f32.mrb[0].mxu0
      %v542 = vpop.f32.mrb[0].mxu0
      %v543 = vadd.f32 %v279, %v542
      %v544 = vpop.f32.mrb[0].mxu0
      %545 = vmatprep.mubr.bf16.mxu0 0
      %546 = vmatmul.mubr.bf16.gmra.mrb[0].mxu0 %v356
      %v547 = vpop.f32.mrb[0].mxu0
      %v548 = vadd.f32 %v279, %v547
      %v549 = vpop.f32.mrb[0].mxu0
      %v550 = vpop.f32.mrb[0].mxu0
      %v551 = vadd.f32 %v279, %v550
      %v552 = vpop.f32.mrb[0].mxu0
      %553 = vmatprep.mubr.bf16.mxu0 0
      %554 = vmatmul.mubr.bf16.gmra.mrb[0].mxu0 %v357
      %v555 = vpop.f32.mrb[0].mxu0
      %v556 = vadd.f32 %v279, %v555
      %v557 = vpop.f32.mrb[0].mxu0
      %v558 = vpop.f32.mrb[0].mxu0
      %v559 = vadd.f32 %v279, %v558
      %v560 = vpop.f32.mrb[0].mxu0
      %561 = vmatprep.mubr.bf16.mxu0 0
      %562 = vmatmul.mubr.bf16.gmra.mrb[0].mxu0 %v358
      %v563 = vpop.f32.mrb[0].mxu0
      %v564 = vadd.f32 %v279, %v563
      %v565 = vpop.f32.mrb[0].mxu0
      %v566 = vpop.f32.mrb[0].mxu0
      %v567 = vadd.f32 %v279, %v566
      %v568 = vpop.f32.mrb[0].mxu0
      %569 = vmatprep.mubr.bf16.mxu0 0
      %570 = vmatmul.mubr.bf16.gmra.mrb[0].mxu0 %v359
      %v571 = vpop.f32.mrb[0].mxu0
      %v572 = vadd.f32 %v279, %v571
      %v573 = vpop.f32.mrb[0].mxu0
      %v574 = vpop.f32.mrb[0].mxu0
      %v575 = vadd.f32 %v279, %v574
      %v576 = vpop.f32.mrb[0].mxu0
      %577 = vmatprep.mubr.bf16.mxu0 0
      %578 = vmatmul.mubr.bf16.gmra.mrb[0].mxu0 %v360
      %v579 = vpop.f32.mrb[0].mxu0
      %v580 = vadd.f32 %v279, %v579
      %v581 = vpop.f32.mrb[0].mxu0
      %v582 = vpop.f32.mrb[0].mxu0
      %v583 = vadd.f32 %v279, %v582
      %v584 = vpop.f32.mrb[0].mxu0
      %585 = vdwg.mxu0
      %v586 = vmax.f32 %v460, 0.0
      %v587 = vmax.f32 %v463, 0.0
      %v588 = vmax.f32 %v468, 0.0
      %v589 = vmax.f32 %v471, 0.0
      %v590 = vmax.f32 %v476, 0.0
      %v591 = vmax.f32 %v479, 0.0
      %v592 = vmax.f32 %v484, 0.0
      %v593 = vmax.f32 %v487, 0.0
      %v594 = vmax.f32 %v492, 0.0
      %v595 = vmax.f32 %v495, 0.0
      %v596 = vmax.f32 %v500, 0.0
      %v597 = vmax.f32 %v503, 0.0
      %v598 = vmax.f32 %v508, 0.0
      %v599 = vmax.f32 %v511, 0.0
      %v600 = vmax.f32 %v516, 0.0
      %v601 = vmax.f32 %v519, 0.0
      %v602 = vmax.f32 %v524, 0.0
      %v603 = vmax.f32 %v527, 0.0
      %v604 = vmax.f32 %v532, 0.0
      %v605 = vmax.f32 %v535, 0.0
      %v606 = vmax.f32 %v540, 0.0
      %v607 = vmax.f32 %v543, 0.0
      %v608 = vmax.f32 %v548, 0.0
      %v609 = vmax.f32 %v551, 0.0
      %v610 = vmax.f32 %v556, 0.0
      %v611 = vmax.f32 %v559, 0.0
      %v612 = vmax.f32 %v564, 0.0
      %v613 = vmax.f32 %v567, 0.0
      %v614 = vmax.f32 %v572, 0.0
      %v615 = vmax.f32 %v575, 0.0
      %v616 = vmax.f32 %v580, 0.0
      %v617 = vmax.f32 %v583, 0.0
      %v618 = vpack.c.bf16 %v587, %v586
      %v619 = vpack.c.bf16 %v589, %v588
      %v620 = vpack.c.bf16 %v591, %v590
      %v621 = vpack.c.bf16 %v593, %v592
      %v622 = vpack.c.bf16 %v595, %v594
      %v623 = vpack.c.bf16 %v597, %v596
      %v624 = vpack.c.bf16 %v599, %v598
      %v625 = vpack.c.bf16 %v601, %v600
      %v626 = vpack.c.bf16 %v603, %v602
      %v627 = vpack.c.bf16 %v605, %v604
      %v628 = vpack.c.bf16 %v607, %v606
      %v629 = vpack.c.bf16 %v609, %v608
      %v630 = vpack.c.bf16 %v611, %v610
      %v631 = vpack.c.bf16 %v613, %v612
      %v632 = vpack.c.bf16 %v615, %v614
      %v633 = vpack.c.bf16 %v617, %v616
      %v650 = vunpack.c.l.b16 %v618
      %v651 = vunpack.c.h.b16 %v618
      %v652 = vunpack.c.l.b16 %v619
      %v653 = vunpack.c.h.b16 %v619
      %v654 = vunpack.c.l.b16 %v620
      %v655 = vunpack.c.h.b16 %v620
      %v656 = vunpack.c.l.b16 %v621
      %v657 = vunpack.c.h.b16 %v621
      %v658 = vunpack.c.l.b16 %v622
      %v659 = vunpack.c.h.b16 %v622
      %v660 = vunpack.c.l.b16 %v623
      %v661 = vunpack.c.h.b16 %v623
      %v662 = vunpack.c.l.b16 %v624
      %v663 = vunpack.c.h.b16 %v624
      %v664 = vunpack.c.l.b16 %v625
      %v665 = vunpack.c.h.b16 %v625
      %v666 = vunpack.c.l.b16 %v626
      %v667 = vunpack.c.h.b16 %v626
      %v668 = vunpack.c.l.b16 %v627
      %v669 = vunpack.c.h.b16 %v627
      %v670 = vunpack.c.l.b16 %v628
      %v671 = vunpack.c.h.b16 %v628
      %v672 = vunpack.c.l.b16 %v629
      %v673 = vunpack.c.h.b16 %v629
      %v674 = vunpack.c.l.b16 %v630
      %v675 = vunpack.c.h.b16 %v630
      %v676 = vunpack.c.l.b16 %v631
      %v677 = vunpack.c.h.b16 %v631
      %v678 = vunpack.c.l.b16 %v632
      %v679 = vunpack.c.h.b16 %v632
      %v680 = vunpack.c.l.b16 %v633
      %v681 = vunpack.c.h.b16 %v633
      %v682 = vpack.c.b16 %v650, %v650
      %v683 = vpack.c.b16 %v651, %v651
      %v684 = vpack.c.b16 %v652, %v652
      %v685 = vpack.c.b16 %v653, %v653
      %v686 = vpack.c.b16 %v654, %v654
      %v687 = vpack.c.b16 %v655, %v655
      %v688 = vpack.c.b16 %v656, %v656
      %v689 = vpack.c.b16 %v657, %v657
      %v690 = vpack.c.b16 %v658, %v658
      %v691 = vpack.c.b16 %v659, %v659
      %v692 = vpack.c.b16 %v660, %v660
      %v693 = vpack.c.b16 %v661, %v661
      %v694 = vpack.c.b16 %v662, %v662
      %v695 = vpack.c.b16 %v663, %v663
      %v696 = vpack.c.b16 %v664, %v664
      %v697 = vpack.c.b16 %v665, %v665
      %v698 = vpack.c.b16 %v666, %v666
      %v699 = vpack.c.b16 %v667, %v667
      %v700 = vpack.c.b16 %v668, %v668
      %v701 = vpack.c.b16 %v669, %v669
      %v702 = vpack.c.b16 %v670, %v670
      %v703 = vpack.c.b16 %v671, %v671
      %v704 = vpack.c.b16 %v672, %v672
      %v705 = vpack.c.b16 %v673, %v673
      %v706 = vpack.c.b16 %v674, %v674
      %v707 = vpack.c.b16 %v675, %v675
      %v708 = vpack.c.b16 %v676, %v676
      %v709 = vpack.c.b16 %v677, %v677
      %v710 = vpack.c.b16 %v678, %v678
      %v711 = vpack.c.b16 %v679, %v679
      %v712 = vpack.c.b16 %v680, %v680
      %v713 = vpack.c.b16 %v681, %v681
      %746 = vst [vmem:[%s223] sm:$0xf] %v682
      %747 = vst [vmem:[%s223 + $0x4] sm:$0xf] %v683
      %748 = vst [vmem:[%s223 + $0x8] sm:$0xf] %v684
      %749 = vst [vmem:[%s223 + $0xc] sm:$0xf] %v685
      %750 = vst [vmem:[%s223 + $0x10] sm:$0xf] %v686
      %751 = vst [vmem:[%s223 + $0x14] sm:$0xf] %v687
      %752 = vst [vmem:[%s223 + $0x18] sm:$0xf] %v688
      %753 = vst [vmem:[%s223 + $0x1c] sm:$0xf] %v689
      %754 = vst [vmem:[%s223 + $0x20] sm:$0xf] %v690
      %755 = vst [vmem:[%s223 + $0x24] sm:$0xf] %v691
      %756 = vst [vmem:[%s223 + $0x28] sm:$0xf] %v692
      %757 = vst [vmem:[%s223 + $0x2c] sm:$0xf] %v693
      %758 = vst [vmem:[%s223 + $0x30] sm:$0xf] %v694
      %759 = vst [vmem:[%s223 + $0x34] sm:$0xf] %v695
      %760 = vst [vmem:[%s223 + $0x38] sm:$0xf] %v696
      %761 = vst [vmem:[%s223 + $0x3c] sm:$0xf] %v697
      %762 = vst [vmem:[%s223 + $0x40] sm:$0xf] %v698
      %763 = vst [vmem:[%s223 + $0x44] sm:$0xf] %v699
      %764 = vst [vmem:[%s223 + $0x48] sm:$0xf] %v700
      %765 = vst [vmem:[%s223 + $0x4c] sm:$0xf] %v701
      %766 = vst [vmem:[%s223 + $0x50] sm:$0xf] %v702
      %767 = vst [vmem:[%s223 + $0x54] sm:$0xf] %v703
      %768 = vst [vmem:[%s223 + $0x58] sm:$0xf] %v704
      %769 = vst [vmem:[%s223 + $0x5c] sm:$0xf] %v705
      %770 = vst [vmem:[%s223 + $0x60] sm:$0xf] %v706
      %771 = vst [vmem:[%s223 + $0x64] sm:$0xf] %v707
      %772 = vst [vmem:[%s223 + $0x68] sm:$0xf] %v708
      %773 = vst [vmem:[%s223 + $0x6c] sm:$0xf] %v709
      %774 = vst [vmem:[%s223 + $0x70] sm:$0xf] %v710
      %775 = vst [vmem:[%s223 + $0x74] sm:$0xf] %v711
      %776 = vst [vmem:[%s223 + $0x78] sm:$0xf] %v712
      %777 = vst [vmem:[%s223 + $0x7c] sm:$0xf] %v713
      %s778 = smul.u32 32, %s18
      %p779 = scmp.lt.s32.totalorder %s778, 63
      %s780 = scalar_select %p779, %s778, 63
      %p781 = scmp.lt.s32.totalorder %s19, 0
      %s782 = scalar_select %p781, %s19, 0
      %s783 = sadd.s32 %s782, %s780
      %s784 = smul.addr %s783, 4
      %s785 = scalar_lea.vmem %s3, %s784
      // Predicated region
      $region33: #{google_motion_net_forward.12} parent=31 // pred_check
        %p786 = pneg %p124
      $region34: #{google_motion_net_forward.12} parent=31 // pred_check_branch
        %788 = sbr.rel (%p786) target = $region36
      $region35: #{google_motion_net_forward.12} parent=31 // pred_region
        %s789 = smul.u32 32, %s18
      $region36: #{google_motion_net_forward.12} parent=31 // pred_fallthru
        _
    $region32: #{google_motion_net_forward.12} parent=5 // pred_fallthru
      _
    %p790 = scmp.le.s32.totalorder 2, %s9
    // Predicated region
    $region37: #{google_motion_net_forward.12} parent=5 // pred_check
      %p791 = pneg %p790
    $region38: #{google_motion_net_forward.12} parent=5 // pred_check_branch
      %793 = sbr.rel (%p791) target = $region40
    $region39: #{google_motion_net_forward.12} parent=5 // pred_region
      %s794 = ssub.s32 %s9, 2
      // Predicated region
      $region41: #{google_motion_net_forward.12} parent=39 // pred_check
        %p795 = pneg %p130
      $region42: #{google_motion_net_forward.12} parent=39 // pred_check_branch
        %797 = sbr.rel (%p795) target = $region44
      $region43: #{google_motion_net_forward.12} parent=39 // pred_region
        %s798 = smul.u32 32, %s20
        %p799 = scmp.lt.s32.totalorder %s798, 63
        %s800 = scalar_select %p799, %s798, 63
        %p801 = scmp.lt.s32.totalorder %s21, 0
        %s802 = scalar_select %p801, %s21, 0
        %s803 = sadd.s32 %s802, %s800
        %s804 = smul.addr %s803, 4
        %s805 = scalar_lea.vmem %s3, %s804
      $region44: #{google_motion_net_forward.12} parent=39 // pred_fallthru
        _
    $region40: #{google_motion_net_forward.12} parent=5 // pred_fallthru
      _
  $region6: #{google_motion_net_forward.12} parent=0 // loop_footer
    %s13 = sadd.s32 1, %s9
  $region7: #{google_motion_net_forward.12} parent=0 // loop_footer_branch
    %8 = sbr.rel target = $region3
  $region8: #{google_motion_net_forward.12} parent=0 // loop_exit
    _

// kernel: google_motion_net_forward.13
$region0: #{google_motion_net_forward.13}
  #allocation0 [shape = 'u32[]', space=smem, size = 0x4, offset = 0x4, fixed_abs, tag = 'smem constant byte address 0x4 - core index']
  #allocation1 [shape = 'u32[144,128]{1,0:T(1,128)}', space=vmem, size = 0x12000, scoped, tag = 'internal scratch']
  %s0 = inlined_call_operand.vmem [shape: bf16[512,12], index: 0, kind: input, shape index: {}]
  %s1 = inlined_call_operand.vmem [shape: bf16[12,128], index: 1, kind: input, shape index: {}]
  %s2 = inlined_call_operand.vmem [shape: f32[1,128], index: 2, kind: input, shape index: {}]
  %s3 = inlined_call_operand.vmem [shape: f32[512,128], index: 3, kind: input, shape index: {}]
  %s4 = inlined_call_operand.vmem [shape: f32[512,128], index: 4, kind: output, shape index: {}]
  %s5 = sld [smem:[#allocation0]]
  $region49: #{google_motion_net_forward.13} parent=0
    _
  %s7 = ssub.s32 1, %s5
  %s8 = scalar_select 0, %s7, %s5
  loop: start=0, step=1, limit=4
  $region2: #{google_motion_net_forward.13} parent=0 // loop_pre_header
    _
  $region3: #{google_motion_net_forward.13} parent=0 // loop_header
    %s10 = sphi 0, %s14
    %p11 = scmp.ge.s32.totalorder %s10, 4
    %s17 = sphi 0, %s29
    %s18 = sphi 0, %s25
    %s19 = sphi 0, %s17
    %s20 = sphi 0, %s18
    %s21 = sphi 0, %s19
    %s22 = sphi 0, %s20
    %s32 = sphi 0, %s34
    %s35 = sphi 0, %s32
    %s36 = sphi 0, %s35
    %s52 = sphi 0, %s36
    %s58 = sphi 0, %s60
    %s61 = sphi 0, %s58
    %s62 = sphi 0, %s61
    %s78 = sphi 0, %s62
    %s84 = sphi 0, %s86
    %s87 = sphi 0, %s84
    %s88 = sphi 0, %s87
    %s104 = sphi 0, %s88
    %s112 = sphi 0, %s114
    %s115 = sphi 0, %s112
    %s116 = sphi 0, %s115
    %s132 = sphi 0, %s116
    %s140 = sphi 0, %s142
    %s143 = sphi 0, %s140
    %s144 = sphi 0, %s143
    %s160 = sphi 0, %s144
  $region4: #{google_motion_net_forward.13} parent=0 // loop_header_branch
    %13 = sbr.rel (%p11) target = $region8
  $region5: #{google_motion_net_forward.13} parent=0 // loop_body
    %s15 = ssub.s32 %s10, 1
    %s16 = ssub.s32 %s10, 2
    %s23 = sadd.s32 1, %s18
    %p24 = scmp.ge.s32.totalorder %s23, 1
    %s25 = scalar_select %p24, 0, %s23
    %s26 = sadd.s32 1, %s17
    %s27 = scalar_select %p24, %s26, %s17
    %p28 = scmp.ge.s32.totalorder %s27, 2
    %s29 = scalar_select %p28, 0, %s27
    %s30 = ssub.s32 %s17, %s29
    %p31 = scmp.eq.s32.totalorder %s30, 0
    %s33 = sadd.s32 %s32, 1
    %s34 = scalar_select %p31, %s32, %s33
    %p37 = pneg %p31
    %p38 = scmp.eq.s32.totalorder %s10, 1
    %p39 = por %p37, %p38
    %p40 = scmp.ne.s32.totalorder %s32, %s35
    %p41 = scmp.eq.s32.totalorder %s10, 0
    %p42 = por %p40, %p41
    %p43 = scmp.ne.s32.totalorder %s32, %s35
    %p44 = scmp.eq.s32.totalorder %s15, 1
    %p45 = por %p43, %p44
    %p46 = scmp.ne.s32.totalorder %s35, %s36
    %p47 = scmp.eq.s32.totalorder %s15, 0
    %p48 = por %p46, %p47
    %p49 = scmp.ne.s32.totalorder %s35, %s36
    %p50 = scmp.eq.s32.totalorder %s16, 1
    %p51 = por %p49, %p50
    %p53 = scmp.ne.s32.totalorder %s36, %s52
    %p54 = scmp.eq.s32.totalorder %s16, 0
    %p55 = por %p53, %p54
    %s56 = ssub.s32 %s18, %s25
    %p57 = scmp.eq.s32.totalorder %s56, 0
    %s59 = sadd.s32 %s58, 1
    %s60 = scalar_select %p57, %s58, %s59
    %p63 = pneg %p57
    %p64 = scmp.eq.s32.totalorder %s10, 1
    %p65 = por %p63, %p64
    %p66 = scmp.ne.s32.totalorder %s58, %s61
    %p67 = scmp.eq.s32.totalorder %s10, 0
    %p68 = por %p66, %p67
    %p69 = scmp.ne.s32.totalorder %s58, %s61
    %p70 = scmp.eq.s32.totalorder %s15, 1
    %p71 = por %p69, %p70
    %p72 = scmp.ne.s32.totalorder %s61, %s62
    %p73 = scmp.eq.s32.totalorder %s15, 0
    %p74 = por %p72, %p73
    %p75 = scmp.ne.s32.totalorder %s61, %s62
    %p76 = scmp.eq.s32.totalorder %s16, 1
    %p77 = por %p75, %p76
    %p79 = scmp.ne.s32.totalorder %s62, %s78
    %p80 = scmp.eq.s32.totalorder %s16, 0
    %p81 = por %p79, %p80
    %s82 = ssub.s32 %s18, %s25
    %p83 = scmp.eq.s32.totalorder %s82, 0
    %s85 = sadd.s32 %s84, 1
    %s86 = scalar_select %p83, %s84, %s85
    %p89 = pneg %p83
    %p90 = scmp.eq.s32.totalorder %s10, 1
    %p91 = por %p89, %p90
    %p92 = scmp.ne.s32.totalorder %s84, %s87
    %p93 = scmp.eq.s32.totalorder %s10, 0
    %p94 = por %p92, %p93
    %p95 = scmp.ne.s32.totalorder %s84, %s87
    %p96 = scmp.eq.s32.totalorder %s15, 1
    %p97 = por %p95, %p96
    %p98 = scmp.ne.s32.totalorder %s87, %s88
    %p99 = scmp.eq.s32.totalorder %s15, 0
    %p100 = por %p98, %p99
    %p101 = scmp.ne.s32.totalorder %s87, %s88
    %p102 = scmp.eq.s32.totalorder %s16, 1
    %p103 = por %p101, %p102
    %p105 = scmp.ne.s32.totalorder %s88, %s104
    %p106 = scmp.eq.s32.totalorder %s16, 0
    %p107 = por %p105, %p106
    %s108 = ssub.s32 %s17, %s29
    %s109 = ssub.s32 %s18, %s25
    %s110 = sor.u32 %s108, %s109
    %p111 = scmp.eq.s32.totalorder %s110, 0
    %s113 = sadd.s32 %s112, 1
    %s114 = scalar_select %p111, %s112, %s113
    %p117 = pneg %p111
    %p118 = scmp.eq.s32.totalorder %s10, 1
    %p119 = por %p117, %p118
    %p120 = scmp.ne.s32.totalorder %s112, %s115
    %p121 = scmp.eq.s32.totalorder %s10, 0
    %p122 = por %p120, %p121
    %p123 = scmp.ne.s32.totalorder %s112, %s115
    %p124 = scmp.eq.s32.totalorder %s15, 1
    %p125 = por %p123, %p124
    %p126 = scmp.ne.s32.totalorder %s115, %s116
    %p127 = scmp.eq.s32.totalorder %s15, 0
    %p128 = por %p126, %p127
    %p129 = scmp.ne.s32.totalorder %s115, %s116
    %p130 = scmp.eq.s32.totalorder %s16, 1
    %p131 = por %p129, %p130
    %p133 = scmp.ne.s32.totalorder %s116, %s132
    %p134 = scmp.eq.s32.totalorder %s16, 0
    %p135 = por %p133, %p134
    %s136 = ssub.s32 %s17, %s29
    %s137 = ssub.s32 %s18, %s25
    %s138 = sor.u32 %s136, %s137
    %p139 = scmp.eq.s32.totalorder %s138, 0
    %s141 = sadd.s32 %s140, 1
    %s142 = scalar_select %p139, %s140, %s141
    %p145 = pneg %p139
    %p146 = scmp.eq.s32.totalorder %s10, 1
    %p147 = por %p145, %p146
    %p148 = scmp.ne.s32.totalorder %s140, %s143
    %p149 = scmp.eq.s32.totalorder %s10, 0
    %p150 = por %p148, %p149
    %p151 = scmp.ne.s32.totalorder %s140, %s143
    %p152 = scmp.eq.s32.totalorder %s15, 1
    %p153 = por %p151, %p152
    %p154 = scmp.ne.s32.totalorder %s143, %s144
    %p155 = scmp.eq.s32.totalorder %s15, 0
    %p156 = por %p154, %p155
    %p157 = scmp.ne.s32.totalorder %s143, %s144
    %p158 = scmp.eq.s32.totalorder %s16, 1
    %p159 = por %p157, %p158
    %p161 = scmp.ne.s32.totalorder %s144, %s160
    %p162 = scmp.eq.s32.totalorder %s16, 0
    %p163 = por %p161, %p162
    %p164 = scmp.le.s32.totalorder 1, %s10
    %p165 = scmp.lt.s32.totalorder %s10, 3
    %p166 = pnand %p164, %p165
    %p167 = pneg %p166
    // Predicated region
    $region9: #{google_motion_net_forward.13} parent=5 // pred_check
      _
    $region10: #{google_motion_net_forward.13} parent=5 // pred_check_branch
      %169 = sbr.rel (%p166) target = $region12
    $region11: #{google_motion_net_forward.13} parent=5 // pred_region
      %s170 = ssub.s32 %s10, 1
      // Predicated region
      $region13: #{google_motion_net_forward.13} parent=11 // pred_check
        %p171 = pneg %p74
      $region14: #{google_motion_net_forward.13} parent=11 // pred_check_branch
        %173 = sbr.rel (%p171) target = $region16
      $region15: #{google_motion_net_forward.13} parent=11 // pred_region
        %p174 = scmp.lt.s32.totalorder %s20, 0
        %s175 = scalar_select %p174, %s20, 0
        %s176 = smul.addr %s175, 4
        %s177 = scalar_lea.vmem %s1, %s176
      $region16: #{google_motion_net_forward.13} parent=11 // pred_fallthru
        _
      // Predicated region
      $region17: #{google_motion_net_forward.13} parent=11 // pred_check
        %p178 = pneg %p100
      $region18: #{google_motion_net_forward.13} parent=11 // pred_check_branch
        %180 = sbr.rel (%p178) target = $region20
      $region19: #{google_motion_net_forward.13} parent=11 // pred_region
        %p181 = scmp.lt.s32.totalorder %s20, 0
        %s182 = scalar_select %p181, %s20, 0
        %s183 = scalar_lea.vmem %s2, %s182
      $region20: #{google_motion_net_forward.13} parent=11 // pred_fallthru
        _
    $region12: #{google_motion_net_forward.13} parent=5 // pred_fallthru
      _
    %p184 = scmp.lt.s32.totalorder %s10, 2
    // Predicated region
    $region21: #{google_motion_net_forward.13} parent=5 // pred_check
      %p185 = pneg %p184
    $region22: #{google_motion_net_forward.13} parent=5 // pred_check_branch
      %187 = sbr.rel (%p185) target = $region24
    $region23: #{google_motion_net_forward.13} parent=5 // pred_region
      // Predicated region
      $region25: #{google_motion_net_forward.13} parent=23 // pred_check
        %p188 = pneg %p42
      $region26: #{google_motion_net_forward.13} parent=23 // pred_check_branch
        %190 = sbr.rel (%p188) target = $region28
      $region27: #{google_motion_net_forward.13} parent=23 // pred_region
        %s191 = smul.u32 32, %s17
        %p192 = scmp.lt.s32.totalorder %s191, 63
        %s193 = scalar_select %p192, %s191, 63
        %s194 = smul.addr %s193, 4
        %s195 = scalar_lea.vmem %s0, %s194
        %s196 = smul.u32 32, %s17
      $region28: #{google_motion_net_forward.13} parent=23 // pred_fallthru
        _
      // Predicated region
      $region29: #{google_motion_net_forward.13} parent=23 // pred_check
        %p197 = pneg %p122
      $region30: #{google_motion_net_forward.13} parent=23 // pred_check_branch
        %199 = sbr.rel (%p197) target = $region32
      $region31: #{google_motion_net_forward.13} parent=23 // pred_region
        %s200 = smul.u32 32, %s17
        %p201 = scmp.lt.s32.totalorder %s200, 63
        %s202 = scalar_select %p201, %s200, 63
        %p203 = scmp.lt.s32.totalorder %s18, 0
        %s204 = scalar_select %p203, %s18, 0
        %s205 = sadd.s32 %s204, %s202
        %s206 = smul.addr %s205, 8
        %s207 = scalar_lea.vmem %s3, %s206
        %s208 = smul.u32 32, %s17
      $region32: #{google_motion_net_forward.13} parent=23 // pred_fallthru
        _
    $region24: #{google_motion_net_forward.13} parent=5 // pred_fallthru
      _
    %p209 = scmp.le.s32.totalorder 1, %s10
    %p210 = scmp.lt.s32.totalorder %s10, 3
    %p211 = pnand %p209, %p210
    %p212 = pneg %p211
    // Predicated region
    $region33: #{google_motion_net_forward.13} parent=5 // pred_check
      _
    $region34: #{google_motion_net_forward.13} parent=5 // pred_check_branch
      %214 = sbr.rel (%p211) target = $region36
    $region35: #{google_motion_net_forward.13} parent=5 // pred_region
      %s215 = ssub.s32 %s10, 1
      %s216 = smul.u32 32, %s19
      %p217 = scmp.lt.s32.totalorder %s216, 63
      %s218 = scalar_select %p217, %s216, 63
      %s219 = smul.addr %s218, 4
      %s220 = scalar_lea.vmem %s0, %s219
      %p221 = pneg %p48
      %p222 = pneg %p45
      %p223 = scmp.lt.s32.totalorder %s20, 0
      %s224 = scalar_select %p223, %s20, 0
      %s225 = smul.addr %s224, 4
      %s226 = scalar_lea.vmem %s1, %s225
      %p227 = pneg %p74
      %p228 = pneg %p71
      %p229 = scmp.lt.s32.totalorder %s20, 0
      %s230 = scalar_select %p229, %s20, 0
      %s231 = scalar_lea.vmem %s2, %s230
      %p232 = pneg %p100
      %p233 = pneg %p97
      %s234 = smul.u32 32, %s19
      %p235 = scmp.lt.s32.totalorder %s234, 63
      %s236 = scalar_select %p235, %s234, 63
      %p237 = scmp.lt.s32.totalorder %s20, 0
      %s238 = scalar_select %p237, %s20, 0
      %s239 = sadd.s32 %s238, %s236
      %s240 = smul.addr %s239, 8
      %s241 = scalar_lea.vmem %s3, %s240
      %p242 = pneg %p128
      %p243 = pneg %p125
      %p244 = pneg %p156
      %p245 = pneg %p153
      %s246 = smul.u32 32, %s19
      %p247 = scmp.lt.s32.totalorder %s246, 63
      %s248 = scalar_select %p247, %s246, 63
      %p249 = scmp.lt.s32.totalorder %s20, 0
      %s250 = scalar_select %p249, %s20, 0
      %s251 = sadd.s32 %s250, %s248
      %s252 = smul.addr %s251, 8
      %s253 = scalar_lea.vmem %s4, %s252
      %s254 = smul.u32 32, %s19
      %p255 = scmp.lt.s32.totalorder %s254, 63
      %s256 = scalar_select %p255, %s254, 63
      %s257 = smul.addr %s256, 4
      %s258 = scalar_lea.vmem %s0, %s257
      %s259 = smul.u32 32, %s19
      %p260 = scmp.lt.s32.totalorder %s20, 0
      %s261 = scalar_select %p260, %s20, 0
      %s262 = smul.addr %s261, 4
      %s263 = scalar_lea.vmem %s1, %s262
      %p264 = scmp.lt.s32.totalorder %s20, 0
      %s265 = scalar_select %p264, %s20, 0
      %s266 = scalar_lea.vmem %s2, %s265
      %s267 = smul.u32 32, %s19
      %p268 = scmp.lt.s32.totalorder %s267, 63
      %s269 = scalar_select %p268, %s267, 63
      %p270 = scmp.lt.s32.totalorder %s20, 0
      %s271 = scalar_select %p270, %s20, 0
      %s272 = sadd.s32 %s271, %s269
      %s273 = smul.addr %s272, 8
      %s274 = scalar_lea.vmem %s3, %s273
      %s275 = smul.u32 32, %s19
      %s276 = smul.u32 32, %s19
      %p277 = scmp.lt.s32.totalorder %s276, 63
      %s278 = scalar_select %p277, %s276, 63
      %p279 = scmp.lt.s32.totalorder %s20, 0
      %s280 = scalar_select %p279, %s20, 0
      %s281 = sadd.s32 %s280, %s278
      %s282 = smul.addr %s281, 8
      %s283 = scalar_lea.vmem %s4, %s282
      %s284 = smul.u32 32, %s19
      %v286 = vld [vmem:[%s258] sm:$0xf]
      %v287 = vld [vmem:[%s258 + $0x4] sm:$0xf]
      %v288 = vld [vmem:[%s258 + $0x8] sm:$0xf]
      %v289 = vld [vmem:[%s258 + $0xc] sm:$0xf]
      %v290 = vld [vmem:[%s258 + $0x10] sm:$0xf]
      %v291 = vld [vmem:[%s258 + $0x14] sm:$0xf]
      %v292 = vld [vmem:[%s258 + $0x18] sm:$0xf]
      %v293 = vld [vmem:[%s258 + $0x1c] sm:$0xf]
      %v294 = vld [vmem:[%s258 + $0x20] sm:$0xf]
      %v295 = vld [vmem:[%s258 + $0x24] sm:$0xf]
      %v296 = vld [vmem:[%s258 + $0x28] sm:$0xf]
      %v297 = vld [vmem:[%s258 + $0x2c] sm:$0xf]
      %v298 = vld [vmem:[%s258 + $0x30] sm:$0xf]
      %v299 = vld [vmem:[%s258 + $0x34] sm:$0xf]
      %v300 = vld [vmem:[%s258 + $0x38] sm:$0xf]
      %v301 = vld [vmem:[%s258 + $0x3c] sm:$0xf]
      %v302 = vld [vmem:[%s258 + $0x40] sm:$0xf]
      %v303 = vld [vmem:[%s258 + $0x44] sm:$0xf]
      %v304 = vld [vmem:[%s258 + $0x48] sm:$0xf]
      %v305 = vld [vmem:[%s258 + $0x4c] sm:$0xf]
      %v306 = vld [vmem:[%s258 + $0x50] sm:$0xf]
      %v307 = vld [vmem:[%s258 + $0x54] sm:$0xf]
      %v308 = vld [vmem:[%s258 + $0x58] sm:$0xf]
      %v309 = vld [vmem:[%s258 + $0x5c] sm:$0xf]
      %v310 = vld [vmem:[%s258 + $0x60] sm:$0xf]
      %v311 = vld [vmem:[%s258 + $0x64] sm:$0xf]
      %v312 = vld [vmem:[%s258 + $0x68] sm:$0xf]
      %v313 = vld [vmem:[%s258 + $0x6c] sm:$0xf]
      %v314 = vld [vmem:[%s258 + $0x70] sm:$0xf]
      %v315 = vld [vmem:[%s258 + $0x74] sm:$0xf]
      %v316 = vld [vmem:[%s258 + $0x78] sm:$0xf]
      %v317 = vld [vmem:[%s258 + $0x7c] sm:$0xf]
      %v318 = vld [vmem:[%s263] sm:$0xf]
      %v319 = vld [vmem:[%s263 + $0x4] sm:$0x3]
      %v320 = vld [vmem:[%s266] sm:$0x1]
      %v322 = vlaneseq
      %v323 = vshrl.u32 %v322, 7
      %v324 = vsub.s32 0, %v323
      %v325 = vrot.slane %v320, %v324
      %v359 = vunpack.c.l.b16 %v286
      %v360 = vunpack.c.l.b16 %v287
      %v361 = vunpack.c.l.b16 %v288
      %v362 = vunpack.c.l.b16 %v289
      %v363 = vunpack.c.l.b16 %v290
      %v364 = vunpack.c.l.b16 %v291
      %v365 = vunpack.c.l.b16 %v292
      %v366 = vunpack.c.l.b16 %v293
      %v367 = vunpack.c.l.b16 %v294
      %v368 = vunpack.c.l.b16 %v295
      %v369 = vunpack.c.l.b16 %v296
      %v370 = vunpack.c.l.b16 %v297
      %v371 = vunpack.c.l.b16 %v298
      %v372 = vunpack.c.l.b16 %v299
      %v373 = vunpack.c.l.b16 %v300
      %v374 = vunpack.c.l.b16 %v301
      %v375 = vunpack.c.l.b16 %v302
      %v376 = vunpack.c.l.b16 %v303
      %v377 = vunpack.c.l.b16 %v304
      %v378 = vunpack.c.l.b16 %v305
      %v379 = vunpack.c.l.b16 %v306
      %v380 = vunpack.c.l.b16 %v307
      %v381 = vunpack.c.l.b16 %v308
      %v382 = vunpack.c.l.b16 %v309
      %v383 = vunpack.c.l.b16 %v310
      %v384 = vunpack.c.l.b16 %v311
      %v385 = vunpack.c.l.b16 %v312
      %v386 = vunpack.c.l.b16 %v313
      %v387 = vunpack.c.l.b16 %v314
      %v388 = vunpack.c.l.b16 %v315
      %v389 = vunpack.c.l.b16 %v316
      %v390 = vunpack.c.l.b16 %v317
      %v391 = vpack.c.b16 %v360, %v359
      %v392 = vpack.c.b16 %v362, %v361
      %v393 = vpack.c.b16 %v364, %v363
      %v394 = vpack.c.b16 %v366, %v365
      %v395 = vpack.c.b16 %v368, %v367
      %v396 = vpack.c.b16 %v370, %v369
      %v397 = vpack.c.b16 %v372, %v371
      %v398 = vpack.c.b16 %v374, %v373
      %v399 = vpack.c.b16 %v376, %v375
      %v400 = vpack.c.b16 %v378, %v377
      %v401 = vpack.c.b16 %v380, %v379
      %v402 = vpack.c.b16 %v382, %v381
      %v403 = vpack.c.b16 %v384, %v383
      %v404 = vpack.c.b16 %v386, %v385
      %v405 = vpack.c.b16 %v388, %v387
      %v406 = vpack.c.b16 %v390, %v389
      %v409 = vunpack.c.l.b16 %v318
      %v410 = vunpack.c.l.b16 %v319
      %v411 = vpack.c.b16 %v410, %v409
      %vm412 = vcmask 97280
      %v414 = vsel %vm412, %v391, 0
      %v417 = vsel %vm412, %v392, 0
      %v420 = vsel %vm412, %v393, 0
      %v423 = vsel %vm412, %v394, 0
      %v426 = vsel %vm412, %v395, 0
      %v429 = vsel %vm412, %v396, 0
      %v432 = vsel %vm412, %v397, 0
      %v435 = vsel %vm412, %v398, 0
      %v438 = vsel %vm412, %v399, 0
      %v441 = vsel %vm412, %v400, 0
      %v444 = vsel %vm412, %v401, 0
      %v447 = vsel %vm412, %v402, 0
      %v450 = vsel %vm412, %v403, 0
      %v453 = vsel %vm412, %v404, 0
      %v456 = vsel %vm412, %v405, 0
      %v459 = vsel %vm412, %v406, 0
      %vm461 = vcmask 1045504
      %v463 = vsel %vm461, %v411, 0
      %465 = vmatprep.subr.bf16.mxu0 0
      %466 = vmatpush1.bf16.msra.mxu0 %v463
      %467 = vmatprep.subr.bf16.mxu0 0
      %468 = vmatpush1.bf16.msra.mxu0 0
      %469 = vmatprep.subr.bf16.mxu0 0
      %470 = vmatpush1.bf16.msra.mxu0 0
      %471 = vmatprep.subr.bf16.mxu0 0
      %472 = vmatpush1.bf16.msra.mxu0 0
      %473 = vmatprep.subr.bf16.mxu0 0
      %474 = vmatpush1.bf16.msra.mxu0 0
      %475 = vmatprep.subr.bf16.mxu0 0
      %476 = vmatpush1.bf16.msra.mxu0 0
      %477 = vmatprep.subr.bf16.mxu0 0
      %478 = vmatpush1.bf16.msra.mxu0 0
      %479 = vmatprep.subr.bf16.mxu0 0
      %480 = vmatpush1.bf16.msra.mxu0 0
      %481 = vmatprep.subr.bf16.mxu0 0
      %482 = vmatpush1.bf16.msra.mxu0 0
      %483 = vmatprep.subr.bf16.mxu0 0
      %484 = vmatpush1.bf16.msra.mxu0 0
      %485 = vmatprep.subr.bf16.mxu0 0
      %486 = vmatpush1.bf16.msra.mxu0 0
      %487 = vmatprep.subr.bf16.mxu0 0
      %488 = vmatpush1.bf16.msra.mxu0 0
      %489 = vmatprep.subr.bf16.mxu0 0
      %490 = vmatpush1.bf16.msra.mxu0 0
      %491 = vmatprep.subr.bf16.mxu0 0
      %492 = vmatpush1.bf16.msra.mxu0 0
      %493 = vmatprep.subr.bf16.mxu0 0
      %494 = vmatpush1.bf16.msra.mxu0 0
      %495 = vmatprep.subr.bf16.mxu0 0
      %496 = vmatpush1.bf16.msra.mxu0 0
      %497 = vmatprep.mubr.bf16.mxu0 0
      %498 = vmatmul.mubr.bf16.gmra.mrb[0].mxu0 %v414
      %v499 = vpop.f32.mrb[0].mxu0
      %v500 = vadd.f32 %v325, %v499
      %v501 = vpop.f32.mrb[0].mxu0
      %v502 = vpop.f32.mrb[0].mxu0
      %v503 = vadd.f32 %v325, %v502
      %v504 = vpop.f32.mrb[0].mxu0
      %505 = vmatprep.mubr.bf16.mxu0 0
      %506 = vmatmul.mubr.bf16.gmra.mrb[0].mxu0 %v417
      %v507 = vpop.f32.mrb[0].mxu0
      %v508 = vadd.f32 %v325, %v507
      %v509 = vpop.f32.mrb[0].mxu0
      %v510 = vpop.f32.mrb[0].mxu0
      %v511 = vadd.f32 %v325, %v510
      %v512 = vpop.f32.mrb[0].mxu0
      %513 = vmatprep.mubr.bf16.mxu0 0
      %514 = vmatmul.mubr.bf16.gmra.mrb[0].mxu0 %v420
      %v515 = vpop.f32.mrb[0].mxu0
      %v516 = vadd.f32 %v325, %v515
      %v517 = vpop.f32.mrb[0].mxu0
      %v518 = vpop.f32.mrb[0].mxu0
      %v519 = vadd.f32 %v325, %v518
      %v520 = vpop.f32.mrb[0].mxu0
      %521 = vmatprep.mubr.bf16.mxu0 0
      %522 = vmatmul.mubr.bf16.gmra.mrb[0].mxu0 %v423
      %v523 = vpop.f32.mrb[0].mxu0
      %v524 = vadd.f32 %v325, %v523
      %v525 = vpop.f32.mrb[0].mxu0
      %v526 = vpop.f32.mrb[0].mxu0
      %v527 = vadd.f32 %v325, %v526
      %v528 = vpop.f32.mrb[0].mxu0
      %529 = vmatprep.mubr.bf16.mxu0 0
      %530 = vmatmul.mubr.bf16.gmra.mrb[0].mxu0 %v426
      %v531 = vpop.f32.mrb[0].mxu0
      %v532 = vadd.f32 %v325, %v531
      %v533 = vpop.f32.mrb[0].mxu0
      %v534 = vpop.f32.mrb[0].mxu0
      %v535 = vadd.f32 %v325, %v534
      %v536 = vpop.f32.mrb[0].mxu0
      %537 = vmatprep.mubr.bf16.mxu0 0
      %538 = vmatmul.mubr.bf16.gmra.mrb[0].mxu0 %v429
      %v539 = vpop.f32.mrb[0].mxu0
      %v540 = vadd.f32 %v325, %v539
      %v541 = vpop.f32.mrb[0].mxu0
      %v542 = vpop.f32.mrb[0].mxu0
      %v543 = vadd.f32 %v325, %v542
      %v544 = vpop.f32.mrb[0].mxu0
      %545 = vmatprep.mubr.bf16.mxu0 0
      %546 = vmatmul.mubr.bf16.gmra.mrb[0].mxu0 %v432
      %v547 = vpop.f32.mrb[0].mxu0
      %v548 = vadd.f32 %v325, %v547
      %v549 = vpop.f32.mrb[0].mxu0
      %v550 = vpop.f32.mrb[0].mxu0
      %v551 = vadd.f32 %v325, %v550
      %v552 = vpop.f32.mrb[0].mxu0
      %553 = vmatprep.mubr.bf16.mxu0 0
      %554 = vmatmul.mubr.bf16.gmra.mrb[0].mxu0 %v435
      %v555 = vpop.f32.mrb[0].mxu0
      %v556 = vadd.f32 %v325, %v555
      %v557 = vpop.f32.mrb[0].mxu0
      %v558 = vpop.f32.mrb[0].mxu0
      %v559 = vadd.f32 %v325, %v558
      %v560 = vpop.f32.mrb[0].mxu0
      %561 = vmatprep.mubr.bf16.mxu0 0
      %562 = vmatmul.mubr.bf16.gmra.mrb[0].mxu0 %v438
      %v563 = vpop.f32.mrb[0].mxu0
      %v564 = vadd.f32 %v325, %v563
      %v565 = vpop.f32.mrb[0].mxu0
      %v566 = vpop.f32.mrb[0].mxu0
      %v567 = vadd.f32 %v325, %v566
      %v568 = vpop.f32.mrb[0].mxu0
      %569 = vmatprep.mubr.bf16.mxu0 0
      %570 = vmatmul.mubr.bf16.gmra.mrb[0].mxu0 %v441
      %v571 = vpop.f32.mrb[0].mxu0
      %v572 = vadd.f32 %v325, %v571
      %v573 = vpop.f32.mrb[0].mxu0
      %v574 = vpop.f32.mrb[0].mxu0
      %v575 = vadd.f32 %v325, %v574
      %v576 = vpop.f32.mrb[0].mxu0
      %577 = vmatprep.mubr.bf16.mxu0 0
      %578 = vmatmul.mubr.bf16.gmra.mrb[0].mxu0 %v444
      %v579 = vpop.f32.mrb[0].mxu0
      %v580 = vadd.f32 %v325, %v579
      %v581 = vpop.f32.mrb[0].mxu0
      %v582 = vpop.f32.mrb[0].mxu0
      %v583 = vadd.f32 %v325, %v582
      %v584 = vpop.f32.mrb[0].mxu0
      %585 = vmatprep.mubr.bf16.mxu0 0
      %586 = vmatmul.mubr.bf16.gmra.mrb[0].mxu0 %v447
      %v587 = vpop.f32.mrb[0].mxu0
      %v588 = vadd.f32 %v325, %v587
      %v589 = vpop.f32.mrb[0].mxu0
      %v590 = vpop.f32.mrb[0].mxu0
      %v591 = vadd.f32 %v325, %v590
      %v592 = vpop.f32.mrb[0].mxu0
      %593 = vmatprep.mubr.bf16.mxu0 0
      %594 = vmatmul.mubr.bf16.gmra.mrb[0].mxu0 %v450
      %v595 = vpop.f32.mrb[0].mxu0
      %v596 = vadd.f32 %v325, %v595
      %v597 = vpop.f32.mrb[0].mxu0
      %v598 = vpop.f32.mrb[0].mxu0
      %v599 = vadd.f32 %v325, %v598
      %v600 = vpop.f32.mrb[0].mxu0
      %601 = vmatprep.mubr.bf16.mxu0 0
      %602 = vmatmul.mubr.bf16.gmra.mrb[0].mxu0 %v453
      %v603 = vpop.f32.mrb[0].mxu0
      %v604 = vadd.f32 %v325, %v603
      %v605 = vpop.f32.mrb[0].mxu0
      %v606 = vpop.f32.mrb[0].mxu0
      %v607 = vadd.f32 %v325, %v606
      %v608 = vpop.f32.mrb[0].mxu0
      %609 = vmatprep.mubr.bf16.mxu0 0
      %610 = vmatmul.mubr.bf16.gmra.mrb[0].mxu0 %v456
      %v611 = vpop.f32.mrb[0].mxu0
      %v612 = vadd.f32 %v325, %v611
      %v613 = vpop.f32.mrb[0].mxu0
      %v614 = vpop.f32.mrb[0].mxu0
      %v615 = vadd.f32 %v325, %v614
      %v616 = vpop.f32.mrb[0].mxu0
      %617 = vmatprep.mubr.bf16.mxu0 0
      %618 = vmatmul.mubr.bf16.gmra.mrb[0].mxu0 %v459
      %v619 = vpop.f32.mrb[0].mxu0
      %v620 = vadd.f32 %v325, %v619
      %v621 = vpop.f32.mrb[0].mxu0
      %v622 = vpop.f32.mrb[0].mxu0
      %v623 = vadd.f32 %v325, %v622
      %v624 = vpop.f32.mrb[0].mxu0
      %625 = vdwg.mxu0
      %v626 = vmax.f32 %v500, 0.0
      %v627 = vmax.f32 %v503, 0.0
      %v628 = vmax.f32 %v508, 0.0
      %v629 = vmax.f32 %v511, 0.0
      %v630 = vmax.f32 %v516, 0.0
      %v631 = vmax.f32 %v519, 0.0
      %v632 = vmax.f32 %v524, 0.0
      %v633 = vmax.f32 %v527, 0.0
      %v634 = vmax.f32 %v532, 0.0
      %v635 = vmax.f32 %v535, 0.0
      %v636 = vmax.f32 %v540, 0.0
      %v637 = vmax.f32 %v543, 0.0
      %v638 = vmax.f32 %v548, 0.0
      %v639 = vmax.f32 %v551, 0.0
      %v640 = vmax.f32 %v556, 0.0
      %v641 = vmax.f32 %v559, 0.0
      %v642 = vmax.f32 %v564, 0.0
      %v643 = vmax.f32 %v567, 0.0
      %v644 = vmax.f32 %v572, 0.0
      %v645 = vmax.f32 %v575, 0.0
      %v646 = vmax.f32 %v580, 0.0
      %v647 = vmax.f32 %v583, 0.0
      %v648 = vmax.f32 %v588, 0.0
      %v649 = vmax.f32 %v591, 0.0
      %v650 = vmax.f32 %v596, 0.0
      %v651 = vmax.f32 %v599, 0.0
      %v652 = vmax.f32 %v604, 0.0
      %v653 = vmax.f32 %v607, 0.0
      %v654 = vmax.f32 %v612, 0.0
      %v655 = vmax.f32 %v615, 0.0
      %v656 = vmax.f32 %v620, 0.0
      %v657 = vmax.f32 %v623, 0.0
      %v658 = vld [vmem:[%s274] sm:$0xff]
      %v659 = vld [vmem:[%s274 + $0x8] sm:$0xff]
      %v660 = vld [vmem:[%s274 + $0x10] sm:$0xff]
      %v661 = vld [vmem:[%s274 + $0x18] sm:$0xff]
      %v662 = vld [vmem:[%s274 + $0x20] sm:$0xff]
      %v663 = vld [vmem:[%s274 + $0x28] sm:$0xff]
      %v664 = vld [vmem:[%s274 + $0x30] sm:$0xff]
      %v665 = vld [vmem:[%s274 + $0x38] sm:$0xff]
      %v666 = vld [vmem:[%s274 + $0x40] sm:$0xff]
      %v667 = vld [vmem:[%s274 + $0x48] sm:$0xff]
      %v668 = vld [vmem:[%s274 + $0x50] sm:$0xff]
      %v669 = vld [vmem:[%s274 + $0x58] sm:$0xff]
      %v670 = vld [vmem:[%s274 + $0x60] sm:$0xff]
      %v671 = vld [vmem:[%s274 + $0x68] sm:$0xff]
      %v672 = vld [vmem:[%s274 + $0x70] sm:$0xff]
      %v673 = vld [vmem:[%s274 + $0x78] sm:$0xff]
      %v674 = vld [vmem:[%s274 + $0x80] sm:$0xff]
      %v675 = vld [vmem:[%s274 + $0x88] sm:$0xff]
      %v676 = vld [vmem:[%s274 + $0x90] sm:$0xff]
      %v677 = vld [vmem:[%s274 + $0x98] sm:$0xff]
      %v678 = vld [vmem:[%s274 + $0xa0] sm:$0xff]
      %v679 = vld [vmem:[%s274 + $0xa8] sm:$0xff]
      %v680 = vld [vmem:[%s274 + $0xb0] sm:$0xff]
      %v681 = vld [vmem:[%s274 + $0xb8] sm:$0xff]
      %v682 = vld [vmem:[%s274 + $0xc0] sm:$0xff]
      %v683 = vld [vmem:[%s274 + $0xc8] sm:$0xff]
      %v684 = vld [vmem:[%s274 + $0xd0] sm:$0xff]
      %v685 = vld [vmem:[%s274 + $0xd8] sm:$0xff]
      %v686 = vld [vmem:[%s274 + $0xe0] sm:$0xff]
      %v687 = vld [vmem:[%s274 + $0xe8] sm:$0xff]
      %v688 = vld [vmem:[%s274 + $0xf0] sm:$0xff]
      %v689 = vld [vmem:[%s274 + $0xf8] sm:$0xff]
      %v690 = vadd.f32 %v626, %v658
      %v691 = vadd.f32 %v627, %v659
      %v692 = vadd.f32 %v628, %v660
      %v693 = vadd.f32 %v629, %v661
      %v694 = vadd.f32 %v630, %v662
      %v695 = vadd.f32 %v631, %v663
      %v696 = vadd.f32 %v632, %v664
      %v697 = vadd.f32 %v633, %v665
      %v698 = vadd.f32 %v634, %v666
      %v699 = vadd.f32 %v635, %v667
      %v700 = vadd.f32 %v636, %v668
      %v701 = vadd.f32 %v637, %v669
      %v702 = vadd.f32 %v638, %v670
      %v703 = vadd.f32 %v639, %v671
      %v704 = vadd.f32 %v640, %v672
      %v705 = vadd.f32 %v641, %v673
      %v706 = vadd.f32 %v642, %v674
      %v707 = vadd.f32 %v643, %v675
      %v708 = vadd.f32 %v644, %v676
      %v709 = vadd.f32 %v645, %v677
      %v710 = vadd.f32 %v646, %v678
      %v711 = vadd.f32 %v647, %v679
      %v712 = vadd.f32 %v648, %v680
      %v713 = vadd.f32 %v649, %v681
      %v714 = vadd.f32 %v650, %v682
      %v715 = vadd.f32 %v651, %v683
      %v716 = vadd.f32 %v652, %v684
      %v717 = vadd.f32 %v653, %v685
      %v718 = vadd.f32 %v654, %v686
      %v719 = vadd.f32 %v655, %v687
      %v720 = vadd.f32 %v656, %v688
      %v721 = vadd.f32 %v657, %v689
      %722 = vst [vmem:[%s283] sm:$0xff] %v690
      %723 = vst [vmem:[%s283 + $0x8] sm:$0xff] %v691
      %724 = vst [vmem:[%s283 + $0x10] sm:$0xff] %v692
      %725 = vst [vmem:[%s283 + $0x18] sm:$0xff] %v693
      %726 = vst [vmem:[%s283 + $0x20] sm:$0xff] %v694
      %727 = vst [vmem:[%s283 + $0x28] sm:$0xff] %v695
      %728 = vst [vmem:[%s283 + $0x30] sm:$0xff] %v696
      %729 = vst [vmem:[%s283 + $0x38] sm:$0xff] %v697
      %730 = vst [vmem:[%s283 + $0x40] sm:$0xff] %v698
      %731 = vst [vmem:[%s283 + $0x48] sm:$0xff] %v699
      %732 = vst [vmem:[%s283 + $0x50] sm:$0xff] %v700
      %733 = vst [vmem:[%s283 + $0x58] sm:$0xff] %v701
      %734 = vst [vmem:[%s283 + $0x60] sm:$0xff] %v702
      %735 = vst [vmem:[%s283 + $0x68] sm:$0xff] %v703
      %736 = vst [vmem:[%s283 + $0x70] sm:$0xff] %v704
      %737 = vst [vmem:[%s283 + $0x78] sm:$0xff] %v705
      %738 = vst [vmem:[%s283 + $0x80] sm:$0xff] %v706
      %739 = vst [vmem:[%s283 + $0x88] sm:$0xff] %v707
      %740 = vst [vmem:[%s283 + $0x90] sm:$0xff] %v708
      %741 = vst [vmem:[%s283 + $0x98] sm:$0xff] %v709
      %742 = vst [vmem:[%s283 + $0xa0] sm:$0xff] %v710
      %743 = vst [vmem:[%s283 + $0xa8] sm:$0xff] %v711
      %744 = vst [vmem:[%s283 + $0xb0] sm:$0xff] %v712
      %745 = vst [vmem:[%s283 + $0xb8] sm:$0xff] %v713
      %746 = vst [vmem:[%s283 + $0xc0] sm:$0xff] %v714
      %747 = vst [vmem:[%s283 + $0xc8] sm:$0xff] %v715
      %748 = vst [vmem:[%s283 + $0xd0] sm:$0xff] %v716
      %749 = vst [vmem:[%s283 + $0xd8] sm:$0xff] %v717
      %750 = vst [vmem:[%s283 + $0xe0] sm:$0xff] %v718
      %751 = vst [vmem:[%s283 + $0xe8] sm:$0xff] %v719
      %752 = vst [vmem:[%s283 + $0xf0] sm:$0xff] %v720
      %753 = vst [vmem:[%s283 + $0xf8] sm:$0xff] %v721
      %s754 = smul.u32 32, %s19
      %p755 = scmp.lt.s32.totalorder %s754, 63
      %s756 = scalar_select %p755, %s754, 63
      %p757 = scmp.lt.s32.totalorder %s20, 0
      %s758 = scalar_select %p757, %s20, 0
      %s759 = sadd.s32 %s758, %s756
      %s760 = smul.addr %s759, 8
      %s761 = scalar_lea.vmem %s4, %s760
      // Predicated region
      $region37: #{google_motion_net_forward.13} parent=35 // pred_check
        %p762 = pneg %p153
      $region38: #{google_motion_net_forward.13} parent=35 // pred_check_branch
        %764 = sbr.rel (%p762) target = $region40
      $region39: #{google_motion_net_forward.13} parent=35 // pred_region
        %s765 = smul.u32 32, %s19
      $region40: #{google_motion_net_forward.13} parent=35 // pred_fallthru
        _
    $region36: #{google_motion_net_forward.13} parent=5 // pred_fallthru
      _
    %p766 = scmp.le.s32.totalorder 2, %s10
    // Predicated region
    $region41: #{google_motion_net_forward.13} parent=5 // pred_check
      %p767 = pneg %p766
    $region42: #{google_motion_net_forward.13} parent=5 // pred_check_branch
      %769 = sbr.rel (%p767) target = $region44
    $region43: #{google_motion_net_forward.13} parent=5 // pred_region
      %s770 = ssub.s32 %s10, 2
      // Predicated region
      $region45: #{google_motion_net_forward.13} parent=43 // pred_check
        %p771 = pneg %p159
      $region46: #{google_motion_net_forward.13} parent=43 // pred_check_branch
        %773 = sbr.rel (%p771) target = $region48
      $region47: #{google_motion_net_forward.13} parent=43 // pred_region
        %s774 = smul.u32 32, %s21
        %p775 = scmp.lt.s32.totalorder %s774, 63
        %s776 = scalar_select %p775, %s774, 63
        %p777 = scmp.lt.s32.totalorder %s22, 0
        %s778 = scalar_select %p777, %s22, 0
        %s779 = sadd.s32 %s778, %s776
        %s780 = smul.addr %s779, 8
        %s781 = scalar_lea.vmem %s4, %s780
      $region48: #{google_motion_net_forward.13} parent=43 // pred_fallthru
        _
    $region44: #{google_motion_net_forward.13} parent=5 // pred_fallthru
      _
  $region6: #{google_motion_net_forward.13} parent=0 // loop_footer
    %s14 = sadd.s32 1, %s10
  $region7: #{google_motion_net_forward.13} parent=0 // loop_footer_branch
    %9 = sbr.rel target = $region3
  $region8: #{google_motion_net_forward.13} parent=0 // loop_exit
    _

</llo_original>
